<compile_context>
chip_gen: v7x
topology: tpu7x:2x2x1
jax: 0.10.0
libtpu: 0.0.40
codegen_flags: <defaults>
</compile_context>

<pallas_src>
import functools
import math

import jax
import jax.numpy as jnp
from jax import lax
from jax.experimental import pallas as pl
from jax.experimental.pallas import tpu as pltpu

# ----------------------------- model dims ---------------------------------
B = 2      # batch
T = 8      # target (decoder) sequence length
S = 16     # source (memory) sequence length
D = 32     # model size
H = 4      # attention heads
DFF = 64   # feed-forward hidden size
EPS = 1e-12
LANE = 128
NEG = -1e30   # additive mask bias; exp(NEG - rowmax) underflows to exactly 0.0 in f32


# ------------------------------- kernel ------------------------------------
def decoder_layer_kernel(x_ref, sa_bias_ref, mem_ref, ca_bias_ref,
                         inw_ref, sa_ow_ref, ca_ow_ref, ffw_ref, vec_ref,
                         out_ref, *, n_heads):
    d = x_ref.shape[1]
    dk = d // n_heads
    dff = ffw_ref.shape[0] - d

    inw = inw_ref[...]            # (D, 6*128)  in-projection weights, 128-aligned segs
    ffw = ffw_ref[...]            # (D+DFF, 128) FFN weights
    vec = vec_ref[...]            # (16, 384)   biases + norm params, one per row

    sa_qkv_b = vec[0:1, :]                     # (1, 384) matches fused QKV output layout
    ca_q_b = vec[1:2, 0:d]
    ca_kv_b = vec[2:3, 0:2 * LANE]             # (1, 256) matches fused KV output layout
    sa_o_b = vec[3:4, 0:d]
    ca_o_b = vec[4:5, 0:d]
    ff_b1 = vec[5:6, 0:dff]
    ff_b2 = vec[6:7, 0:d]
    n1_g, n1_b = vec[7:8, 0:d], vec[8:9, 0:d]
    n2_g, n2_b = vec[9:10, 0:d], vec[10:11, 0:d]
    n3_g, n3_b = vec[11:12, 0:d], vec[12:13, 0:d]

    x = x_ref[...]                # (B*T, D)  batch folded into rows
    mem = mem_ref[...]            # (B*S, D)

    def layer_norm(v, g, b_):
        mu = jnp.mean(v, axis=-1, keepdims=True)
        var = jnp.mean((v - mu) * (v - mu), axis=-1, keepdims=True)
        return (v - mu) * lax.rsqrt(var + EPS) * g + b_

    def heads(mat, col0):
        # (N, W) -> (H, N, dk): one lane slice per head, stacked on a new leading axis.
        return jnp.stack(
            [mat[:, col0 + h * dk:col0 + (h + 1) * dk] for h in range(n_heads)], axis=0)

    def attention(q_h, k_h, v_h, bias2d, o_w, o_b):
        # q_h: (H, Nq, dk); k_h/v_h: (H, Nk, dk); bias2d: (Nq, Nk) additive (0 / -1e30).
        # The bias also blocks cross-batch attention, so no per-batch handling is needed.
        scores = jnp.einsum("hqd,hkd->hqk", q_h, k_h,
                            preferred_element_type=jnp.float32) + bias2d
        p = jnp.exp(scores - jnp.max(scores, axis=-1, keepdims=True))
        ctx = jnp.einsum("hqk,hkd->hqd", p, v_h,
                         preferred_element_type=jnp.float32)
        # deferred softmax normalization (exact; masked terms are exactly 0)
        ctx = ctx * (1.0 / jnp.sum(p, axis=-1, keepdims=True))
        # head merge folded into the per-head output projection (no lane concatenate)
        per_head = jnp.einsum("hqd,hdo->hqo", ctx, o_w,
                              preferred_element_type=jnp.float32)   # (H, Nq, D)
        out = per_head[0]
        for h in range(1, n_heads):
            out = out + per_head[h]
        return out + o_b

    # ---- block 1: self-attention (normalize_before=True, concat_after=False) ----
    residual = x
    xn = layer_norm(x, n1_g, n1_b)
    qkv = jnp.dot(xn, inw[:, 0:3 * LANE],
                  preferred_element_type=jnp.float32) + sa_qkv_b    # (N, 384)
    x = attention(heads(qkv, 0), heads(qkv, LANE), heads(qkv, 2 * LANE),
                  sa_bias_ref[...], sa_ow_ref[...], sa_o_b) + residual

    # ---- block 2: cross-attention over encoder memory ----
    residual = x
    xn = layer_norm(x, n2_g, n2_b)
    q = jnp.dot(xn, inw[:, 3 * LANE:3 * LANE + d],
                preferred_element_type=jnp.float32) + ca_q_b        # (N, D)
    kv = jnp.dot(mem, inw[:, 4 * LANE:6 * LANE],
                 preferred_element_type=jnp.float32) + ca_kv_b      # (Nk, 256)
    x = attention(heads(q, 0), heads(kv, 0), heads(kv, LANE),
                  ca_bias_ref[...], ca_ow_ref[...], ca_o_b) + residual

    # ---- block 3: positionwise feed-forward ----
    residual = x
    xn = layer_norm(x, n3_g, n3_b)
    h1 = jnp.maximum(
        jnp.dot(xn, ffw[0:d, 0:dff], preferred_element_type=jnp.float32) + ff_b1, 0.0)
    x = jnp.dot(h1, ffw[d:d + dff, 0:d],
                preferred_element_type=jnp.float32) + ff_b2 + residual

    out_ref[...] = x


# ------------------------------ param packing -------------------------------
def pack_params(params):
    """Pack the 26 parameter tensors into 5 lane-aligned slabs.  Call ONCE (hoisted
    out of the per-step path); 1/sqrt(dk) is folded into the Q projections."""
    d = params["sa_wq"].shape[0]
    dk = d // H
    dff = params["ff_w1"].shape[1]
    scale = 1.0 / math.sqrt(dk)

    def seg(w):  # (D, w) -> (D, 128), zero-padded columns (128-aligned segment)
        w = w.astype(jnp.float32)
        return jnp.pad(w, ((0, 0), (0, LANE - w.shape[1])))

    inw = jnp.concatenate(
        [seg(params["sa_wq"] * scale), seg(params["sa_wk"]), seg(params["sa_wv"]),
         seg(params["ca_wq"] * scale), seg(params["ca_wk"]), seg(params["ca_wv"])],
        axis=1)                                                       # (D, 6*128)

    # output projections, head-major: (H, dk, D)
    sa_ow = params["sa_wo"].astype(jnp.float32).reshape(H, dk, d)
    ca_ow = params["ca_wo"].astype(jnp.float32).reshape(H, dk, d)

    ffw = jnp.zeros((d + dff, LANE), jnp.float32)
    ffw = ffw.at[0:d, 0:dff].set(params["ff_w1"].astype(jnp.float32))
    ffw = ffw.at[d:d + dff, 0:d].set(params["ff_w2"].astype(jnp.float32))

    width = 3 * LANE

    def row_at(pieces):
        r = jnp.zeros((1, width), jnp.float32)
        for off, v in pieces:
            v = jnp.reshape(v, (1, -1)).astype(jnp.float32)
            r = r.at[0:1, off:off + v.shape[1]].set(v)
        return r

    vec = jnp.concatenate([
        row_at([(0, params["sa_bq"] * scale), (LANE, params["sa_bk"]),
                (2 * LANE, params["sa_bv"])]),                        # 0: fused QKV bias
        row_at([(0, params["ca_bq"] * scale)]),                       # 1
        row_at([(0, params["ca_bk"]), (LANE, params["ca_bv"])]),      # 2: fused KV bias
        row_at([(0, params["sa_bo"])]),                               # 3
        row_at([(0, params["ca_bo"])]),                               # 4
        row_at([(0, params["ff_b1"])]),                               # 5
        row_at([(0, params["ff_b2"])]),                               # 6
        row_at([(0, params["n1_g"])]), row_at([(0, params["n1_b"])]), # 7, 8
        row_at([(0, params["n2_g"])]), row_at([(0, params["n2_b"])]), # 9, 10
        row_at([(0, params["n3_g"])]), row_at([(0, params["n3_b"])]), # 11, 12
        jnp.zeros((3, width), jnp.float32),                           # sublane pad -> 16 rows
    ], axis=0)                                                        # (16, 384)

    return inw, sa_ow, ca_ow, ffw, vec


# ------------------------------ wrapper -------------------------------------
@jax.jit
def onnx_decoder_layer(x, mask, memory, memory_mask, packed):
    """Runs the decoder layer. Returns (y, mask) like the PyTorch module."""
    inw, sa_ow, ca_ow, ffw, vec = packed
    b, t, d = x.shape
    s = memory.shape[1]
    n_q, n_k = b * t, b * s
    dk = d // H
    dff = ffw.shape[0] - d

    # Additive mask bias with batch folded into the sequence dims: entries are 0 for
    # (same batch & unmasked), -1e30 otherwise (incl. every cross-batch pair).
    same = jnp.arange(b)[:, None, None, None] == jnp.arange(b)[None, None, :, None]
    sa_inner = jnp.where(mask == 0.0, NEG, 0.0)                      # (B, T, T)
    sa_bias = jnp.where(same, sa_inner[:, :, None, :], NEG).reshape(n_q, n_q)
    ca_inner = jnp.where(memory_mask == 0.0, NEG, 0.0)               # (B, 1, S)
    ca_bias = jnp.broadcast_to(jnp.where(same, ca_inner[:, :, None, :], NEG),
                               (b, t, b, s)).reshape(n_q, n_k)

    flops = (2 * (n_q * d * 3 * LANE + n_q * d * d + n_k * d * 2 * LANE)   # projections
             + 4 * H * n_q * (n_q + n_k) * dk                              # QK^T + PV
             + 4 * H * n_q * dk * d                                        # output projs
             + 4 * n_q * d * dff)                                          # FFN
    transcendentals = H * n_q * (n_q + n_k) + 3 * n_q
    bytes_accessed = 4 * (2 * n_q * d + n_k * d + n_q * n_q + n_q * n_k
                          + inw.size + sa_ow.size + ca_ow.size + ffw.size + vec.size)

    vmem_spec = pl.BlockSpec(memory_space=pltpu.MemorySpace.VMEM)
    out = pl.pallas_call(
        functools.partial(decoder_layer_kernel, n_heads=H),
        out_shape=jax.ShapeDtypeStruct((n_q, d), jnp.float32),
        in_specs=[vmem_spec] * 9,
        out_specs=vmem_spec,
        cost_estimate=pl.CostEstimate(flops=flops, transcendentals=transcendentals,
                                      bytes_accessed=bytes_accessed),
    )(x.reshape(n_q, d), sa_bias, memory.reshape(n_k, d), ca_bias,
      inw, sa_ow, ca_ow, ffw, vec)
    return out.reshape(b, t, d), mask


# --------------------------- pure-JAX reference ------------------------------
NEG_INF = float(jnp.finfo(jnp.float32).min)


def _ref_layer_norm(x, g, b):
    mu = jnp.mean(x, axis=-1, keepdims=True)
    var = jnp.mean((x - mu) ** 2, axis=-1, keepdims=True)
    return (x - mu) / jnp.sqrt(var + EPS) * g + b


def _ref_mha(xq, xkv, mask, wq, bq, wk, bk, wv, bv, wo, bo):
    bsz, tq, d = xq.shape
    tk = xkv.shape[1]
    dk = d // H
    q = (xq @ wq + bq).reshape(bsz, tq, H, dk).transpose(0, 2, 1, 3)
    k = (xkv @ wk + bk).reshape(bsz, tk, H, dk).transpose(0, 2, 1, 3)
    v = (xkv @ wv + bv).reshape(bsz, tk, H, dk).transpose(0, 2, 1, 3)
    scores = jnp.einsum("bhqd,bhkd->bhqk", q, k) / math.sqrt(dk)
    m = (mask == 0.0)[:, None, :, :]
    scores = jnp.where(m, NEG_INF, scores)
    attn = jax.nn.softmax(scores, axis=-1)
    attn = jnp.where(m, 0.0, attn)
    ctx = jnp.einsum("bhqk,bhkd->bhqd", attn, v).transpose(0, 2, 1, 3).reshape(bsz, tq, d)
    return ctx @ wo + bo


def reference(x, mask, memory, memory_mask, p):
    res = x
    xn = _ref_layer_norm(x, p["n1_g"], p["n1_b"])
    x = _ref_mha(xn, xn, mask, p["sa_wq"], p["sa_bq"], p["sa_wk"], p["sa_bk"],
                 p["sa_wv"], p["sa_bv"], p["sa_wo"], p["sa_bo"]) + res
    res = x
    xn = _ref_layer_norm(x, p["n2_g"], p["n2_b"])
    x = _ref_mha(xn, memory, memory_mask, p["ca_wq"], p["ca_bq"], p["ca_wk"],
                 p["ca_bk"], p["ca_wv"], p["ca_bv"], p["ca_wo"], p["ca_bo"]) + res
    res = x
    xn = _ref_layer_norm(x, p["n3_g"], p["n3_b"])
    h = jnp.maximum(xn @ p["ff_w1"] + p["ff_b1"], 0.0)
    x = h @ p["ff_w2"] + p["ff_b2"] + res
    return x


# --------------------------------- main --------------------------------------
def _make_params(key):
    ks = jax.random.split(key, 32)
    it = iter(ks)

    def w(shape, fan_in):
        return (jax.random.normal(next(it), shape, jnp.float32)
                / math.sqrt(fan_in)).astype(jnp.float32)

    p = {}
    for prefix in ("sa", "ca"):
        for name in ("wq", "wk", "wv", "wo"):
            p[f"{prefix}_{name}"] = w((D, D), D)
            p[f"{prefix}_{name.replace('w', 'b')}"] = w((1, D), D)
    p["ff_w1"] = w((D, DFF), D)
    p["ff_b1"] = w((1, DFF), D)
    p["ff_w2"] = w((DFF, D), DFF)
    p["ff_b2"] = w((1, D), DFF)
    for n in ("n1", "n2", "n3"):
        p[f"{n}_g"] = jnp.ones((1, D), jnp.float32)
        p[f"{n}_b"] = jnp.zeros((1, D), jnp.float32)
    return p


if __name__ == "__main__":
    key = jax.random.PRNGKey(0)
    kx, kmem, kp = jax.random.split(key, 3)

    x = jax.random.normal(kx, (B, T, D), jnp.float32)
    memory = jax.random.normal(kmem, (B, S, D), jnp.float32)

    # causal self-attention mask (B, T, T), 1.0 = attend, 0.0 = masked
    causal = jnp.tril(jnp.ones((T, T), jnp.float32))
    mask = jnp.broadcast_to(causal, (B, T, T))

    # memory mask (B, 1, S): batch 1 has the last 4 source frames padded
    mmask = jnp.ones((B, 1, S), jnp.float32)
    mmask = mmask.at[1, 0, S - 4:].set(0.0)

    params = _make_params(kp)
    packed = jax.tree_util.tree_map(jax.block_until_ready, pack_params(params))  # once

    y, out_mask = onnx_decoder_layer(x, mask, memory, mmask, packed)
    y = jax.block_until_ready(y)

    y_ref = reference(x, mask, memory, mmask, params)
    assert jnp.allclose(y, y_ref, rtol=2e-4, atol=2e-4), (
        f"max abs diff {jnp.max(jnp.abs(y - y_ref))}")

    print("KERNEL_OK")
</pallas_src>

<mosaic_0001>
module attributes {stable_mosaic.version = 11 : i64} {
  func.func @decoder_layer_kernel(%arg0: memref<16x32xf32, #tpu.memory_space<vmem>>, %arg1: memref<16x16xf32, #tpu.memory_space<vmem>>, %arg2: memref<32x32xf32, #tpu.memory_space<vmem>>, %arg3: memref<16x32xf32, #tpu.memory_space<vmem>>, %arg4: memref<32x768xf32, #tpu.memory_space<vmem>>, %arg5: memref<4x8x32xf32, #tpu.memory_space<vmem>>, %arg6: memref<4x8x32xf32, #tpu.memory_space<vmem>>, %arg7: memref<96x128xf32, #tpu.memory_space<vmem>>, %arg8: memref<16x384xf32, #tpu.memory_space<vmem>>, %arg9: memref<16x32xf32, #tpu.memory_space<vmem>>) attributes {dimension_semantics = [], scalar_prefetch = 0 : i64, scratch_operands = 0 : i64, tpu.core_type = #tpu.core_type<tc>} {
    %c0 = arith.constant 0 : index
    %c0_0 = arith.constant 0 : index
    %0 = vector.load %arg4[%c0, %c0_0] : memref<32x768xf32, #tpu.memory_space<vmem>>, vector<32x768xf32>
    %c0_1 = arith.constant 0 : index
    %c0_2 = arith.constant 0 : index
    %1 = vector.load %arg7[%c0_1, %c0_2] : memref<96x128xf32, #tpu.memory_space<vmem>>, vector<96x128xf32>
    %c0_3 = arith.constant 0 : index
    %c0_4 = arith.constant 0 : index
    %2 = vector.load %arg8[%c0_3, %c0_4] : memref<16x384xf32, #tpu.memory_space<vmem>>, vector<16x384xf32>
    %3 = vector.extract_strided_slice %2 {offsets = [0, 0], sizes = [1, 384], strides = [1, 1]} : vector<16x384xf32> to vector<1x384xf32>
    %4 = vector.extract_strided_slice %2 {offsets = [1, 0], sizes = [1, 32], strides = [1, 1]} : vector<16x384xf32> to vector<1x32xf32>
    %5 = vector.extract_strided_slice %2 {offsets = [2, 0], sizes = [1, 256], strides = [1, 1]} : vector<16x384xf32> to vector<1x256xf32>
    %6 = vector.extract_strided_slice %2 {offsets = [3, 0], sizes = [1, 32], strides = [1, 1]} : vector<16x384xf32> to vector<1x32xf32>
    %7 = vector.extract_strided_slice %2 {offsets = [4, 0], sizes = [1, 32], strides = [1, 1]} : vector<16x384xf32> to vector<1x32xf32>
    %8 = vector.extract_strided_slice %2 {offsets = [5, 0], sizes = [1, 64], strides = [1, 1]} : vector<16x384xf32> to vector<1x64xf32>
    %9 = vector.extract_strided_slice %2 {offsets = [6, 0], sizes = [1, 32], strides = [1, 1]} : vector<16x384xf32> to vector<1x32xf32>
    %10 = vector.extract_strided_slice %2 {offsets = [7, 0], sizes = [1, 32], strides = [1, 1]} : vector<16x384xf32> to vector<1x32xf32>
    %11 = vector.extract_strided_slice %2 {offsets = [8, 0], sizes = [1, 32], strides = [1, 1]} : vector<16x384xf32> to vector<1x32xf32>
    %12 = vector.extract_strided_slice %2 {offsets = [9, 0], sizes = [1, 32], strides = [1, 1]} : vector<16x384xf32> to vector<1x32xf32>
    %13 = vector.extract_strided_slice %2 {offsets = [10, 0], sizes = [1, 32], strides = [1, 1]} : vector<16x384xf32> to vector<1x32xf32>
    %14 = vector.extract_strided_slice %2 {offsets = [11, 0], sizes = [1, 32], strides = [1, 1]} : vector<16x384xf32> to vector<1x32xf32>
    %15 = vector.extract_strided_slice %2 {offsets = [12, 0], sizes = [1, 32], strides = [1, 1]} : vector<16x384xf32> to vector<1x32xf32>
    %c0_5 = arith.constant 0 : index
    %c0_6 = arith.constant 0 : index
    %16 = vector.load %arg0[%c0_5, %c0_6] : memref<16x32xf32, #tpu.memory_space<vmem>>, vector<16x32xf32>
    %c0_7 = arith.constant 0 : index
    %c0_8 = arith.constant 0 : index
    %17 = vector.load %arg2[%c0_7, %c0_8] : memref<32x32xf32, #tpu.memory_space<vmem>>, vector<32x32xf32>
    %cst = arith.constant dense<0.000000e+00> : vector<16xf32>
    %18 = vector.multi_reduction <add>, %16, %cst [1] : vector<16x32xf32> to vector<16xf32>
    %19 = vector.shape_cast %18 : vector<16xf32> to vector<16x1xf32>
    %cst_9 = arith.constant 3.200000e+01 : f32
    %20 = vector.broadcast %cst_9 : f32 to vector<16x1xf32>
    %21 = arith.divf %19, %20 : vector<16x1xf32>
    %22 = vector.broadcast %21 : vector<16x1xf32> to vector<16x32xf32>
    %23 = arith.subf %16, %22 : vector<16x32xf32>
    %24 = vector.broadcast %21 : vector<16x1xf32> to vector<16x32xf32>
    %25 = arith.subf %16, %24 : vector<16x32xf32>
    %26 = arith.mulf %23, %25 : vector<16x32xf32>
    %cst_10 = arith.constant dense<0.000000e+00> : vector<16xf32>
    %27 = vector.multi_reduction <add>, %26, %cst_10 [1] : vector<16x32xf32> to vector<16xf32>
    %28 = vector.shape_cast %27 : vector<16xf32> to vector<16x1xf32>
    %cst_11 = arith.constant 3.200000e+01 : f32
    %29 = vector.broadcast %cst_11 : f32 to vector<16x1xf32>
    %30 = arith.divf %28, %29 : vector<16x1xf32>
    %31 = vector.broadcast %21 : vector<16x1xf32> to vector<16x32xf32>
    %32 = arith.subf %16, %31 : vector<16x32xf32>
    %cst_12 = arith.constant 9.99999996E-13 : f32
    %33 = vector.broadcast %cst_12 : f32 to vector<16x1xf32>
    %34 = arith.addf %30, %33 : vector<16x1xf32>
    %35 = math.rsqrt %34 : vector<16x1xf32>
    %36 = vector.broadcast %35 : vector<16x1xf32> to vector<16x32xf32>
    %37 = arith.mulf %32, %36 : vector<16x32xf32>
    %38 = vector.broadcast %10 : vector<1x32xf32> to vector<16x32xf32>
    %39 = arith.mulf %37, %38 : vector<16x32xf32>
    %40 = vector.broadcast %11 : vector<1x32xf32> to vector<16x32xf32>
    %41 = arith.addf %39, %40 : vector<16x32xf32>
    %42 = vector.extract_strided_slice %0 {offsets = [0, 0], sizes = [32, 384], strides = [1, 1]} : vector<32x768xf32> to vector<32x384xf32>
    %cst_13 = arith.constant dense<0.000000e+00> : vector<16x384xf32>
    %43 = tpu.matmul %41, %42, %cst_13 {dimension_numbers = #tpu.dot_dimension_numbers<[1], [0], [0], [1], [0, 0, 1, 1], [], []>} : vector<16x32xf32>, vector<32x384xf32>, vector<16x384xf32> -> vector<16x384xf32>
    %44 = vector.broadcast %3 : vector<1x384xf32> to vector<16x384xf32>
    %45 = arith.addf %43, %44 : vector<16x384xf32>
    %46 = vector.extract_strided_slice %45 {offsets = [0, 0], sizes = [16, 8], strides = [1, 1]} : vector<16x384xf32> to vector<16x8xf32>
    %47 = vector.extract_strided_slice %45 {offsets = [0, 8], sizes = [16, 8], strides = [1, 1]} : vector<16x384xf32> to vector<16x8xf32>
    %48 = vector.extract_strided_slice %45 {offsets = [0, 16], sizes = [16, 8], strides = [1, 1]} : vector<16x384xf32> to vector<16x8xf32>
    %49 = vector.extract_strided_slice %45 {offsets = [0, 24], sizes = [16, 8], strides = [1, 1]} : vector<16x384xf32> to vector<16x8xf32>
    %50 = vector.shape_cast %46 : vector<16x8xf32> to vector<1x16x8xf32>
    %51 = vector.shape_cast %47 : vector<16x8xf32> to vector<1x16x8xf32>
    %52 = vector.shape_cast %48 : vector<16x8xf32> to vector<1x16x8xf32>
    %53 = vector.shape_cast %49 : vector<16x8xf32> to vector<1x16x8xf32>
    %54 = tpu.concatenate %50, %51, %52, %53 in 0 : vector<1x16x8xf32>, vector<1x16x8xf32>, vector<1x16x8xf32>, vector<1x16x8xf32> -> vector<4x16x8xf32>
    %55 = vector.extract_strided_slice %45 {offsets = [0, 128], sizes = [16, 8], strides = [1, 1]} : vector<16x384xf32> to vector<16x8xf32>
    %56 = vector.extract_strided_slice %45 {offsets = [0, 136], sizes = [16, 8], strides = [1, 1]} : vector<16x384xf32> to vector<16x8xf32>
    %57 = vector.extract_strided_slice %45 {offsets = [0, 144], sizes = [16, 8], strides = [1, 1]} : vector<16x384xf32> to vector<16x8xf32>
    %58 = vector.extract_strided_slice %45 {offsets = [0, 152], sizes = [16, 8], strides = [1, 1]} : vector<16x384xf32> to vector<16x8xf32>
    %59 = vector.shape_cast %55 : vector<16x8xf32> to vector<1x16x8xf32>
    %60 = vector.shape_cast %56 : vector<16x8xf32> to vector<1x16x8xf32>
    %61 = vector.shape_cast %57 : vector<16x8xf32> to vector<1x16x8xf32>
    %62 = vector.shape_cast %58 : vector<16x8xf32> to vector<1x16x8xf32>
    %63 = tpu.concatenate %59, %60, %61, %62 in 0 : vector<1x16x8xf32>, vector<1x16x8xf32>, vector<1x16x8xf32>, vector<1x16x8xf32> -> vector<4x16x8xf32>
    %64 = vector.extract_strided_slice %45 {offsets = [0, 256], sizes = [16, 8], strides = [1, 1]} : vector<16x384xf32> to vector<16x8xf32>
    %65 = vector.extract_strided_slice %45 {offsets = [0, 264], sizes = [16, 8], strides = [1, 1]} : vector<16x384xf32> to vector<16x8xf32>
    %66 = vector.extract_strided_slice %45 {offsets = [0, 272], sizes = [16, 8], strides = [1, 1]} : vector<16x384xf32> to vector<16x8xf32>
    %67 = vector.extract_strided_slice %45 {offsets = [0, 280], sizes = [16, 8], strides = [1, 1]} : vector<16x384xf32> to vector<16x8xf32>
    %68 = vector.shape_cast %64 : vector<16x8xf32> to vector<1x16x8xf32>
    %69 = vector.shape_cast %65 : vector<16x8xf32> to vector<1x16x8xf32>
    %70 = vector.shape_cast %66 : vector<16x8xf32> to vector<1x16x8xf32>
    %71 = vector.shape_cast %67 : vector<16x8xf32> to vector<1x16x8xf32>
    %72 = tpu.concatenate %68, %69, %70, %71 in 0 : vector<1x16x8xf32>, vector<1x16x8xf32>, vector<1x16x8xf32>, vector<1x16x8xf32> -> vector<4x16x8xf32>
    %c0_14 = arith.constant 0 : index
    %c0_15 = arith.constant 0 : index
    %73 = vector.load %arg1[%c0_14, %c0_15] : memref<16x16xf32, #tpu.memory_space<vmem>>, vector<16x16xf32>
    %74 = vector.shape_cast %73 : vector<16x16xf32> to vector<16x16xf32>
    %c0_16 = arith.constant 0 : index
    %c0_17 = arith.constant 0 : index
    %c0_18 = arith.constant 0 : index
    %75 = vector.load %arg5[%c0_16, %c0_17, %c0_18] : memref<4x8x32xf32, #tpu.memory_space<vmem>>, vector<4x8x32xf32>
    "tpu.trace_start"() <{level = 10 : i32, message = "hqd,hkd->hqk"}> : () -> ()
    %cst_19 = arith.constant dense<0.000000e+00> : vector<4x16x16xf32>
    %76 = tpu.matmul %54, %63, %cst_19 {dimension_numbers = #tpu.dot_dimension_numbers<[2], [2], [1], [1], [0, 0, 0, 1, 1, 1], [0], [0]>} : vector<4x16x8xf32>, vector<4x16x8xf32>, vector<4x16x16xf32> -> vector<4x16x16xf32>
    "tpu.trace_stop"() : () -> ()
    %77 = vector.shape_cast %74 : vector<16x16xf32> to vector<1x16x16xf32>
    %78 = vector.broadcast %77 : vector<1x16x16xf32> to vector<4x16x16xf32>
    %79 = arith.addf %76, %78 : vector<4x16x16xf32>
    %cst_20 = arith.constant dense<0xFF800000> : vector<4x16xf32>
    %80 = vector.multi_reduction <maximumf>, %79, %cst_20 [2] : vector<4x16x16xf32> to vector<4x16xf32>
    %81 = vector.shape_cast %80 : vector<4x16xf32> to vector<4x16x1xf32>
    %82 = vector.broadcast %81 : vector<4x16x1xf32> to vector<4x16x16xf32>
    %83 = arith.subf %79, %82 : vector<4x16x16xf32>
    %84 = math.exp %83 : vector<4x16x16xf32>
    "tpu.trace_start"() <{level = 10 : i32, message = "hqk,hkd->hqd"}> : () -> ()
    %cst_21 = arith.constant dense<0.000000e+00> : vector<4x16x8xf32>
    %85 = tpu.matmul %84, %72, %cst_21 {dimension_numbers = #tpu.dot_dimension_numbers<[2], [1], [1], [2], [0, 0, 0, 1, 1, 2], [0], [0]>} : vector<4x16x16xf32>, vector<4x16x8xf32>, vector<4x16x8xf32> -> vector<4x16x8xf32>
    "tpu.trace_stop"() : () -> ()
    %cst_22 = arith.constant dense<0.000000e+00> : vector<4x16xf32>
    %86 = vector.multi_reduction <add>, %84, %cst_22 [2] : vector<4x16x16xf32> to vector<4x16xf32>
    %87 = vector.shape_cast %86 : vector<4x16xf32> to vector<4x16x1xf32>
    %cst_23 = arith.constant 1.000000e+00 : f32
    %88 = vector.broadcast %cst_23 : f32 to vector<4x16x1xf32>
    %89 = arith.divf %88, %87 : vector<4x16x1xf32>
    %90 = vector.broadcast %89 : vector<4x16x1xf32> to vector<4x16x8xf32>
    %91 = arith.mulf %85, %90 : vector<4x16x8xf32>
    "tpu.trace_start"() <{level = 10 : i32, message = "hqd,hdo->hqo"}> : () -> ()
    %cst_24 = arith.constant dense<0.000000e+00> : vector<4x16x32xf32>
    %92 = tpu.matmul %91, %75, %cst_24 {dimension_numbers = #tpu.dot_dimension_numbers<[2], [1], [1], [2], [0, 0, 0, 1, 1, 2], [0], [0]>} : vector<4x16x8xf32>, vector<4x8x32xf32>, vector<4x16x32xf32> -> vector<4x16x32xf32>
    "tpu.trace_stop"() : () -> ()
    %93 = vector.extract_strided_slice %92 {offsets = [0, 0, 0], sizes = [1, 16, 32], strides = [1, 1, 1]} : vector<4x16x32xf32> to vector<1x16x32xf32>
    %94 = vector.shape_cast %93 : vector<1x16x32xf32> to vector<16x32xf32>
    %95 = vector.extract_strided_slice %92 {offsets = [1, 0, 0], sizes = [1, 16, 32], strides = [1, 1, 1]} : vector<4x16x32xf32> to vector<1x16x32xf32>
    %96 = vector.shape_cast %95 : vector<1x16x32xf32> to vector<16x32xf32>
    %97 = arith.addf %94, %96 : vector<16x32xf32>
    %98 = vector.extract_strided_slice %92 {offsets = [2, 0, 0], sizes = [1, 16, 32], strides = [1, 1, 1]} : vector<4x16x32xf32> to vector<1x16x32xf32>
    %99 = vector.shape_cast %98 : vector<1x16x32xf32> to vector<16x32xf32>
    %100 = arith.addf %97, %99 : vector<16x32xf32>
    %101 = vector.extract_strided_slice %92 {offsets = [3, 0, 0], sizes = [1, 16, 32], strides = [1, 1, 1]} : vector<4x16x32xf32> to vector<1x16x32xf32>
    %102 = vector.shape_cast %101 : vector<1x16x32xf32> to vector<16x32xf32>
    %103 = arith.addf %100, %102 : vector<16x32xf32>
    %104 = vector.broadcast %6 : vector<1x32xf32> to vector<16x32xf32>
    %105 = arith.addf %103, %104 : vector<16x32xf32>
    %106 = arith.addf %105, %16 : vector<16x32xf32>
    %cst_25 = arith.constant dense<0.000000e+00> : vector<16xf32>
    %107 = vector.multi_reduction <add>, %106, %cst_25 [1] : vector<16x32xf32> to vector<16xf32>
    %108 = vector.shape_cast %107 : vector<16xf32> to vector<16x1xf32>
    %cst_26 = arith.constant 3.200000e+01 : f32
    %109 = vector.broadcast %cst_26 : f32 to vector<16x1xf32>
    %110 = arith.divf %108, %109 : vector<16x1xf32>
    %111 = vector.broadcast %110 : vector<16x1xf32> to vector<16x32xf32>
    %112 = arith.subf %106, %111 : vector<16x32xf32>
    %113 = vector.broadcast %110 : vector<16x1xf32> to vector<16x32xf32>
    %114 = arith.subf %106, %113 : vector<16x32xf32>
    %115 = arith.mulf %112, %114 : vector<16x32xf32>
    %cst_27 = arith.constant dense<0.000000e+00> : vector<16xf32>
    %116 = vector.multi_reduction <add>, %115, %cst_27 [1] : vector<16x32xf32> to vector<16xf32>
    %117 = vector.shape_cast %116 : vector<16xf32> to vector<16x1xf32>
    %cst_28 = arith.constant 3.200000e+01 : f32
    %118 = vector.broadcast %cst_28 : f32 to vector<16x1xf32>
    %119 = arith.divf %117, %118 : vector<16x1xf32>
    %120 = vector.broadcast %110 : vector<16x1xf32> to vector<16x32xf32>
    %121 = arith.subf %106, %120 : vector<16x32xf32>
    %cst_29 = arith.constant 9.99999996E-13 : f32
    %122 = vector.broadcast %cst_29 : f32 to vector<16x1xf32>
    %123 = arith.addf %119, %122 : vector<16x1xf32>
    %124 = math.rsqrt %123 : vector<16x1xf32>
    %125 = vector.broadcast %124 : vector<16x1xf32> to vector<16x32xf32>
    %126 = arith.mulf %121, %125 : vector<16x32xf32>
    %127 = vector.broadcast %12 : vector<1x32xf32> to vector<16x32xf32>
    %128 = arith.mulf %126, %127 : vector<16x32xf32>
    %129 = vector.broadcast %13 : vector<1x32xf32> to vector<16x32xf32>
    %130 = arith.addf %128, %129 : vector<16x32xf32>
    %131 = vector.extract_strided_slice %0 {offsets = [0, 384], sizes = [32, 32], strides = [1, 1]} : vector<32x768xf32> to vector<32x32xf32>
    %cst_30 = arith.constant dense<0.000000e+00> : vector<16x32xf32>
    %132 = tpu.matmul %130, %131, %cst_30 {dimension_numbers = #tpu.dot_dimension_numbers<[1], [0], [0], [1], [0, 0, 1, 1], [], []>} : vector<16x32xf32>, vector<32x32xf32>, vector<16x32xf32> -> vector<16x32xf32>
    %133 = vector.broadcast %4 : vector<1x32xf32> to vector<16x32xf32>
    %134 = arith.addf %132, %133 : vector<16x32xf32>
    %135 = vector.extract_strided_slice %0 {offsets = [0, 512], sizes = [32, 256], strides = [1, 1]} : vector<32x768xf32> to vector<32x256xf32>
    %cst_31 = arith.constant dense<0.000000e+00> : vector<32x256xf32>
    %136 = tpu.matmul %17, %135, %cst_31 {dimension_numbers = #tpu.dot_dimension_numbers<[1], [0], [0], [1], [0, 0, 1, 1], [], []>} : vector<32x32xf32>, vector<32x256xf32>, vector<32x256xf32> -> vector<32x256xf32>
    %137 = vector.broadcast %5 : vector<1x256xf32> to vector<32x256xf32>
    %138 = arith.addf %136, %137 : vector<32x256xf32>
    %139 = vector.extract_strided_slice %134 {offsets = [0, 0], sizes = [16, 8], strides = [1, 1]} : vector<16x32xf32> to vector<16x8xf32>
    %140 = vector.extract_strided_slice %134 {offsets = [0, 8], sizes = [16, 8], strides = [1, 1]} : vector<16x32xf32> to vector<16x8xf32>
    %141 = vector.extract_strided_slice %134 {offsets = [0, 16], sizes = [16, 8], strides = [1, 1]} : vector<16x32xf32> to vector<16x8xf32>
    %142 = vector.extract_strided_slice %134 {offsets = [0, 24], sizes = [16, 8], strides = [1, 1]} : vector<16x32xf32> to vector<16x8xf32>
    %143 = vector.shape_cast %139 : vector<16x8xf32> to vector<1x16x8xf32>
    %144 = vector.shape_cast %140 : vector<16x8xf32> to vector<1x16x8xf32>
    %145 = vector.shape_cast %141 : vector<16x8xf32> to vector<1x16x8xf32>
    %146 = vector.shape_cast %142 : vector<16x8xf32> to vector<1x16x8xf32>
    %147 = tpu.concatenate %143, %144, %145, %146 in 0 : vector<1x16x8xf32>, vector<1x16x8xf32>, vector<1x16x8xf32>, vector<1x16x8xf32> -> vector<4x16x8xf32>
    %148 = vector.extract_strided_slice %138 {offsets = [0, 0], sizes = [32, 8], strides = [1, 1]} : vector<32x256xf32> to vector<32x8xf32>
    %149 = vector.extract_strided_slice %138 {offsets = [0, 8], sizes = [32, 8], strides = [1, 1]} : vector<32x256xf32> to vector<32x8xf32>
    %150 = vector.extract_strided_slice %138 {offsets = [0, 16], sizes = [32, 8], strides = [1, 1]} : vector<32x256xf32> to vector<32x8xf32>
    %151 = vector.extract_strided_slice %138 {offsets = [0, 24], sizes = [32, 8], strides = [1, 1]} : vector<32x256xf32> to vector<32x8xf32>
    %152 = vector.shape_cast %148 : vector<32x8xf32> to vector<1x32x8xf32>
    %153 = vector.shape_cast %149 : vector<32x8xf32> to vector<1x32x8xf32>
    %154 = vector.shape_cast %150 : vector<32x8xf32> to vector<1x32x8xf32>
    %155 = vector.shape_cast %151 : vector<32x8xf32> to vector<1x32x8xf32>
    %156 = tpu.concatenate %152, %153, %154, %155 in 0 : vector<1x32x8xf32>, vector<1x32x8xf32>, vector<1x32x8xf32>, vector<1x32x8xf32> -> vector<4x32x8xf32>
    %157 = vector.extract_strided_slice %138 {offsets = [0, 128], sizes = [32, 8], strides = [1, 1]} : vector<32x256xf32> to vector<32x8xf32>
    %158 = vector.extract_strided_slice %138 {offsets = [0, 136], sizes = [32, 8], strides = [1, 1]} : vector<32x256xf32> to vector<32x8xf32>
    %159 = vector.extract_strided_slice %138 {offsets = [0, 144], sizes = [32, 8], strides = [1, 1]} : vector<32x256xf32> to vector<32x8xf32>
    %160 = vector.extract_strided_slice %138 {offsets = [0, 152], sizes = [32, 8], strides = [1, 1]} : vector<32x256xf32> to vector<32x8xf32>
    %161 = vector.shape_cast %157 : vector<32x8xf32> to vector<1x32x8xf32>
    %162 = vector.shape_cast %158 : vector<32x8xf32> to vector<1x32x8xf32>
    %163 = vector.shape_cast %159 : vector<32x8xf32> to vector<1x32x8xf32>
    %164 = vector.shape_cast %160 : vector<32x8xf32> to vector<1x32x8xf32>
    %165 = tpu.concatenate %161, %162, %163, %164 in 0 : vector<1x32x8xf32>, vector<1x32x8xf32>, vector<1x32x8xf32>, vector<1x32x8xf32> -> vector<4x32x8xf32>
    %c0_32 = arith.constant 0 : index
    %c0_33 = arith.constant 0 : index
    %166 = vector.load %arg3[%c0_32, %c0_33] : memref<16x32xf32, #tpu.memory_space<vmem>>, vector<16x32xf32>
    %167 = vector.shape_cast %166 : vector<16x32xf32> to vector<16x32xf32>
    %c0_34 = arith.constant 0 : index
    %c0_35 = arith.constant 0 : index
    %c0_36 = arith.constant 0 : index
    %168 = vector.load %arg6[%c0_34, %c0_35, %c0_36] : memref<4x8x32xf32, #tpu.memory_space<vmem>>, vector<4x8x32xf32>
    "tpu.trace_start"() <{level = 10 : i32, message = "hqd,hkd->hqk"}> : () -> ()
    %cst_37 = arith.constant dense<0.000000e+00> : vector<4x16x32xf32>
    %169 = tpu.matmul %147, %156, %cst_37 {dimension_numbers = #tpu.dot_dimension_numbers<[2], [2], [1], [1], [0, 0, 0, 1, 1, 1], [0], [0]>} : vector<4x16x8xf32>, vector<4x32x8xf32>, vector<4x16x32xf32> -> vector<4x16x32xf32>
    "tpu.trace_stop"() : () -> ()
    %170 = vector.shape_cast %167 : vector<16x32xf32> to vector<1x16x32xf32>
    %171 = vector.broadcast %170 : vector<1x16x32xf32> to vector<4x16x32xf32>
    %172 = arith.addf %169, %171 : vector<4x16x32xf32>
    %cst_38 = arith.constant dense<0xFF800000> : vector<4x16xf32>
    %173 = vector.multi_reduction <maximumf>, %172, %cst_38 [2] : vector<4x16x32xf32> to vector<4x16xf32>
    %174 = vector.shape_cast %173 : vector<4x16xf32> to vector<4x16x1xf32>
    %175 = vector.broadcast %174 : vector<4x16x1xf32> to vector<4x16x32xf32>
    %176 = arith.subf %172, %175 : vector<4x16x32xf32>
    %177 = math.exp %176 : vector<4x16x32xf32>
    "tpu.trace_start"() <{level = 10 : i32, message = "hqk,hkd->hqd"}> : () -> ()
    %cst_39 = arith.constant dense<0.000000e+00> : vector<4x16x8xf32>
    %178 = tpu.matmul %177, %165, %cst_39 {dimension_numbers = #tpu.dot_dimension_numbers<[2], [1], [1], [2], [0, 0, 0, 1, 1, 2], [0], [0]>} : vector<4x16x32xf32>, vector<4x32x8xf32>, vector<4x16x8xf32> -> vector<4x16x8xf32>
    "tpu.trace_stop"() : () -> ()
    %cst_40 = arith.constant dense<0.000000e+00> : vector<4x16xf32>
    %179 = vector.multi_reduction <add>, %177, %cst_40 [2] : vector<4x16x32xf32> to vector<4x16xf32>
    %180 = vector.shape_cast %179 : vector<4x16xf32> to vector<4x16x1xf32>
    %cst_41 = arith.constant 1.000000e+00 : f32
    %181 = vector.broadcast %cst_41 : f32 to vector<4x16x1xf32>
    %182 = arith.divf %181, %180 : vector<4x16x1xf32>
    %183 = vector.broadcast %182 : vector<4x16x1xf32> to vector<4x16x8xf32>
    %184 = arith.mulf %178, %183 : vector<4x16x8xf32>
    "tpu.trace_start"() <{level = 10 : i32, message = "hqd,hdo->hqo"}> : () -> ()
    %cst_42 = arith.constant dense<0.000000e+00> : vector<4x16x32xf32>
    %185 = tpu.matmul %184, %168, %cst_42 {dimension_numbers = #tpu.dot_dimension_numbers<[2], [1], [1], [2], [0, 0, 0, 1, 1, 2], [0], [0]>} : vector<4x16x8xf32>, vector<4x8x32xf32>, vector<4x16x32xf32> -> vector<4x16x32xf32>
    "tpu.trace_stop"() : () -> ()
    %186 = vector.extract_strided_slice %185 {offsets = [0, 0, 0], sizes = [1, 16, 32], strides = [1, 1, 1]} : vector<4x16x32xf32> to vector<1x16x32xf32>
    %187 = vector.shape_cast %186 : vector<1x16x32xf32> to vector<16x32xf32>
    %188 = vector.extract_strided_slice %185 {offsets = [1, 0, 0], sizes = [1, 16, 32], strides = [1, 1, 1]} : vector<4x16x32xf32> to vector<1x16x32xf32>
    %189 = vector.shape_cast %188 : vector<1x16x32xf32> to vector<16x32xf32>
    %190 = arith.addf %187, %189 : vector<16x32xf32>
    %191 = vector.extract_strided_slice %185 {offsets = [2, 0, 0], sizes = [1, 16, 32], strides = [1, 1, 1]} : vector<4x16x32xf32> to vector<1x16x32xf32>
    %192 = vector.shape_cast %191 : vector<1x16x32xf32> to vector<16x32xf32>
    %193 = arith.addf %190, %192 : vector<16x32xf32>
    %194 = vector.extract_strided_slice %185 {offsets = [3, 0, 0], sizes = [1, 16, 32], strides = [1, 1, 1]} : vector<4x16x32xf32> to vector<1x16x32xf32>
    %195 = vector.shape_cast %194 : vector<1x16x32xf32> to vector<16x32xf32>
    %196 = arith.addf %193, %195 : vector<16x32xf32>
    %197 = vector.broadcast %7 : vector<1x32xf32> to vector<16x32xf32>
    %198 = arith.addf %196, %197 : vector<16x32xf32>
    %199 = arith.addf %198, %106 : vector<16x32xf32>
    %cst_43 = arith.constant dense<0.000000e+00> : vector<16xf32>
    %200 = vector.multi_reduction <add>, %199, %cst_43 [1] : vector<16x32xf32> to vector<16xf32>
    %201 = vector.shape_cast %200 : vector<16xf32> to vector<16x1xf32>
    %cst_44 = arith.constant 3.200000e+01 : f32
    %202 = vector.broadcast %cst_44 : f32 to vector<16x1xf32>
    %203 = arith.divf %201, %202 : vector<16x1xf32>
    %204 = vector.broadcast %203 : vector<16x1xf32> to vector<16x32xf32>
    %205 = arith.subf %199, %204 : vector<16x32xf32>
    %206 = vector.broadcast %203 : vector<16x1xf32> to vector<16x32xf32>
    %207 = arith.subf %199, %206 : vector<16x32xf32>
    %208 = arith.mulf %205, %207 : vector<16x32xf32>
    %cst_45 = arith.constant dense<0.000000e+00> : vector<16xf32>
    %209 = vector.multi_reduction <add>, %208, %cst_45 [1] : vector<16x32xf32> to vector<16xf32>
    %210 = vector.shape_cast %209 : vector<16xf32> to vector<16x1xf32>
    %cst_46 = arith.constant 3.200000e+01 : f32
    %211 = vector.broadcast %cst_46 : f32 to vector<16x1xf32>
    %212 = arith.divf %210, %211 : vector<16x1xf32>
    %213 = vector.broadcast %203 : vector<16x1xf32> to vector<16x32xf32>
    %214 = arith.subf %199, %213 : vector<16x32xf32>
    %cst_47 = arith.constant 9.99999996E-13 : f32
    %215 = vector.broadcast %cst_47 : f32 to vector<16x1xf32>
    %216 = arith.addf %212, %215 : vector<16x1xf32>
    %217 = math.rsqrt %216 : vector<16x1xf32>
    %218 = vector.broadcast %217 : vector<16x1xf32> to vector<16x32xf32>
    %219 = arith.mulf %214, %218 : vector<16x32xf32>
    %220 = vector.broadcast %14 : vector<1x32xf32> to vector<16x32xf32>
    %221 = arith.mulf %219, %220 : vector<16x32xf32>
    %222 = vector.broadcast %15 : vector<1x32xf32> to vector<16x32xf32>
    %223 = arith.addf %221, %222 : vector<16x32xf32>
    %224 = vector.extract_strided_slice %1 {offsets = [0, 0], sizes = [32, 64], strides = [1, 1]} : vector<96x128xf32> to vector<32x64xf32>
    %cst_48 = arith.constant dense<0.000000e+00> : vector<16x64xf32>
    %225 = tpu.matmul %223, %224, %cst_48 {dimension_numbers = #tpu.dot_dimension_numbers<[1], [0], [0], [1], [0, 0, 1, 1], [], []>} : vector<16x32xf32>, vector<32x64xf32>, vector<16x64xf32> -> vector<16x64xf32>
    %226 = vector.broadcast %8 : vector<1x64xf32> to vector<16x64xf32>
    %227 = arith.addf %225, %226 : vector<16x64xf32>
    %cst_49 = arith.constant 0.000000e+00 : f32
    %228 = vector.broadcast %cst_49 : f32 to vector<16x64xf32>
    %229 = arith.maximumf %227, %228 : vector<16x64xf32>
    %230 = vector.extract_strided_slice %1 {offsets = [32, 0], sizes = [64, 32], strides = [1, 1]} : vector<96x128xf32> to vector<64x32xf32>
    %cst_50 = arith.constant dense<0.000000e+00> : vector<16x32xf32>
    %231 = tpu.matmul %229, %230, %cst_50 {dimension_numbers = #tpu.dot_dimension_numbers<[1], [0], [0], [1], [0, 0, 1, 1], [], []>} : vector<16x64xf32>, vector<64x32xf32>, vector<16x32xf32> -> vector<16x32xf32>
    %232 = vector.broadcast %9 : vector<1x32xf32> to vector<16x32xf32>
    %233 = arith.addf %231, %232 : vector<16x32xf32>
    %234 = arith.addf %233, %199 : vector<16x32xf32>
    %c0_51 = arith.constant 0 : index
    %c0_52 = arith.constant 0 : index
    %235 = vector.load %arg9[%c0_51, %c0_52] : memref<16x32xf32, #tpu.memory_space<vmem>>, vector<16x32xf32>
    tpu.vector_store %arg9[%c0_51, %c0_52], %234 {strides = array<i32>} : memref<16x32xf32, #tpu.memory_space<vmem>>, vector<16x32xf32>,
    return
  }
}

</mosaic_0001>

<llo_original>
// kernel: onnx_decoder_layer.1
$region0: #{onnx_decoder_layer.1}
  #allocation0 [shape = 'u32[]', space=smem, size = 0x4, offset = 0x4, fixed_abs, tag = 'smem constant byte address 0x4 - core index']
  #allocation1 [shape = 'u32[144,128]{1,0:T(1,128)}', space=vmem, size = 0x12000, scoped, tag = 'internal scratch']
  %s0 = inlined_call_operand.hbm [shape: f32[16,32], index: 0, kind: input, shape index: {}]
  %s1 = inlined_call_operand.vmem [shape: f32[16,16], index: 1, kind: input, shape index: {}]
  %s2 = inlined_call_operand.hbm [shape: f32[32,32], index: 2, kind: input, shape index: {}]
  %s3 = inlined_call_operand.vmem [shape: f32[16,32], index: 3, kind: input, shape index: {}]
  %s4 = inlined_call_operand.vmem [shape: f32[32,768], index: 4, kind: input, shape index: {}]
  %s5 = inlined_call_operand.hbm [shape: f32[4,8,32], index: 5, kind: input, shape index: {}]
  %s6 = inlined_call_operand.hbm [shape: f32[4,8,32], index: 6, kind: input, shape index: {}]
  %s7 = inlined_call_operand.hbm [shape: f32[96,128], index: 7, kind: input, shape index: {}]
  %s8 = inlined_call_operand.vmem [shape: f32[16,384], index: 8, kind: input, shape index: {}]
  %s9 = inlined_call_operand.hbm [shape: f32[16,32], index: 9, kind: output, shape index: {}]
  %s10 = sld [smem:[#allocation0]]
  $region66: #{onnx_decoder_layer.1} parent=0
    _
  %s12 = ssub.s32 1, %s10
  %s13 = scalar_select 0, %s12, %s10
  $region1: #{onnx_decoder_layer.1} parent=0
    #allocation2 [shape = 'u8[8192]{0}', space=vmem, size = 0x2000, scoped, tag = 'input window, operand 0, single buffered']
    #allocation3 [shape = 's32[1]{0}', space=sflag, size = 0x4, scoped, tag = 'scoped memory for onnx_decoder_layer.1']
    #allocation4 [shape = 's32[1]{0}', space=sflag, size = 0x4, scoped, tag = 'scoped memory for onnx_decoder_layer.1']
    #allocation5 [shape = 'u8[16384]{0}', space=vmem, size = 0x4000, scoped, tag = 'input window, operand 2, single buffered']
    #allocation6 [shape = 's32[1]{0}', space=sflag, size = 0x4, scoped, tag = 'scoped memory for onnx_decoder_layer.1']
    #allocation7 [shape = 'u8[16384]{0}', space=vmem, size = 0x4000, scoped, tag = 'input window, operand 5, single buffered']
    #allocation8 [shape = 'u8[16384]{0}', space=vmem, size = 0x4000, scoped, tag = 'input window, operand 6, single buffered']
    #allocation9 [shape = 's32[1]{0}', space=sflag, size = 0x4, scoped, tag = 'scoped memory for onnx_decoder_layer.1']
    #allocation10 [shape = 'u8[49152]{0}', space=vmem, size = 0xc000, scoped, tag = 'input window, operand 7, single buffered']
    #allocation11 [shape = 'u8[8192]{0}', space=vmem, size = 0x2000, scoped, tag = 'output window, operand 0, single buffered']
    %14 = vsyncpa [#allocation3], 0
    %15 = vsyncpa [#allocation6], 0
    %16 = vsyncpa [#allocation9], 0
    %17 = vsyncpa [#allocation4], 0
    // Predicated region
    $region2: #{onnx_decoder_layer.1} parent=1 // pred_check
      _
    $region3: #{onnx_decoder_layer.1} parent=1 // pred_check_branch
      %19 = sbr.rel (0) target = $region5
    $region4: #{onnx_decoder_layer.1} parent=1 // pred_region
      %s21 = ssub.s32 256, 256
      %22 = vsyncadd [#allocation3], %s21
      %s23 = sshll.u32 [#allocation2], 4
      %s24 = int_to_ptr.vmem [resolvable:$true] %s23
      %29 = dma.hbm_to_vmem [thread:$0]  %s0, 256, %s24, [#allocation3], 128, 128, 8
    $region5: #{onnx_decoder_layer.1} parent=1 // pred_fallthru
      _
    // Predicated region
    $region6: #{onnx_decoder_layer.1} parent=1 // pred_check
      _
    $region7: #{onnx_decoder_layer.1} parent=1 // pred_check_branch
      %31 = sbr.rel (0) target = $region9
    $region8: #{onnx_decoder_layer.1} parent=1 // pred_region
      _
    $region9: #{onnx_decoder_layer.1} parent=1 // pred_fallthru
      _
    // Predicated region
    $region10: #{onnx_decoder_layer.1} parent=1 // pred_check
      _
    $region11: #{onnx_decoder_layer.1} parent=1 // pred_check_branch
      %33 = sbr.rel (0) target = $region13
    $region12: #{onnx_decoder_layer.1} parent=1 // pred_region
      %s35 = ssub.s32 512, 512
      %36 = vsyncadd [#allocation6], %s35
      %s37 = sshll.u32 [#allocation5], 4
      %s38 = int_to_ptr.vmem [resolvable:$true] %s37
      %43 = dma.hbm_to_vmem [thread:$0]  %s2, 512, %s38, [#allocation6], 128, 128, 8
    $region13: #{onnx_decoder_layer.1} parent=1 // pred_fallthru
      _
    // Predicated region
    $region14: #{onnx_decoder_layer.1} parent=1 // pred_check
      _
    $region15: #{onnx_decoder_layer.1} parent=1 // pred_check_branch
      %45 = sbr.rel (0) target = $region17
    $region16: #{onnx_decoder_layer.1} parent=1 // pred_region
      _
    $region17: #{onnx_decoder_layer.1} parent=1 // pred_fallthru
      _
    // Predicated region
    $region18: #{onnx_decoder_layer.1} parent=1 // pred_check
      _
    $region19: #{onnx_decoder_layer.1} parent=1 // pred_check_branch
      %47 = sbr.rel (0) target = $region21
    $region20: #{onnx_decoder_layer.1} parent=1 // pred_region
      _
    $region21: #{onnx_decoder_layer.1} parent=1 // pred_fallthru
      _
    // Predicated region
    $region22: #{onnx_decoder_layer.1} parent=1 // pred_check
      _
    $region23: #{onnx_decoder_layer.1} parent=1 // pred_check_branch
      %49 = sbr.rel (0) target = $region25
    $region24: #{onnx_decoder_layer.1} parent=1 // pred_region
      %s51 = ssub.s32 512, 512
      %52 = vsyncadd [#allocation6], %s51
      %s53 = sshll.u32 [#allocation7], 4
      %s54 = int_to_ptr.vmem [resolvable:$true] %s53
      %59 = dma.hbm_to_vmem [thread:$0]  %s5, 512, %s54, [#allocation6], 128, 128, 8
    $region25: #{onnx_decoder_layer.1} parent=1 // pred_fallthru
      _
    // Predicated region
    $region26: #{onnx_decoder_layer.1} parent=1 // pred_check
      _
    $region27: #{onnx_decoder_layer.1} parent=1 // pred_check_branch
      %61 = sbr.rel (0) target = $region29
    $region28: #{onnx_decoder_layer.1} parent=1 // pred_region
      %s63 = ssub.s32 512, 512
      %64 = vsyncadd [#allocation9], %s63
      %s65 = sshll.u32 [#allocation8], 4
      %s66 = int_to_ptr.vmem [resolvable:$true] %s65
      %71 = dma.hbm_to_vmem [thread:$0]  %s6, 512, %s66, [#allocation9], 128, 128, 8
    $region29: #{onnx_decoder_layer.1} parent=1 // pred_fallthru
      _
    // Predicated region
    $region30: #{onnx_decoder_layer.1} parent=1 // pred_check
      _
    $region31: #{onnx_decoder_layer.1} parent=1 // pred_check_branch
      %73 = sbr.rel (0) target = $region33
    $region32: #{onnx_decoder_layer.1} parent=1 // pred_region
      %s75 = ssub.s32 1536, 1536
      %76 = vsyncadd [#allocation9], %s75
      %s77 = sshll.u32 [#allocation10], 4
      %s78 = int_to_ptr.vmem [resolvable:$true] %s77
      %83 = dma.hbm_to_vmem [thread:$0]  %s7, 1536, %s78, [#allocation9], 128, 128, 8
    $region33: #{onnx_decoder_layer.1} parent=1 // pred_fallthru
      _
    // Predicated region
    $region34: #{onnx_decoder_layer.1} parent=1 // pred_check
      _
    $region35: #{onnx_decoder_layer.1} parent=1 // pred_check_branch
      %85 = sbr.rel (0) target = $region37
    $region36: #{onnx_decoder_layer.1} parent=1 // pred_region
      _
    $region37: #{onnx_decoder_layer.1} parent=1 // pred_fallthru
      _
    // Predicated region
    $region38: #{onnx_decoder_layer.1} parent=1 // pred_check
      _
    $region39: #{onnx_decoder_layer.1} parent=1 // pred_check_branch
      %87 = sbr.rel (0) target = $region41
    $region40: #{onnx_decoder_layer.1} parent=1 // pred_region
      %88 = dma.done [#allocation3], 256
    $region41: #{onnx_decoder_layer.1} parent=1 // pred_fallthru
      _
    // Predicated region
    $region42: #{onnx_decoder_layer.1} parent=1 // pred_check
      _
    $region43: #{onnx_decoder_layer.1} parent=1 // pred_check_branch
      %90 = sbr.rel (0) target = $region45
    $region44: #{onnx_decoder_layer.1} parent=1 // pred_region
      %91 = dma.done [#allocation6], 512
    $region45: #{onnx_decoder_layer.1} parent=1 // pred_fallthru
      _
    // Predicated region
    $region46: #{onnx_decoder_layer.1} parent=1 // pred_check
      _
    $region47: #{onnx_decoder_layer.1} parent=1 // pred_check_branch
      %93 = sbr.rel (0) target = $region49
    $region48: #{onnx_decoder_layer.1} parent=1 // pred_region
      %94 = dma.done [#allocation6], 512
    $region49: #{onnx_decoder_layer.1} parent=1 // pred_fallthru
      _
    // Predicated region
    $region50: #{onnx_decoder_layer.1} parent=1 // pred_check
      _
    $region51: #{onnx_decoder_layer.1} parent=1 // pred_check_branch
      %96 = sbr.rel (0) target = $region53
    $region52: #{onnx_decoder_layer.1} parent=1 // pred_region
      %97 = dma.done [#allocation9], 512
    $region53: #{onnx_decoder_layer.1} parent=1 // pred_fallthru
      _
    // Predicated region
    $region54: #{onnx_decoder_layer.1} parent=1 // pred_check
      _
    $region55: #{onnx_decoder_layer.1} parent=1 // pred_check_branch
      %99 = sbr.rel (0) target = $region57
    $region56: #{onnx_decoder_layer.1} parent=1 // pred_region
      %100 = dma.done [#allocation9], 1536
    $region57: #{onnx_decoder_layer.1} parent=1 // pred_fallthru
      _
    %v101 = vld [vmem:[%s4] sm:$0xff]
    %v102 = vld [vmem:[%s4 + $0x8] sm:$0xff]
    %v103 = vld [vmem:[%s4 + $0x10] sm:$0xff]
    %v104 = vld [vmem:[%s4 + $0x18] sm:$0xff]
    %v105 = vld [vmem:[%s4 + $0x20] sm:$0xff]
    %v106 = vld [vmem:[%s4 + $0x28] sm:$0xff]
    %v107 = vld [vmem:[%s4 + $0x30] sm:$0xff]
    %v108 = vld [vmem:[%s4 + $0x38] sm:$0xff]
    %v109 = vld [vmem:[%s4 + $0x40] sm:$0xff]
    %v110 = vld [vmem:[%s4 + $0x48] sm:$0xff]
    %v111 = vld [vmem:[%s4 + $0x50] sm:$0xff]
    %v112 = vld [vmem:[%s4 + $0x58] sm:$0xff]
    %v113 = vld [vmem:[%s4 + $0x60] sm:$0xff]
    %v114 = vld [vmem:[%s4 + $0x68] sm:$0xff]
    %v115 = vld [vmem:[%s4 + $0x70] sm:$0xff]
    %v116 = vld [vmem:[%s4 + $0x78] sm:$0xff]
    %v117 = vld [vmem:[%s4 + $0x80] sm:$0xff]
    %v118 = vld [vmem:[%s4 + $0x88] sm:$0xff]
    %v119 = vld [vmem:[%s4 + $0x90] sm:$0xff]
    %v120 = vld [vmem:[%s4 + $0x98] sm:$0xff]
    %v121 = vld [vmem:[%s4 + $0xa0] sm:$0xff]
    %v122 = vld [vmem:[%s4 + $0xa8] sm:$0xff]
    %v123 = vld [vmem:[%s4 + $0xb0] sm:$0xff]
    %v124 = vld [vmem:[%s4 + $0xb8] sm:$0xff]
    %v125 = vld [vmem:[#allocation10] sm:$0xff]
    %v126 = vld [vmem:[#allocation10 + $0x8] sm:$0xff]
    %v127 = vld [vmem:[#allocation10 + $0x10] sm:$0xff]
    %v128 = vld [vmem:[#allocation10 + $0x18] sm:$0xff]
    %v129 = vld [vmem:[#allocation10 + $0x20] sm:$0xff]
    %v130 = vld [vmem:[#allocation10 + $0x28] sm:$0xff]
    %v131 = vld [vmem:[#allocation10 + $0x30] sm:$0xff]
    %v132 = vld [vmem:[#allocation10 + $0x38] sm:$0xff]
    %v133 = vld [vmem:[#allocation10 + $0x40] sm:$0xff]
    %v134 = vld [vmem:[#allocation10 + $0x48] sm:$0xff]
    %v135 = vld [vmem:[#allocation10 + $0x50] sm:$0xff]
    %v136 = vld [vmem:[#allocation10 + $0x58] sm:$0xff]
    %v137 = vld [vmem:[%s8] sm:$0xff]
    %v138 = vld [vmem:[%s8 + $0x8] sm:$0xff]
    %v139 = vld [vmem:[%s8 + $0x10] sm:$0xff]
    %v140 = vld [vmem:[%s8 + $0x18] sm:$0xff]
    %v141 = vld [vmem:[#allocation2] sm:$0xff]
    %v142 = vld [vmem:[#allocation2 + $0x8] sm:$0xff]
    %v143 = vld [vmem:[#allocation5] sm:$0xff]
    %v144 = vld [vmem:[#allocation5 + $0x8] sm:$0xff]
    %v145 = vld [vmem:[#allocation5 + $0x10] sm:$0xff]
    %v146 = vld [vmem:[#allocation5 + $0x18] sm:$0xff]
    %vm147 = vcmask 261120
    %v148 = vsel %vm147, %v141, 0.0
    %149 = vadd.xlane.f32.xlu0 %v148
    %v150 = vpop.xlane.xlu0 %149
    %v151 = vsel %vm147, %v142, 0.0
    %152 = vadd.xlane.f32.xlu0 %v151
    %v153 = vpop.xlane.xlu0 %152
    %v154 = vrcp.pop 32.0
    %v155 = vmul.f32 %v150, %v154
    %v156 = vmul.f32 %v153, %v154
    %v157 = vsub.f32 %v141, %v155
    %v158 = vsub.f32 %v142, %v156
    %v159 = vmul.f32 %v157, %v157
    %v160 = vmul.f32 %v158, %v158
    %v161 = vsel %vm147, %v159, 0.0
    %162 = vadd.xlane.f32.xlu0 %v161
    %v163 = vpop.xlane.xlu0 %162
    %v164 = vsel %vm147, %v160, 0.0
    %165 = vadd.xlane.f32.xlu0 %v164
    %v166 = vpop.xlane.xlu0 %165
    %v167 = vmul.f32 %v163, %v154
    %v168 = vmul.f32 %v166, %v154
    %v169 = vadd.f32 %v167, 1e-12
    %v170 = vadd.f32 %v168, 1e-12
    %v171 = vrsqrt.pop %v169
    %v172 = vrsqrt.pop %v170
    %v173 = vmul.f32 %v157, %v171
    %v174 = vmul.f32 %v158, %v172
    %v175 = vlaneseq
    %v176 = vshrl.u32 %v175, 7
    %v177 = vsub.s32 7, %v176
    %v178 = vrot.slane %v137, %v177
    %v179 = vmul.f32 %v173, %v178
    %v180 = vmul.f32 %v174, %v178
    %v181 = vlaneseq
    %v182 = vshrl.u32 %v181, 7
    %v183 = vsub.s32 0, %v182
    %v184 = vrot.slane %v140, %v183
    %v185 = vadd.f32 %v179, %v184
    %v186 = vadd.f32 %v180, %v184
    %v187 = vlaneseq
    %v188 = vshrl.u32 %v187, 7
    %v189 = vsub.s32 0, %v188
    %v190 = vrot.slane %v137, %v189
    %v191 = vlaneseq
    %v192 = vshrl.u32 %v191, 7
    %v193 = vsub.s32 0, %v192
    %v194 = vrot.slane %v138, %v193
    %v195 = vlaneseq
    %v196 = vshrl.u32 %v195, 7
    %v197 = vsub.s32 0, %v196
    %v198 = vrot.slane %v139, %v197
    %v200 = vsel %vm147, %v185, 0
    %v203 = vsel %vm147, %v186, 0
    %205 = vmatprep.subr.mxu0 %v102
    %206 = vmatpush1.msra.mxu0 %v101
    %207 = vmatprep.subr.mxu0 %v108
    %208 = vmatpush1.msra.mxu0 %v107
    %209 = vmatprep.subr.mxu0 %v114
    %210 = vmatpush1.msra.mxu0 %v113
    %211 = vmatprep.subr.mxu0 %v120
    %212 = vmatpush1.msra.mxu0 %v119
    %213 = vmatprep.subr.mxu0 0.0
    %214 = vmatpush1.msra.mxu0 0.0
    %215 = vmatprep.subr.mxu0 0.0
    %216 = vmatpush1.msra.mxu0 0.0
    %217 = vmatprep.subr.mxu0 0.0
    %218 = vmatpush1.msra.mxu0 0.0
    %219 = vmatprep.subr.mxu0 0.0
    %220 = vmatpush1.msra.mxu0 0.0
    %221 = vmatprep.subr.mxu0 0.0
    %222 = vmatpush1.msra.mxu0 0.0
    %223 = vmatprep.subr.mxu0 0.0
    %224 = vmatpush1.msra.mxu0 0.0
    %225 = vmatprep.subr.mxu0 0.0
    %226 = vmatpush1.msra.mxu0 0.0
    %227 = vmatprep.subr.mxu0 0.0
    %228 = vmatpush1.msra.mxu0 0.0
    %229 = vmatprep.subr.mxu0 0.0
    %230 = vmatpush1.msra.mxu0 0.0
    %231 = vmatprep.subr.mxu0 0.0
    %232 = vmatpush1.msra.mxu0 0.0
    %233 = vmatprep.subr.mxu0 0.0
    %234 = vmatpush1.msra.mxu0 0.0
    %235 = vmatprep.subr.mxu0 0.0
    %236 = vmatpush1.msra.mxu0 0.0
    %237 = vmatprep.subr.mxu0 0.0
    %238 = vmatpush1.msra.mxu0 0.0
    %239 = vmatprep.subr.mxu0 0.0
    %240 = vmatpush1.msra.mxu0 0.0
    %241 = vmatprep.subr.mxu0 0.0
    %242 = vmatpush1.msra.mxu0 0.0
    %243 = vmatprep.subr.mxu0 0.0
    %244 = vmatpush1.msra.mxu0 0.0
    %245 = vmatprep.subr.mxu0 0.0
    %246 = vmatpush1.msra.mxu0 0.0
    %247 = vmatprep.subr.mxu0 0.0
    %248 = vmatpush1.msra.mxu0 0.0
    %249 = vmatprep.subr.mxu0 0.0
    %250 = vmatpush1.msra.mxu0 0.0
    %251 = vmatprep.subr.mxu0 0.0
    %252 = vmatpush1.msra.mxu0 0.0
    %253 = vmatprep.subr.mxu0 0.0
    %254 = vmatpush1.msra.mxu0 0.0
    %255 = vmatprep.subr.mxu0 0.0
    %256 = vmatpush1.msra.mxu0 0.0
    %257 = vmatprep.subr.mxu0 0.0
    %258 = vmatpush1.msra.mxu0 0.0
    %259 = vmatprep.subr.mxu0 0.0
    %260 = vmatpush1.msra.mxu0 0.0
    %261 = vmatprep.subr.mxu0 0.0
    %262 = vmatpush1.msra.mxu0 0.0
    %263 = vmatprep.subr.mxu0 0.0
    %264 = vmatpush1.msra.mxu0 0.0
    %265 = vmatprep.subr.mxu0 0.0
    %266 = vmatpush1.msra.mxu0 0.0
    %267 = vmatprep.subr.mxu0 0.0
    %268 = vmatpush1.msra.mxu0 0.0
    %269 = vmatprep.mubr.f32.mxu0 0.0
    %270 = vmatmul.mubr.f32.gmra.mrb[0].mxu0 %v200
    %v271 = vpop.f32.mrb[0].mxu0
    %v272 = vadd.f32 %v190, %v271
    %v273 = vpop.f32.mrb[0].mxu0
    %v274 = vadd.f32 %v194, %v273
    %275 = vmatprep.mubr.f32.mxu0 0.0
    %276 = vmatmul.mubr.f32.gmra.mrb[0].mxu0 %v203
    %v277 = vpop.f32.mrb[0].mxu0
    %v278 = vadd.f32 %v190, %v277
    %v279 = vpop.f32.mrb[0].mxu0
    %v280 = vadd.f32 %v194, %v279
    %281 = vdwg.mxu0
    %282 = vmatprep.subr.mxu0 0.0
    %283 = vmatpush1.msra.mxu0 %v103
    %284 = vmatprep.subr.mxu0 0.0
    %285 = vmatpush1.msra.mxu0 %v109
    %286 = vmatprep.subr.mxu0 0.0
    %287 = vmatpush1.msra.mxu0 %v115
    %288 = vmatprep.subr.mxu0 0.0
    %289 = vmatpush1.msra.mxu0 %v121
    %290 = vmatprep.subr.mxu0 0.0
    %291 = vmatpush1.msra.mxu0 0.0
    %292 = vmatprep.subr.mxu0 0.0
    %293 = vmatpush1.msra.mxu0 0.0
    %294 = vmatprep.subr.mxu0 0.0
    %295 = vmatpush1.msra.mxu0 0.0
    %296 = vmatprep.subr.mxu0 0.0
    %297 = vmatpush1.msra.mxu0 0.0
    %298 = vmatprep.subr.mxu0 0.0
    %299 = vmatpush1.msra.mxu0 0.0
    %300 = vmatprep.subr.mxu0 0.0
    %301 = vmatpush1.msra.mxu0 0.0
    %302 = vmatprep.subr.mxu0 0.0
    %303 = vmatpush1.msra.mxu0 0.0
    %304 = vmatprep.subr.mxu0 0.0
    %305 = vmatpush1.msra.mxu0 0.0
    %306 = vmatprep.subr.mxu0 0.0
    %307 = vmatpush1.msra.mxu0 0.0
    %308 = vmatprep.subr.mxu0 0.0
    %309 = vmatpush1.msra.mxu0 0.0
    %310 = vmatprep.subr.mxu0 0.0
    %311 = vmatpush1.msra.mxu0 0.0
    %312 = vmatprep.subr.mxu0 0.0
    %313 = vmatpush1.msra.mxu0 0.0
    %314 = vmatprep.subr.mxu0 0.0
    %315 = vmatpush1.msra.mxu0 0.0
    %316 = vmatprep.subr.mxu0 0.0
    %317 = vmatpush1.msra.mxu0 0.0
    %318 = vmatprep.subr.mxu0 0.0
    %319 = vmatpush1.msra.mxu0 0.0
    %320 = vmatprep.subr.mxu0 0.0
    %321 = vmatpush1.msra.mxu0 0.0
    %322 = vmatprep.subr.mxu0 0.0
    %323 = vmatpush1.msra.mxu0 0.0
    %324 = vmatprep.subr.mxu0 0.0
    %325 = vmatpush1.msra.mxu0 0.0
    %326 = vmatprep.subr.mxu0 0.0
    %327 = vmatpush1.msra.mxu0 0.0
    %328 = vmatprep.subr.mxu0 0.0
    %329 = vmatpush1.msra.mxu0 0.0
    %330 = vmatprep.subr.mxu0 0.0
    %331 = vmatpush1.msra.mxu0 0.0
    %332 = vmatprep.subr.mxu0 0.0
    %333 = vmatpush1.msra.mxu0 0.0
    %334 = vmatprep.subr.mxu0 0.0
    %335 = vmatpush1.msra.mxu0 0.0
    %336 = vmatprep.subr.mxu0 0.0
    %337 = vmatpush1.msra.mxu0 0.0
    %338 = vmatprep.subr.mxu0 0.0
    %339 = vmatpush1.msra.mxu0 0.0
    %340 = vmatprep.subr.mxu0 0.0
    %341 = vmatpush1.msra.mxu0 0.0
    %342 = vmatprep.subr.mxu0 0.0
    %343 = vmatpush1.msra.mxu0 0.0
    %344 = vmatprep.subr.mxu0 0.0
    %345 = vmatpush1.msra.mxu0 0.0
    %346 = vmatprep.mubr.f32.mxu0 0.0
    %347 = vmatmul.mubr.f32.gmra.mrb[0].mxu0 %v200
    %v348 = vpop.f32.mrb[0].mxu0
    %v349 = vadd.f32 %v198, %v348
    %v350 = vpop.f32.mrb[0].mxu0
    %351 = vmatprep.mubr.f32.mxu0 0.0
    %352 = vmatmul.mubr.f32.gmra.mrb[0].mxu0 %v203
    %v353 = vpop.f32.mrb[0].mxu0
    %v354 = vadd.f32 %v198, %v353
    %v355 = vpop.f32.mrb[0].mxu0
    %356 = vdwg.mxu0
    %359 = vrot.lane.b32.xlu0 %v272, 120
    %v360 = vpop.permute.xlu0 %359
    %361 = vrot.lane.b32.xlu0 %v278, 120
    %v362 = vpop.permute.xlu0 %361
    %363 = vrot.lane.b32.xlu0 %v272, 112
    %v364 = vpop.permute.xlu0 %363
    %365 = vrot.lane.b32.xlu0 %v278, 112
    %v366 = vpop.permute.xlu0 %365
    %367 = vrot.lane.b32.xlu0 %v272, 104
    %v368 = vpop.permute.xlu0 %367
    %369 = vrot.lane.b32.xlu0 %v278, 104
    %v370 = vpop.permute.xlu0 %369
    %373 = vrot.lane.b32.xlu0 %v274, 120
    %v374 = vpop.permute.xlu0 %373
    %375 = vrot.lane.b32.xlu0 %v280, 120
    %v376 = vpop.permute.xlu0 %375
    %377 = vrot.lane.b32.xlu0 %v274, 112
    %v378 = vpop.permute.xlu0 %377
    %379 = vrot.lane.b32.xlu0 %v280, 112
    %v380 = vpop.permute.xlu0 %379
    %381 = vrot.lane.b32.xlu0 %v274, 104
    %v382 = vpop.permute.xlu0 %381
    %383 = vrot.lane.b32.xlu0 %v280, 104
    %v384 = vpop.permute.xlu0 %383
    %387 = vrot.lane.b32.xlu0 %v349, 120
    %v388 = vpop.permute.xlu0 %387
    %389 = vrot.lane.b32.xlu0 %v354, 120
    %v390 = vpop.permute.xlu0 %389
    %393 = vrot.lane.b32.xlu0 %v349, 112
    %v394 = vpop.permute.xlu0 %393
    %395 = vrot.lane.b32.xlu0 %v354, 112
    %v396 = vpop.permute.xlu0 %395
    %399 = vrot.lane.b32.xlu0 %v349, 104
    %v400 = vpop.permute.xlu0 %399
    %401 = vrot.lane.b32.xlu0 %v354, 104
    %v402 = vpop.permute.xlu0 %401
    %v405 = vld [vmem:[%s1] sm:$0xff]
    %v406 = vld [vmem:[%s1 + $0x8] sm:$0xff]
    %v407 = vld [vmem:[#allocation7] sm:$0xff]
    %v408 = vld [vmem:[#allocation7 + $0x8] sm:$0xff]
    %v409 = vld [vmem:[#allocation7 + $0x10] sm:$0xff]
    %v410 = vld [vmem:[#allocation7 + $0x18] sm:$0xff]
    %vm411 = vcmask 64512
    %v412 = vsel %vm411, %v272, 0
    %v414 = vsel %vm411, %v278, 0
    %v416 = vsel %vm411, %v274, 0
    %v418 = vsel %vm411, %v280, 0
    %420 = vmatprep.subr.mxu0 0.0
    %421 = vmatpush1.xpose.msra.mxu0 %v416
    %422 = vmatprep.subr.mxu0 0.0
    %423 = vmatpush1.xpose.msra.mxu0 %v418
    %424 = vmatprep.subr.mxu0 0.0
    %425 = vmatpush1.xpose.msra.mxu0 0.0
    %426 = vmatprep.subr.mxu0 0.0
    %427 = vmatpush1.xpose.msra.mxu0 0.0
    %428 = vmatprep.subr.mxu0 0.0
    %429 = vmatpush1.xpose.msra.mxu0 0.0
    %430 = vmatprep.subr.mxu0 0.0
    %431 = vmatpush1.xpose.msra.mxu0 0.0
    %432 = vmatprep.subr.mxu0 0.0
    %433 = vmatpush1.xpose.msra.mxu0 0.0
    %434 = vmatprep.subr.mxu0 0.0
    %435 = vmatpush1.xpose.msra.mxu0 0.0
    %436 = vmatprep.subr.mxu0 0.0
    %437 = vmatpush1.xpose.msra.mxu0 0.0
    %438 = vmatprep.subr.mxu0 0.0
    %439 = vmatpush1.xpose.msra.mxu0 0.0
    %440 = vmatprep.subr.mxu0 0.0
    %441 = vmatpush1.xpose.msra.mxu0 0.0
    %442 = vmatprep.subr.mxu0 0.0
    %443 = vmatpush1.xpose.msra.mxu0 0.0
    %444 = vmatprep.subr.mxu0 0.0
    %445 = vmatpush1.xpose.msra.mxu0 0.0
    %446 = vmatprep.subr.mxu0 0.0
    %447 = vmatpush1.xpose.msra.mxu0 0.0
    %448 = vmatprep.subr.mxu0 0.0
    %449 = vmatpush1.xpose.msra.mxu0 0.0
    %450 = vmatprep.subr.mxu0 0.0
    %451 = vmatpush1.xpose.msra.mxu0 0.0
    %452 = vmatprep.subr.mxu0 0.0
    %453 = vmatpush1.xpose.msra.mxu0 0.0
    %454 = vmatprep.subr.mxu0 0.0
    %455 = vmatpush1.xpose.msra.mxu0 0.0
    %456 = vmatprep.subr.mxu0 0.0
    %457 = vmatpush1.xpose.msra.mxu0 0.0
    %458 = vmatprep.subr.mxu0 0.0
    %459 = vmatpush1.xpose.msra.mxu0 0.0
    %460 = vmatprep.subr.mxu0 0.0
    %461 = vmatpush1.xpose.msra.mxu0 0.0
    %462 = vmatprep.subr.mxu0 0.0
    %463 = vmatpush1.xpose.msra.mxu0 0.0
    %464 = vmatprep.subr.mxu0 0.0
    %465 = vmatpush1.xpose.msra.mxu0 0.0
    %466 = vmatprep.subr.mxu0 0.0
    %467 = vmatpush1.xpose.msra.mxu0 0.0
    %468 = vmatprep.subr.mxu0 0.0
    %469 = vmatpush1.xpose.msra.mxu0 0.0
    %470 = vmatprep.subr.mxu0 0.0
    %471 = vmatpush1.xpose.msra.mxu0 0.0
    %472 = vmatprep.subr.mxu0 0.0
    %473 = vmatpush1.xpose.msra.mxu0 0.0
    %474 = vmatprep.subr.mxu0 0.0
    %475 = vmatpush1.xpose.msra.mxu0 0.0
    %476 = vmatprep.subr.mxu0 0.0
    %477 = vmatpush1.xpose.msra.mxu0 0.0
    %478 = vmatprep.subr.mxu0 0.0
    %479 = vmatpush1.xpose.msra.mxu0 0.0
    %480 = vmatprep.subr.mxu0 0.0
    %481 = vmatpush1.xpose.msra.mxu0 0.0
    %482 = vmatprep.subr.mxu0 0.0
    %483 = vmatpush1.xpose.msra.mxu0 0.0
    %484 = vmatprep.mubr.f32.mxu0 0.0
    %485 = vmatmul.mubr.f32.gmra.mrb[0].mxu0 %v412
    %v486 = vpop.f32.mrb[0].mxu0
    %v487 = vadd.f32 %v405, %v486
    %v488 = vpop.f32.mrb[0].mxu0
    %489 = vmatprep.mubr.f32.mxu0 0.0
    %490 = vmatmul.mubr.f32.gmra.mrb[0].mxu0 %v414
    %v491 = vpop.f32.mrb[0].mxu0
    %v492 = vadd.f32 %v406, %v491
    %v493 = vpop.f32.mrb[0].mxu0
    %494 = vdwg.mxu0
    %v495 = vsel %vm411, %v360, 0
    %v497 = vsel %vm411, %v362, 0
    %v499 = vsel %vm411, %v374, 0
    %v501 = vsel %vm411, %v376, 0
    %503 = vmatprep.subr.mxu0 0.0
    %504 = vmatpush1.xpose.msra.mxu0 %v499
    %505 = vmatprep.subr.mxu0 0.0
    %506 = vmatpush1.xpose.msra.mxu0 %v501
    %507 = vmatprep.subr.mxu0 0.0
    %508 = vmatpush1.xpose.msra.mxu0 0.0
    %509 = vmatprep.subr.mxu0 0.0
    %510 = vmatpush1.xpose.msra.mxu0 0.0
    %511 = vmatprep.subr.mxu0 0.0
    %512 = vmatpush1.xpose.msra.mxu0 0.0
    %513 = vmatprep.subr.mxu0 0.0
    %514 = vmatpush1.xpose.msra.mxu0 0.0
    %515 = vmatprep.subr.mxu0 0.0
    %516 = vmatpush1.xpose.msra.mxu0 0.0
    %517 = vmatprep.subr.mxu0 0.0
    %518 = vmatpush1.xpose.msra.mxu0 0.0
    %519 = vmatprep.subr.mxu0 0.0
    %520 = vmatpush1.xpose.msra.mxu0 0.0
    %521 = vmatprep.subr.mxu0 0.0
    %522 = vmatpush1.xpose.msra.mxu0 0.0
    %523 = vmatprep.subr.mxu0 0.0
    %524 = vmatpush1.xpose.msra.mxu0 0.0
    %525 = vmatprep.subr.mxu0 0.0
    %526 = vmatpush1.xpose.msra.mxu0 0.0
    %527 = vmatprep.subr.mxu0 0.0
    %528 = vmatpush1.xpose.msra.mxu0 0.0
    %529 = vmatprep.subr.mxu0 0.0
    %530 = vmatpush1.xpose.msra.mxu0 0.0
    %531 = vmatprep.subr.mxu0 0.0
    %532 = vmatpush1.xpose.msra.mxu0 0.0
    %533 = vmatprep.subr.mxu0 0.0
    %534 = vmatpush1.xpose.msra.mxu0 0.0
    %535 = vmatprep.subr.mxu0 0.0
    %536 = vmatpush1.xpose.msra.mxu0 0.0
    %537 = vmatprep.subr.mxu0 0.0
    %538 = vmatpush1.xpose.msra.mxu0 0.0
    %539 = vmatprep.subr.mxu0 0.0
    %540 = vmatpush1.xpose.msra.mxu0 0.0
    %541 = vmatprep.subr.mxu0 0.0
    %542 = vmatpush1.xpose.msra.mxu0 0.0
    %543 = vmatprep.subr.mxu0 0.0
    %544 = vmatpush1.xpose.msra.mxu0 0.0
    %545 = vmatprep.subr.mxu0 0.0
    %546 = vmatpush1.xpose.msra.mxu0 0.0
    %547 = vmatprep.subr.mxu0 0.0
    %548 = vmatpush1.xpose.msra.mxu0 0.0
    %549 = vmatprep.subr.mxu0 0.0
    %550 = vmatpush1.xpose.msra.mxu0 0.0
    %551 = vmatprep.subr.mxu0 0.0
    %552 = vmatpush1.xpose.msra.mxu0 0.0
    %553 = vmatprep.subr.mxu0 0.0
    %554 = vmatpush1.xpose.msra.mxu0 0.0
    %555 = vmatprep.subr.mxu0 0.0
    %556 = vmatpush1.xpose.msra.mxu0 0.0
    %557 = vmatprep.subr.mxu0 0.0
    %558 = vmatpush1.xpose.msra.mxu0 0.0
    %559 = vmatprep.subr.mxu0 0.0
    %560 = vmatpush1.xpose.msra.mxu0 0.0
    %561 = vmatprep.subr.mxu0 0.0
    %562 = vmatpush1.xpose.msra.mxu0 0.0
    %563 = vmatprep.subr.mxu0 0.0
    %564 = vmatpush1.xpose.msra.mxu0 0.0
    %565 = vmatprep.subr.mxu0 0.0
    %566 = vmatpush1.xpose.msra.mxu0 0.0
    %567 = vmatprep.mubr.f32.mxu0 0.0
    %568 = vmatmul.mubr.f32.gmra.mrb[0].mxu0 %v495
    %v569 = vpop.f32.mrb[0].mxu0
    %v570 = vadd.f32 %v405, %v569
    %v571 = vpop.f32.mrb[0].mxu0
    %572 = vmatprep.mubr.f32.mxu0 0.0
    %573 = vmatmul.mubr.f32.gmra.mrb[0].mxu0 %v497
    %v574 = vpop.f32.mrb[0].mxu0
    %v575 = vadd.f32 %v406, %v574
    %v576 = vpop.f32.mrb[0].mxu0
    %577 = vdwg.mxu0
    %v578 = vsel %vm411, %v364, 0
    %v580 = vsel %vm411, %v366, 0
    %v582 = vsel %vm411, %v378, 0
    %v584 = vsel %vm411, %v380, 0
    %586 = vmatprep.subr.mxu0 0.0
    %587 = vmatpush1.xpose.msra.mxu0 %v582
    %588 = vmatprep.subr.mxu0 0.0
    %589 = vmatpush1.xpose.msra.mxu0 %v584
    %590 = vmatprep.subr.mxu0 0.0
    %591 = vmatpush1.xpose.msra.mxu0 0.0
    %592 = vmatprep.subr.mxu0 0.0
    %593 = vmatpush1.xpose.msra.mxu0 0.0
    %594 = vmatprep.subr.mxu0 0.0
    %595 = vmatpush1.xpose.msra.mxu0 0.0
    %596 = vmatprep.subr.mxu0 0.0
    %597 = vmatpush1.xpose.msra.mxu0 0.0
    %598 = vmatprep.subr.mxu0 0.0
    %599 = vmatpush1.xpose.msra.mxu0 0.0
    %600 = vmatprep.subr.mxu0 0.0
    %601 = vmatpush1.xpose.msra.mxu0 0.0
    %602 = vmatprep.subr.mxu0 0.0
    %603 = vmatpush1.xpose.msra.mxu0 0.0
    %604 = vmatprep.subr.mxu0 0.0
    %605 = vmatpush1.xpose.msra.mxu0 0.0
    %606 = vmatprep.subr.mxu0 0.0
    %607 = vmatpush1.xpose.msra.mxu0 0.0
    %608 = vmatprep.subr.mxu0 0.0
    %609 = vmatpush1.xpose.msra.mxu0 0.0
    %610 = vmatprep.subr.mxu0 0.0
    %611 = vmatpush1.xpose.msra.mxu0 0.0
    %612 = vmatprep.subr.mxu0 0.0
    %613 = vmatpush1.xpose.msra.mxu0 0.0
    %614 = vmatprep.subr.mxu0 0.0
    %615 = vmatpush1.xpose.msra.mxu0 0.0
    %616 = vmatprep.subr.mxu0 0.0
    %617 = vmatpush1.xpose.msra.mxu0 0.0
    %618 = vmatprep.subr.mxu0 0.0
    %619 = vmatpush1.xpose.msra.mxu0 0.0
    %620 = vmatprep.subr.mxu0 0.0
    %621 = vmatpush1.xpose.msra.mxu0 0.0
    %622 = vmatprep.subr.mxu0 0.0
    %623 = vmatpush1.xpose.msra.mxu0 0.0
    %624 = vmatprep.subr.mxu0 0.0
    %625 = vmatpush1.xpose.msra.mxu0 0.0
    %626 = vmatprep.subr.mxu0 0.0
    %627 = vmatpush1.xpose.msra.mxu0 0.0
    %628 = vmatprep.subr.mxu0 0.0
    %629 = vmatpush1.xpose.msra.mxu0 0.0
    %630 = vmatprep.subr.mxu0 0.0
    %631 = vmatpush1.xpose.msra.mxu0 0.0
    %632 = vmatprep.subr.mxu0 0.0
    %633 = vmatpush1.xpose.msra.mxu0 0.0
    %634 = vmatprep.subr.mxu0 0.0
    %635 = vmatpush1.xpose.msra.mxu0 0.0
    %636 = vmatprep.subr.mxu0 0.0
    %637 = vmatpush1.xpose.msra.mxu0 0.0
    %638 = vmatprep.subr.mxu0 0.0
    %639 = vmatpush1.xpose.msra.mxu0 0.0
    %640 = vmatprep.subr.mxu0 0.0
    %641 = vmatpush1.xpose.msra.mxu0 0.0
    %642 = vmatprep.subr.mxu0 0.0
    %643 = vmatpush1.xpose.msra.mxu0 0.0
    %644 = vmatprep.subr.mxu0 0.0
    %645 = vmatpush1.xpose.msra.mxu0 0.0
    %646 = vmatprep.subr.mxu0 0.0
    %647 = vmatpush1.xpose.msra.mxu0 0.0
    %648 = vmatprep.subr.mxu0 0.0
    %649 = vmatpush1.xpose.msra.mxu0 0.0
    %650 = vmatprep.mubr.f32.mxu0 0.0
    %651 = vmatmul.mubr.f32.gmra.mrb[0].mxu0 %v578
    %v652 = vpop.f32.mrb[0].mxu0
    %v653 = vadd.f32 %v405, %v652
    %v654 = vpop.f32.mrb[0].mxu0
    %655 = vmatprep.mubr.f32.mxu0 0.0
    %656 = vmatmul.mubr.f32.gmra.mrb[0].mxu0 %v580
    %v657 = vpop.f32.mrb[0].mxu0
    %v658 = vadd.f32 %v406, %v657
    %v659 = vpop.f32.mrb[0].mxu0
    %660 = vdwg.mxu0
    %v661 = vsel %vm411, %v368, 0
    %v663 = vsel %vm411, %v370, 0
    %v665 = vsel %vm411, %v382, 0
    %v667 = vsel %vm411, %v384, 0
    %669 = vmatprep.subr.mxu0 0.0
    %670 = vmatpush1.xpose.msra.mxu0 %v665
    %671 = vmatprep.subr.mxu0 0.0
    %672 = vmatpush1.xpose.msra.mxu0 %v667
    %673 = vmatprep.subr.mxu0 0.0
    %674 = vmatpush1.xpose.msra.mxu0 0.0
    %675 = vmatprep.subr.mxu0 0.0
    %676 = vmatpush1.xpose.msra.mxu0 0.0
    %677 = vmatprep.subr.mxu0 0.0
    %678 = vmatpush1.xpose.msra.mxu0 0.0
    %679 = vmatprep.subr.mxu0 0.0
    %680 = vmatpush1.xpose.msra.mxu0 0.0
    %681 = vmatprep.subr.mxu0 0.0
    %682 = vmatpush1.xpose.msra.mxu0 0.0
    %683 = vmatprep.subr.mxu0 0.0
    %684 = vmatpush1.xpose.msra.mxu0 0.0
    %685 = vmatprep.subr.mxu0 0.0
    %686 = vmatpush1.xpose.msra.mxu0 0.0
    %687 = vmatprep.subr.mxu0 0.0
    %688 = vmatpush1.xpose.msra.mxu0 0.0
    %689 = vmatprep.subr.mxu0 0.0
    %690 = vmatpush1.xpose.msra.mxu0 0.0
    %691 = vmatprep.subr.mxu0 0.0
    %692 = vmatpush1.xpose.msra.mxu0 0.0
    %693 = vmatprep.subr.mxu0 0.0
    %694 = vmatpush1.xpose.msra.mxu0 0.0
    %695 = vmatprep.subr.mxu0 0.0
    %696 = vmatpush1.xpose.msra.mxu0 0.0
    %697 = vmatprep.subr.mxu0 0.0
    %698 = vmatpush1.xpose.msra.mxu0 0.0
    %699 = vmatprep.subr.mxu0 0.0
    %700 = vmatpush1.xpose.msra.mxu0 0.0
    %701 = vmatprep.subr.mxu0 0.0
    %702 = vmatpush1.xpose.msra.mxu0 0.0
    %703 = vmatprep.subr.mxu0 0.0
    %704 = vmatpush1.xpose.msra.mxu0 0.0
    %705 = vmatprep.subr.mxu0 0.0
    %706 = vmatpush1.xpose.msra.mxu0 0.0
    %707 = vmatprep.subr.mxu0 0.0
    %708 = vmatpush1.xpose.msra.mxu0 0.0
    %709 = vmatprep.subr.mxu0 0.0
    %710 = vmatpush1.xpose.msra.mxu0 0.0
    %711 = vmatprep.subr.mxu0 0.0
    %712 = vmatpush1.xpose.msra.mxu0 0.0
    %713 = vmatprep.subr.mxu0 0.0
    %714 = vmatpush1.xpose.msra.mxu0 0.0
    %715 = vmatprep.subr.mxu0 0.0
    %716 = vmatpush1.xpose.msra.mxu0 0.0
    %717 = vmatprep.subr.mxu0 0.0
    %718 = vmatpush1.xpose.msra.mxu0 0.0
    %719 = vmatprep.subr.mxu0 0.0
    %720 = vmatpush1.xpose.msra.mxu0 0.0
    %721 = vmatprep.subr.mxu0 0.0
    %722 = vmatpush1.xpose.msra.mxu0 0.0
    %723 = vmatprep.subr.mxu0 0.0
    %724 = vmatpush1.xpose.msra.mxu0 0.0
    %725 = vmatprep.subr.mxu0 0.0
    %726 = vmatpush1.xpose.msra.mxu0 0.0
    %727 = vmatprep.subr.mxu0 0.0
    %728 = vmatpush1.xpose.msra.mxu0 0.0
    %729 = vmatprep.subr.mxu0 0.0
    %730 = vmatpush1.xpose.msra.mxu0 0.0
    %731 = vmatprep.subr.mxu0 0.0
    %732 = vmatpush1.xpose.msra.mxu0 0.0
    %733 = vmatprep.mubr.f32.mxu0 0.0
    %734 = vmatmul.mubr.f32.gmra.mrb[0].mxu0 %v661
    %v735 = vpop.f32.mrb[0].mxu0
    %v736 = vadd.f32 %v405, %v735
    %v737 = vpop.f32.mrb[0].mxu0
    %738 = vmatprep.mubr.f32.mxu0 0.0
    %739 = vmatmul.mubr.f32.gmra.mrb[0].mxu0 %v663
    %v740 = vpop.f32.mrb[0].mxu0
    %v741 = vadd.f32 %v406, %v740
    %v742 = vpop.f32.mrb[0].mxu0
    %743 = vdwg.mxu0
    %vm744 = vcmask 130048
    %v745 = vsel %vm744, %v487, -inf
    %746 = vmax.xlane.f32.xlu0 %v745
    %v747 = vpop.xlane.xlu0 %746
    %v748 = vsel %vm744, %v492, -inf
    %749 = vmax.xlane.f32.xlu0 %v748
    %v750 = vpop.xlane.xlu0 %749
    %v751 = vsel %vm744, %v570, -inf
    %752 = vmax.xlane.f32.xlu0 %v751
    %v753 = vpop.xlane.xlu0 %752
    %v754 = vsel %vm744, %v575, -inf
    %755 = vmax.xlane.f32.xlu0 %v754
    %v756 = vpop.xlane.xlu0 %755
    %v757 = vsel %vm744, %v653, -inf
    %758 = vmax.xlane.f32.xlu0 %v757
    %v759 = vpop.xlane.xlu0 %758
    %v760 = vsel %vm744, %v658, -inf
    %761 = vmax.xlane.f32.xlu0 %v760
    %v762 = vpop.xlane.xlu0 %761
    %v763 = vsel %vm744, %v736, -inf
    %764 = vmax.xlane.f32.xlu0 %v763
    %v765 = vpop.xlane.xlu0 %764
    %v766 = vsel %vm744, %v741, -inf
    %767 = vmax.xlane.f32.xlu0 %v766
    %v768 = vpop.xlane.xlu0 %767
    %v769 = vsub.f32 %v487, %v747
    %v770 = vsub.f32 %v492, %v750
    %v771 = vsub.f32 %v570, %v753
    %v772 = vsub.f32 %v575, %v756
    %v773 = vsub.f32 %v653, %v759
    %v774 = vsub.f32 %v658, %v762
    %v775 = vsub.f32 %v736, %v765
    %v776 = vsub.f32 %v741, %v768
    %v777 = vmul.f32 %v769, 1.442695
    %v778 = vpow.pop %v777
    %v779 = vmul.f32 %v770, 1.442695
    %v780 = vpow.pop %v779
    %v781 = vmul.f32 %v771, 1.442695
    %v782 = vpow.pop %v781
    %v783 = vmul.f32 %v772, 1.442695
    %v784 = vpow.pop %v783
    %v785 = vmul.f32 %v773, 1.442695
    %v786 = vpow.pop %v785
    %v787 = vmul.f32 %v774, 1.442695
    %v788 = vpow.pop %v787
    %v789 = vmul.f32 %v775, 1.442695
    %v790 = vpow.pop %v789
    %v791 = vmul.f32 %v776, 1.442695
    %v792 = vpow.pop %v791
    %v794 = vsel %vm744, %v778, 0
    %v797 = vsel %vm744, %v780, 0
    %799 = vmatprep.subr.mxu0 0.0
    %800 = vmatpush1.msra.mxu0 %v349
    %801 = vmatprep.subr.mxu0 0.0
    %802 = vmatpush1.msra.mxu0 %v354
    %803 = vmatprep.subr.mxu0 0.0
    %804 = vmatpush1.msra.mxu0 0.0
    %805 = vmatprep.subr.mxu0 0.0
    %806 = vmatpush1.msra.mxu0 0.0
    %807 = vmatprep.subr.mxu0 0.0
    %808 = vmatpush1.msra.mxu0 0.0
    %809 = vmatprep.subr.mxu0 0.0
    %810 = vmatpush1.msra.mxu0 0.0
    %811 = vmatprep.subr.mxu0 0.0
    %812 = vmatpush1.msra.mxu0 0.0
    %813 = vmatprep.subr.mxu0 0.0
    %814 = vmatpush1.msra.mxu0 0.0
    %815 = vmatprep.subr.mxu0 0.0
    %816 = vmatpush1.msra.mxu0 0.0
    %817 = vmatprep.subr.mxu0 0.0
    %818 = vmatpush1.msra.mxu0 0.0
    %819 = vmatprep.subr.mxu0 0.0
    %820 = vmatpush1.msra.mxu0 0.0
    %821 = vmatprep.subr.mxu0 0.0
    %822 = vmatpush1.msra.mxu0 0.0
    %823 = vmatprep.subr.mxu0 0.0
    %824 = vmatpush1.msra.mxu0 0.0
    %825 = vmatprep.subr.mxu0 0.0
    %826 = vmatpush1.msra.mxu0 0.0
    %827 = vmatprep.subr.mxu0 0.0
    %828 = vmatpush1.msra.mxu0 0.0
    %829 = vmatprep.subr.mxu0 0.0
    %830 = vmatpush1.msra.mxu0 0.0
    %831 = vmatprep.subr.mxu0 0.0
    %832 = vmatpush1.msra.mxu0 0.0
    %833 = vmatprep.subr.mxu0 0.0
    %834 = vmatpush1.msra.mxu0 0.0
    %835 = vmatprep.subr.mxu0 0.0
    %836 = vmatpush1.msra.mxu0 0.0
    %837 = vmatprep.subr.mxu0 0.0
    %838 = vmatpush1.msra.mxu0 0.0
    %839 = vmatprep.subr.mxu0 0.0
    %840 = vmatpush1.msra.mxu0 0.0
    %841 = vmatprep.subr.mxu0 0.0
    %842 = vmatpush1.msra.mxu0 0.0
    %843 = vmatprep.subr.mxu0 0.0
    %844 = vmatpush1.msra.mxu0 0.0
    %845 = vmatprep.subr.mxu0 0.0
    %846 = vmatpush1.msra.mxu0 0.0
    %847 = vmatprep.subr.mxu0 0.0
    %848 = vmatpush1.msra.mxu0 0.0
    %849 = vmatprep.subr.mxu0 0.0
    %850 = vmatpush1.msra.mxu0 0.0
    %851 = vmatprep.subr.mxu0 0.0
    %852 = vmatpush1.msra.mxu0 0.0
    %853 = vmatprep.subr.mxu0 0.0
    %854 = vmatpush1.msra.mxu0 0.0
    %855 = vmatprep.subr.mxu0 0.0
    %856 = vmatpush1.msra.mxu0 0.0
    %857 = vmatprep.subr.mxu0 0.0
    %858 = vmatpush1.msra.mxu0 0.0
    %859 = vmatprep.subr.mxu0 0.0
    %860 = vmatpush1.msra.mxu0 0.0
    %861 = vmatprep.subr.mxu0 0.0
    %862 = vmatpush1.msra.mxu0 0.0
    %863 = vmatprep.mubr.f32.mxu0 0.0
    %864 = vmatmul.mubr.f32.gmra.mrb[0].mxu0 %v794
    %v865 = vpop.f32.mrb[0].mxu0
    %v866 = vadd.f32 0.0, %v865
    %v867 = vpop.f32.mrb[0].mxu0
    %868 = vmatprep.mubr.f32.mxu0 0.0
    %869 = vmatmul.mubr.f32.gmra.mrb[0].mxu0 %v797
    %v870 = vpop.f32.mrb[0].mxu0
    %v871 = vadd.f32 0.0, %v870
    %v872 = vpop.f32.mrb[0].mxu0
    %873 = vdwg.mxu0
    %v875 = vsel %vm744, %v782, 0
    %v878 = vsel %vm744, %v784, 0
    %880 = vmatprep.subr.mxu0 0.0
    %881 = vmatpush1.msra.mxu0 %v388
    %882 = vmatprep.subr.mxu0 0.0
    %883 = vmatpush1.msra.mxu0 %v390
    %884 = vmatprep.subr.mxu0 0.0
    %885 = vmatpush1.msra.mxu0 0.0
    %886 = vmatprep.subr.mxu0 0.0
    %887 = vmatpush1.msra.mxu0 0.0
    %888 = vmatprep.subr.mxu0 0.0
    %889 = vmatpush1.msra.mxu0 0.0
    %890 = vmatprep.subr.mxu0 0.0
    %891 = vmatpush1.msra.mxu0 0.0
    %892 = vmatprep.subr.mxu0 0.0
    %893 = vmatpush1.msra.mxu0 0.0
    %894 = vmatprep.subr.mxu0 0.0
    %895 = vmatpush1.msra.mxu0 0.0
    %896 = vmatprep.subr.mxu0 0.0
    %897 = vmatpush1.msra.mxu0 0.0
    %898 = vmatprep.subr.mxu0 0.0
    %899 = vmatpush1.msra.mxu0 0.0
    %900 = vmatprep.subr.mxu0 0.0
    %901 = vmatpush1.msra.mxu0 0.0
    %902 = vmatprep.subr.mxu0 0.0
    %903 = vmatpush1.msra.mxu0 0.0
    %904 = vmatprep.subr.mxu0 0.0
    %905 = vmatpush1.msra.mxu0 0.0
    %906 = vmatprep.subr.mxu0 0.0
    %907 = vmatpush1.msra.mxu0 0.0
    %908 = vmatprep.subr.mxu0 0.0
    %909 = vmatpush1.msra.mxu0 0.0
    %910 = vmatprep.subr.mxu0 0.0
    %911 = vmatpush1.msra.mxu0 0.0
    %912 = vmatprep.subr.mxu0 0.0
    %913 = vmatpush1.msra.mxu0 0.0
    %914 = vmatprep.subr.mxu0 0.0
    %915 = vmatpush1.msra.mxu0 0.0
    %916 = vmatprep.subr.mxu0 0.0
    %917 = vmatpush1.msra.mxu0 0.0
    %918 = vmatprep.subr.mxu0 0.0
    %919 = vmatpush1.msra.mxu0 0.0
    %920 = vmatprep.subr.mxu0 0.0
    %921 = vmatpush1.msra.mxu0 0.0
    %922 = vmatprep.subr.mxu0 0.0
    %923 = vmatpush1.msra.mxu0 0.0
    %924 = vmatprep.subr.mxu0 0.0
    %925 = vmatpush1.msra.mxu0 0.0
    %926 = vmatprep.subr.mxu0 0.0
    %927 = vmatpush1.msra.mxu0 0.0
    %928 = vmatprep.subr.mxu0 0.0
    %929 = vmatpush1.msra.mxu0 0.0
    %930 = vmatprep.subr.mxu0 0.0
    %931 = vmatpush1.msra.mxu0 0.0
    %932 = vmatprep.subr.mxu0 0.0
    %933 = vmatpush1.msra.mxu0 0.0
    %934 = vmatprep.subr.mxu0 0.0
    %935 = vmatpush1.msra.mxu0 0.0
    %936 = vmatprep.subr.mxu0 0.0
    %937 = vmatpush1.msra.mxu0 0.0
    %938 = vmatprep.subr.mxu0 0.0
    %939 = vmatpush1.msra.mxu0 0.0
    %940 = vmatprep.subr.mxu0 0.0
    %941 = vmatpush1.msra.mxu0 0.0
    %942 = vmatprep.subr.mxu0 0.0
    %943 = vmatpush1.msra.mxu0 0.0
    %944 = vmatprep.mubr.f32.mxu0 0.0
    %945 = vmatmul.mubr.f32.gmra.mrb[0].mxu0 %v875
    %v946 = vpop.f32.mrb[0].mxu0
    %v947 = vadd.f32 0.0, %v946
    %v948 = vpop.f32.mrb[0].mxu0
    %949 = vmatprep.mubr.f32.mxu0 0.0
    %950 = vmatmul.mubr.f32.gmra.mrb[0].mxu0 %v878
    %v951 = vpop.f32.mrb[0].mxu0
    %v952 = vadd.f32 0.0, %v951
    %v953 = vpop.f32.mrb[0].mxu0
    %954 = vdwg.mxu0
    %v956 = vsel %vm744, %v786, 0
    %v959 = vsel %vm744, %v788, 0
    %961 = vmatprep.subr.mxu0 0.0
    %962 = vmatpush1.msra.mxu0 %v394
    %963 = vmatprep.subr.mxu0 0.0
    %964 = vmatpush1.msra.mxu0 %v396
    %965 = vmatprep.subr.mxu0 0.0
    %966 = vmatpush1.msra.mxu0 0.0
    %967 = vmatprep.subr.mxu0 0.0
    %968 = vmatpush1.msra.mxu0 0.0
    %969 = vmatprep.subr.mxu0 0.0
    %970 = vmatpush1.msra.mxu0 0.0
    %971 = vmatprep.subr.mxu0 0.0
    %972 = vmatpush1.msra.mxu0 0.0
    %973 = vmatprep.subr.mxu0 0.0
    %974 = vmatpush1.msra.mxu0 0.0
    %975 = vmatprep.subr.mxu0 0.0
    %976 = vmatpush1.msra.mxu0 0.0
    %977 = vmatprep.subr.mxu0 0.0
    %978 = vmatpush1.msra.mxu0 0.0
    %979 = vmatprep.subr.mxu0 0.0
    %980 = vmatpush1.msra.mxu0 0.0
    %981 = vmatprep.subr.mxu0 0.0
    %982 = vmatpush1.msra.mxu0 0.0
    %983 = vmatprep.subr.mxu0 0.0
    %984 = vmatpush1.msra.mxu0 0.0
    %985 = vmatprep.subr.mxu0 0.0
    %986 = vmatpush1.msra.mxu0 0.0
    %987 = vmatprep.subr.mxu0 0.0
    %988 = vmatpush1.msra.mxu0 0.0
    %989 = vmatprep.subr.mxu0 0.0
    %990 = vmatpush1.msra.mxu0 0.0
    %991 = vmatprep.subr.mxu0 0.0
    %992 = vmatpush1.msra.mxu0 0.0
    %993 = vmatprep.subr.mxu0 0.0
    %994 = vmatpush1.msra.mxu0 0.0
    %995 = vmatprep.subr.mxu0 0.0
    %996 = vmatpush1.msra.mxu0 0.0
    %997 = vmatprep.subr.mxu0 0.0
    %998 = vmatpush1.msra.mxu0 0.0
    %999 = vmatprep.subr.mxu0 0.0
    %1000 = vmatpush1.msra.mxu0 0.0
    %1001 = vmatprep.subr.mxu0 0.0
    %1002 = vmatpush1.msra.mxu0 0.0
    %1003 = vmatprep.subr.mxu0 0.0
    %1004 = vmatpush1.msra.mxu0 0.0
    %1005 = vmatprep.subr.mxu0 0.0
    %1006 = vmatpush1.msra.mxu0 0.0
    %1007 = vmatprep.subr.mxu0 0.0
    %1008 = vmatpush1.msra.mxu0 0.0
    %1009 = vmatprep.subr.mxu0 0.0
    %1010 = vmatpush1.msra.mxu0 0.0
    %1011 = vmatprep.subr.mxu0 0.0
    %1012 = vmatpush1.msra.mxu0 0.0
    %1013 = vmatprep.subr.mxu0 0.0
    %1014 = vmatpush1.msra.mxu0 0.0
    %1015 = vmatprep.subr.mxu0 0.0
    %1016 = vmatpush1.msra.mxu0 0.0
    %1017 = vmatprep.subr.mxu0 0.0
    %1018 = vmatpush1.msra.mxu0 0.0
    %1019 = vmatprep.subr.mxu0 0.0
    %1020 = vmatpush1.msra.mxu0 0.0
    %1021 = vmatprep.subr.mxu0 0.0
    %1022 = vmatpush1.msra.mxu0 0.0
    %1023 = vmatprep.subr.mxu0 0.0
    %1024 = vmatpush1.msra.mxu0 0.0
    %1025 = vmatprep.mubr.f32.mxu0 0.0
    %1026 = vmatmul.mubr.f32.gmra.mrb[0].mxu0 %v956
    %v1027 = vpop.f32.mrb[0].mxu0
    %v1028 = vadd.f32 0.0, %v1027
    %v1029 = vpop.f32.mrb[0].mxu0
    %1030 = vmatprep.mubr.f32.mxu0 0.0
    %1031 = vmatmul.mubr.f32.gmra.mrb[0].mxu0 %v959
    %v1032 = vpop.f32.mrb[0].mxu0
    %v1033 = vadd.f32 0.0, %v1032
    %v1034 = vpop.f32.mrb[0].mxu0
    %1035 = vdwg.mxu0
    %v1037 = vsel %vm744, %v790, 0
    %v1040 = vsel %vm744, %v792, 0
    %1042 = vmatprep.subr.mxu0 0.0
    %1043 = vmatpush1.msra.mxu0 %v400
    %1044 = vmatprep.subr.mxu0 0.0
    %1045 = vmatpush1.msra.mxu0 %v402
    %1046 = vmatprep.subr.mxu0 0.0
    %1047 = vmatpush1.msra.mxu0 0.0
    %1048 = vmatprep.subr.mxu0 0.0
    %1049 = vmatpush1.msra.mxu0 0.0
    %1050 = vmatprep.subr.mxu0 0.0
    %1051 = vmatpush1.msra.mxu0 0.0
    %1052 = vmatprep.subr.mxu0 0.0
    %1053 = vmatpush1.msra.mxu0 0.0
    %1054 = vmatprep.subr.mxu0 0.0
    %1055 = vmatpush1.msra.mxu0 0.0
    %1056 = vmatprep.subr.mxu0 0.0
    %1057 = vmatpush1.msra.mxu0 0.0
    %1058 = vmatprep.subr.mxu0 0.0
    %1059 = vmatpush1.msra.mxu0 0.0
    %1060 = vmatprep.subr.mxu0 0.0
    %1061 = vmatpush1.msra.mxu0 0.0
    %1062 = vmatprep.subr.mxu0 0.0
    %1063 = vmatpush1.msra.mxu0 0.0
    %1064 = vmatprep.subr.mxu0 0.0
    %1065 = vmatpush1.msra.mxu0 0.0
    %1066 = vmatprep.subr.mxu0 0.0
    %1067 = vmatpush1.msra.mxu0 0.0
    %1068 = vmatprep.subr.mxu0 0.0
    %1069 = vmatpush1.msra.mxu0 0.0
    %1070 = vmatprep.subr.mxu0 0.0
    %1071 = vmatpush1.msra.mxu0 0.0
    %1072 = vmatprep.subr.mxu0 0.0
    %1073 = vmatpush1.msra.mxu0 0.0
    %1074 = vmatprep.subr.mxu0 0.0
    %1075 = vmatpush1.msra.mxu0 0.0
    %1076 = vmatprep.subr.mxu0 0.0
    %1077 = vmatpush1.msra.mxu0 0.0
    %1078 = vmatprep.subr.mxu0 0.0
    %1079 = vmatpush1.msra.mxu0 0.0
    %1080 = vmatprep.subr.mxu0 0.0
    %1081 = vmatpush1.msra.mxu0 0.0
    %1082 = vmatprep.subr.mxu0 0.0
    %1083 = vmatpush1.msra.mxu0 0.0
    %1084 = vmatprep.subr.mxu0 0.0
    %1085 = vmatpush1.msra.mxu0 0.0
    %1086 = vmatprep.subr.mxu0 0.0
    %1087 = vmatpush1.msra.mxu0 0.0
    %1088 = vmatprep.subr.mxu0 0.0
    %1089 = vmatpush1.msra.mxu0 0.0
    %1090 = vmatprep.subr.mxu0 0.0
    %1091 = vmatpush1.msra.mxu0 0.0
    %1092 = vmatprep.subr.mxu0 0.0
    %1093 = vmatpush1.msra.mxu0 0.0
    %1094 = vmatprep.subr.mxu0 0.0
    %1095 = vmatpush1.msra.mxu0 0.0
    %1096 = vmatprep.subr.mxu0 0.0
    %1097 = vmatpush1.msra.mxu0 0.0
    %1098 = vmatprep.subr.mxu0 0.0
    %1099 = vmatpush1.msra.mxu0 0.0
    %1100 = vmatprep.subr.mxu0 0.0
    %1101 = vmatpush1.msra.mxu0 0.0
    %1102 = vmatprep.subr.mxu0 0.0
    %1103 = vmatpush1.msra.mxu0 0.0
    %1104 = vmatprep.subr.mxu0 0.0
    %1105 = vmatpush1.msra.mxu0 0.0
    %1106 = vmatprep.mubr.f32.mxu0 0.0
    %1107 = vmatmul.mubr.f32.gmra.mrb[0].mxu0 %v1037
    %v1108 = vpop.f32.mrb[0].mxu0
    %v1109 = vadd.f32 0.0, %v1108
    %v1110 = vpop.f32.mrb[0].mxu0
    %1111 = vmatprep.mubr.f32.mxu0 0.0
    %1112 = vmatmul.mubr.f32.gmra.mrb[0].mxu0 %v1040
    %v1113 = vpop.f32.mrb[0].mxu0
    %v1114 = vadd.f32 0.0, %v1113
    %v1115 = vpop.f32.mrb[0].mxu0
    %1116 = vdwg.mxu0
    %v1117 = vsel %vm744, %v778, 0.0
    %1118 = vadd.xlane.f32.xlu0 %v1117
    %v1119 = vpop.xlane.xlu0 %1118
    %v1120 = vsel %vm744, %v780, 0.0
    %1121 = vadd.xlane.f32.xlu0 %v1120
    %v1122 = vpop.xlane.xlu0 %1121
    %v1123 = vsel %vm744, %v782, 0.0
    %1124 = vadd.xlane.f32.xlu0 %v1123
    %v1125 = vpop.xlane.xlu0 %1124
    %v1126 = vsel %vm744, %v784, 0.0
    %1127 = vadd.xlane.f32.xlu0 %v1126
    %v1128 = vpop.xlane.xlu0 %1127
    %v1129 = vsel %vm744, %v786, 0.0
    %1130 = vadd.xlane.f32.xlu0 %v1129
    %v1131 = vpop.xlane.xlu0 %1130
    %v1132 = vsel %vm744, %v788, 0.0
    %1133 = vadd.xlane.f32.xlu0 %v1132
    %v1134 = vpop.xlane.xlu0 %1133
    %v1135 = vsel %vm744, %v790, 0.0
    %1136 = vadd.xlane.f32.xlu0 %v1135
    %v1137 = vpop.xlane.xlu0 %1136
    %v1138 = vsel %vm744, %v792, 0.0
    %1139 = vadd.xlane.f32.xlu0 %v1138
    %v1140 = vpop.xlane.xlu0 %1139
    %v1141 = vrcp.pop %v1119
    %v1142 = vmul.f32 1.0, %v1141
    %v1143 = vrcp.pop %v1122
    %v1144 = vmul.f32 1.0, %v1143
    %v1145 = vrcp.pop %v1125
    %v1146 = vmul.f32 1.0, %v1145
    %v1147 = vrcp.pop %v1128
    %v1148 = vmul.f32 1.0, %v1147
    %v1149 = vrcp.pop %v1131
    %v1150 = vmul.f32 1.0, %v1149
    %v1151 = vrcp.pop %v1134
    %v1152 = vmul.f32 1.0, %v1151
    %v1153 = vrcp.pop %v1137
    %v1154 = vmul.f32 1.0, %v1153
    %v1155 = vrcp.pop %v1140
    %v1156 = vmul.f32 1.0, %v1155
    %v1157 = vmul.f32 %v866, %v1142
    %v1158 = vmul.f32 %v871, %v1144
    %v1159 = vmul.f32 %v947, %v1146
    %v1160 = vmul.f32 %v952, %v1148
    %v1161 = vmul.f32 %v1028, %v1150
    %v1162 = vmul.f32 %v1033, %v1152
    %v1163 = vmul.f32 %v1109, %v1154
    %v1164 = vmul.f32 %v1114, %v1156
    %v1166 = vsel %vm411, %v1157, 0
    %v1169 = vsel %vm411, %v1158, 0
    %1171 = vmatprep.subr.mxu0 0.0
    %1172 = vmatpush1.msra.mxu0 %v407
    %1173 = vmatprep.subr.mxu0 0.0
    %1174 = vmatpush1.msra.mxu0 0.0
    %1175 = vmatprep.subr.mxu0 0.0
    %1176 = vmatpush1.msra.mxu0 0.0
    %1177 = vmatprep.subr.mxu0 0.0
    %1178 = vmatpush1.msra.mxu0 0.0
    %1179 = vmatprep.subr.mxu0 0.0
    %1180 = vmatpush1.msra.mxu0 0.0
    %1181 = vmatprep.subr.mxu0 0.0
    %1182 = vmatpush1.msra.mxu0 0.0
    %1183 = vmatprep.subr.mxu0 0.0
    %1184 = vmatpush1.msra.mxu0 0.0
    %1185 = vmatprep.subr.mxu0 0.0
    %1186 = vmatpush1.msra.mxu0 0.0
    %1187 = vmatprep.subr.mxu0 0.0
    %1188 = vmatpush1.msra.mxu0 0.0
    %1189 = vmatprep.subr.mxu0 0.0
    %1190 = vmatpush1.msra.mxu0 0.0
    %1191 = vmatprep.subr.mxu0 0.0
    %1192 = vmatpush1.msra.mxu0 0.0
    %1193 = vmatprep.subr.mxu0 0.0
    %1194 = vmatpush1.msra.mxu0 0.0
    %1195 = vmatprep.subr.mxu0 0.0
    %1196 = vmatpush1.msra.mxu0 0.0
    %1197 = vmatprep.subr.mxu0 0.0
    %1198 = vmatpush1.msra.mxu0 0.0
    %1199 = vmatprep.subr.mxu0 0.0
    %1200 = vmatpush1.msra.mxu0 0.0
    %1201 = vmatprep.subr.mxu0 0.0
    %1202 = vmatpush1.msra.mxu0 0.0
    %1203 = vmatprep.subr.mxu0 0.0
    %1204 = vmatpush1.msra.mxu0 0.0
    %1205 = vmatprep.subr.mxu0 0.0
    %1206 = vmatpush1.msra.mxu0 0.0
    %1207 = vmatprep.subr.mxu0 0.0
    %1208 = vmatpush1.msra.mxu0 0.0
    %1209 = vmatprep.subr.mxu0 0.0
    %1210 = vmatpush1.msra.mxu0 0.0
    %1211 = vmatprep.subr.mxu0 0.0
    %1212 = vmatpush1.msra.mxu0 0.0
    %1213 = vmatprep.subr.mxu0 0.0
    %1214 = vmatpush1.msra.mxu0 0.0
    %1215 = vmatprep.subr.mxu0 0.0
    %1216 = vmatpush1.msra.mxu0 0.0
    %1217 = vmatprep.subr.mxu0 0.0
    %1218 = vmatpush1.msra.mxu0 0.0
    %1219 = vmatprep.subr.mxu0 0.0
    %1220 = vmatpush1.msra.mxu0 0.0
    %1221 = vmatprep.subr.mxu0 0.0
    %1222 = vmatpush1.msra.mxu0 0.0
    %1223 = vmatprep.subr.mxu0 0.0
    %1224 = vmatpush1.msra.mxu0 0.0
    %1225 = vmatprep.subr.mxu0 0.0
    %1226 = vmatpush1.msra.mxu0 0.0
    %1227 = vmatprep.subr.mxu0 0.0
    %1228 = vmatpush1.msra.mxu0 0.0
    %1229 = vmatprep.subr.mxu0 0.0
    %1230 = vmatpush1.msra.mxu0 0.0
    %1231 = vmatprep.subr.mxu0 0.0
    %1232 = vmatpush1.msra.mxu0 0.0
    %1233 = vmatprep.subr.mxu0 0.0
    %1234 = vmatpush1.msra.mxu0 0.0
    %1235 = vmatprep.mubr.f32.mxu0 0.0
    %1236 = vmatmul.mubr.f32.gmra.mrb[0].mxu0 %v1166
    %v1237 = vpop.f32.mrb[0].mxu0
    %v1238 = vadd.f32 0.0, %v1237
    %v1239 = vpop.f32.mrb[0].mxu0
    %1240 = vmatprep.mubr.f32.mxu0 0.0
    %1241 = vmatmul.mubr.f32.gmra.mrb[0].mxu0 %v1169
    %v1242 = vpop.f32.mrb[0].mxu0
    %v1243 = vadd.f32 0.0, %v1242
    %v1244 = vpop.f32.mrb[0].mxu0
    %1245 = vdwg.mxu0
    %v1247 = vsel %vm411, %v1159, 0
    %v1250 = vsel %vm411, %v1160, 0
    %1252 = vmatprep.subr.mxu0 0.0
    %1253 = vmatpush1.msra.mxu0 %v408
    %1254 = vmatprep.subr.mxu0 0.0
    %1255 = vmatpush1.msra.mxu0 0.0
    %1256 = vmatprep.subr.mxu0 0.0
    %1257 = vmatpush1.msra.mxu0 0.0
    %1258 = vmatprep.subr.mxu0 0.0
    %1259 = vmatpush1.msra.mxu0 0.0
    %1260 = vmatprep.subr.mxu0 0.0
    %1261 = vmatpush1.msra.mxu0 0.0
    %1262 = vmatprep.subr.mxu0 0.0
    %1263 = vmatpush1.msra.mxu0 0.0
    %1264 = vmatprep.subr.mxu0 0.0
    %1265 = vmatpush1.msra.mxu0 0.0
    %1266 = vmatprep.subr.mxu0 0.0
    %1267 = vmatpush1.msra.mxu0 0.0
    %1268 = vmatprep.subr.mxu0 0.0
    %1269 = vmatpush1.msra.mxu0 0.0
    %1270 = vmatprep.subr.mxu0 0.0
    %1271 = vmatpush1.msra.mxu0 0.0
    %1272 = vmatprep.subr.mxu0 0.0
    %1273 = vmatpush1.msra.mxu0 0.0
    %1274 = vmatprep.subr.mxu0 0.0
    %1275 = vmatpush1.msra.mxu0 0.0
    %1276 = vmatprep.subr.mxu0 0.0
    %1277 = vmatpush1.msra.mxu0 0.0
    %1278 = vmatprep.subr.mxu0 0.0
    %1279 = vmatpush1.msra.mxu0 0.0
    %1280 = vmatprep.subr.mxu0 0.0
    %1281 = vmatpush1.msra.mxu0 0.0
    %1282 = vmatprep.subr.mxu0 0.0
    %1283 = vmatpush1.msra.mxu0 0.0
    %1284 = vmatprep.subr.mxu0 0.0
    %1285 = vmatpush1.msra.mxu0 0.0
    %1286 = vmatprep.subr.mxu0 0.0
    %1287 = vmatpush1.msra.mxu0 0.0
    %1288 = vmatprep.subr.mxu0 0.0
    %1289 = vmatpush1.msra.mxu0 0.0
    %1290 = vmatprep.subr.mxu0 0.0
    %1291 = vmatpush1.msra.mxu0 0.0
    %1292 = vmatprep.subr.mxu0 0.0
    %1293 = vmatpush1.msra.mxu0 0.0
    %1294 = vmatprep.subr.mxu0 0.0
    %1295 = vmatpush1.msra.mxu0 0.0
    %1296 = vmatprep.subr.mxu0 0.0
    %1297 = vmatpush1.msra.mxu0 0.0
    %1298 = vmatprep.subr.mxu0 0.0
    %1299 = vmatpush1.msra.mxu0 0.0
    %1300 = vmatprep.subr.mxu0 0.0
    %1301 = vmatpush1.msra.mxu0 0.0
    %1302 = vmatprep.subr.mxu0 0.0
    %1303 = vmatpush1.msra.mxu0 0.0
    %1304 = vmatprep.subr.mxu0 0.0
    %1305 = vmatpush1.msra.mxu0 0.0
    %1306 = vmatprep.subr.mxu0 0.0
    %1307 = vmatpush1.msra.mxu0 0.0
    %1308 = vmatprep.subr.mxu0 0.0
    %1309 = vmatpush1.msra.mxu0 0.0
    %1310 = vmatprep.subr.mxu0 0.0
    %1311 = vmatpush1.msra.mxu0 0.0
    %1312 = vmatprep.subr.mxu0 0.0
    %1313 = vmatpush1.msra.mxu0 0.0
    %1314 = vmatprep.subr.mxu0 0.0
    %1315 = vmatpush1.msra.mxu0 0.0
    %1316 = vmatprep.mubr.f32.mxu0 0.0
    %1317 = vmatmul.mubr.f32.gmra.mrb[0].mxu0 %v1247
    %v1318 = vpop.f32.mrb[0].mxu0
    %v1319 = vadd.f32 0.0, %v1318
    %v1320 = vpop.f32.mrb[0].mxu0
    %1321 = vmatprep.mubr.f32.mxu0 0.0
    %1322 = vmatmul.mubr.f32.gmra.mrb[0].mxu0 %v1250
    %v1323 = vpop.f32.mrb[0].mxu0
    %v1324 = vadd.f32 0.0, %v1323
    %v1325 = vpop.f32.mrb[0].mxu0
    %1326 = vdwg.mxu0
    %v1328 = vsel %vm411, %v1161, 0
    %v1331 = vsel %vm411, %v1162, 0
    %1333 = vmatprep.subr.mxu0 0.0
    %1334 = vmatpush1.msra.mxu0 %v409
    %1335 = vmatprep.subr.mxu0 0.0
    %1336 = vmatpush1.msra.mxu0 0.0
    %1337 = vmatprep.subr.mxu0 0.0
    %1338 = vmatpush1.msra.mxu0 0.0
    %1339 = vmatprep.subr.mxu0 0.0
    %1340 = vmatpush1.msra.mxu0 0.0
    %1341 = vmatprep.subr.mxu0 0.0
    %1342 = vmatpush1.msra.mxu0 0.0
    %1343 = vmatprep.subr.mxu0 0.0
    %1344 = vmatpush1.msra.mxu0 0.0
    %1345 = vmatprep.subr.mxu0 0.0
    %1346 = vmatpush1.msra.mxu0 0.0
    %1347 = vmatprep.subr.mxu0 0.0
    %1348 = vmatpush1.msra.mxu0 0.0
    %1349 = vmatprep.subr.mxu0 0.0
    %1350 = vmatpush1.msra.mxu0 0.0
    %1351 = vmatprep.subr.mxu0 0.0
    %1352 = vmatpush1.msra.mxu0 0.0
    %1353 = vmatprep.subr.mxu0 0.0
    %1354 = vmatpush1.msra.mxu0 0.0
    %1355 = vmatprep.subr.mxu0 0.0
    %1356 = vmatpush1.msra.mxu0 0.0
    %1357 = vmatprep.subr.mxu0 0.0
    %1358 = vmatpush1.msra.mxu0 0.0
    %1359 = vmatprep.subr.mxu0 0.0
    %1360 = vmatpush1.msra.mxu0 0.0
    %1361 = vmatprep.subr.mxu0 0.0
    %1362 = vmatpush1.msra.mxu0 0.0
    %1363 = vmatprep.subr.mxu0 0.0
    %1364 = vmatpush1.msra.mxu0 0.0
    %1365 = vmatprep.subr.mxu0 0.0
    %1366 = vmatpush1.msra.mxu0 0.0
    %1367 = vmatprep.subr.mxu0 0.0
    %1368 = vmatpush1.msra.mxu0 0.0
    %1369 = vmatprep.subr.mxu0 0.0
    %1370 = vmatpush1.msra.mxu0 0.0
    %1371 = vmatprep.subr.mxu0 0.0
    %1372 = vmatpush1.msra.mxu0 0.0
    %1373 = vmatprep.subr.mxu0 0.0
    %1374 = vmatpush1.msra.mxu0 0.0
    %1375 = vmatprep.subr.mxu0 0.0
    %1376 = vmatpush1.msra.mxu0 0.0
    %1377 = vmatprep.subr.mxu0 0.0
    %1378 = vmatpush1.msra.mxu0 0.0
    %1379 = vmatprep.subr.mxu0 0.0
    %1380 = vmatpush1.msra.mxu0 0.0
    %1381 = vmatprep.subr.mxu0 0.0
    %1382 = vmatpush1.msra.mxu0 0.0
    %1383 = vmatprep.subr.mxu0 0.0
    %1384 = vmatpush1.msra.mxu0 0.0
    %1385 = vmatprep.subr.mxu0 0.0
    %1386 = vmatpush1.msra.mxu0 0.0
    %1387 = vmatprep.subr.mxu0 0.0
    %1388 = vmatpush1.msra.mxu0 0.0
    %1389 = vmatprep.subr.mxu0 0.0
    %1390 = vmatpush1.msra.mxu0 0.0
    %1391 = vmatprep.subr.mxu0 0.0
    %1392 = vmatpush1.msra.mxu0 0.0
    %1393 = vmatprep.subr.mxu0 0.0
    %1394 = vmatpush1.msra.mxu0 0.0
    %1395 = vmatprep.subr.mxu0 0.0
    %1396 = vmatpush1.msra.mxu0 0.0
    %1397 = vmatprep.mubr.f32.mxu0 0.0
    %1398 = vmatmul.mubr.f32.gmra.mrb[0].mxu0 %v1328
    %v1399 = vpop.f32.mrb[0].mxu0
    %v1400 = vadd.f32 0.0, %v1399
    %v1401 = vpop.f32.mrb[0].mxu0
    %1402 = vmatprep.mubr.f32.mxu0 0.0
    %1403 = vmatmul.mubr.f32.gmra.mrb[0].mxu0 %v1331
    %v1404 = vpop.f32.mrb[0].mxu0
    %v1405 = vadd.f32 0.0, %v1404
    %v1406 = vpop.f32.mrb[0].mxu0
    %1407 = vdwg.mxu0
    %v1409 = vsel %vm411, %v1163, 0
    %v1412 = vsel %vm411, %v1164, 0
    %1414 = vmatprep.subr.mxu0 0.0
    %1415 = vmatpush1.msra.mxu0 %v410
    %1416 = vmatprep.subr.mxu0 0.0
    %1417 = vmatpush1.msra.mxu0 0.0
    %1418 = vmatprep.subr.mxu0 0.0
    %1419 = vmatpush1.msra.mxu0 0.0
    %1420 = vmatprep.subr.mxu0 0.0
    %1421 = vmatpush1.msra.mxu0 0.0
    %1422 = vmatprep.subr.mxu0 0.0
    %1423 = vmatpush1.msra.mxu0 0.0
    %1424 = vmatprep.subr.mxu0 0.0
    %1425 = vmatpush1.msra.mxu0 0.0
    %1426 = vmatprep.subr.mxu0 0.0
    %1427 = vmatpush1.msra.mxu0 0.0
    %1428 = vmatprep.subr.mxu0 0.0
    %1429 = vmatpush1.msra.mxu0 0.0
    %1430 = vmatprep.subr.mxu0 0.0
    %1431 = vmatpush1.msra.mxu0 0.0
    %1432 = vmatprep.subr.mxu0 0.0
    %1433 = vmatpush1.msra.mxu0 0.0
    %1434 = vmatprep.subr.mxu0 0.0
    %1435 = vmatpush1.msra.mxu0 0.0
    %1436 = vmatprep.subr.mxu0 0.0
    %1437 = vmatpush1.msra.mxu0 0.0
    %1438 = vmatprep.subr.mxu0 0.0
    %1439 = vmatpush1.msra.mxu0 0.0
    %1440 = vmatprep.subr.mxu0 0.0
    %1441 = vmatpush1.msra.mxu0 0.0
    %1442 = vmatprep.subr.mxu0 0.0
    %1443 = vmatpush1.msra.mxu0 0.0
    %1444 = vmatprep.subr.mxu0 0.0
    %1445 = vmatpush1.msra.mxu0 0.0
    %1446 = vmatprep.subr.mxu0 0.0
    %1447 = vmatpush1.msra.mxu0 0.0
    %1448 = vmatprep.subr.mxu0 0.0
    %1449 = vmatpush1.msra.mxu0 0.0
    %1450 = vmatprep.subr.mxu0 0.0
    %1451 = vmatpush1.msra.mxu0 0.0
    %1452 = vmatprep.subr.mxu0 0.0
    %1453 = vmatpush1.msra.mxu0 0.0
    %1454 = vmatprep.subr.mxu0 0.0
    %1455 = vmatpush1.msra.mxu0 0.0
    %1456 = vmatprep.subr.mxu0 0.0
    %1457 = vmatpush1.msra.mxu0 0.0
    %1458 = vmatprep.subr.mxu0 0.0
    %1459 = vmatpush1.msra.mxu0 0.0
    %1460 = vmatprep.subr.mxu0 0.0
    %1461 = vmatpush1.msra.mxu0 0.0
    %1462 = vmatprep.subr.mxu0 0.0
    %1463 = vmatpush1.msra.mxu0 0.0
    %1464 = vmatprep.subr.mxu0 0.0
    %1465 = vmatpush1.msra.mxu0 0.0
    %1466 = vmatprep.subr.mxu0 0.0
    %1467 = vmatpush1.msra.mxu0 0.0
    %1468 = vmatprep.subr.mxu0 0.0
    %1469 = vmatpush1.msra.mxu0 0.0
    %1470 = vmatprep.subr.mxu0 0.0
    %1471 = vmatpush1.msra.mxu0 0.0
    %1472 = vmatprep.subr.mxu0 0.0
    %1473 = vmatpush1.msra.mxu0 0.0
    %1474 = vmatprep.subr.mxu0 0.0
    %1475 = vmatpush1.msra.mxu0 0.0
    %1476 = vmatprep.subr.mxu0 0.0
    %1477 = vmatpush1.msra.mxu0 0.0
    %1478 = vmatprep.mubr.f32.mxu0 0.0
    %1479 = vmatmul.mubr.f32.gmra.mrb[0].mxu0 %v1409
    %v1480 = vpop.f32.mrb[0].mxu0
    %v1481 = vadd.f32 0.0, %v1480
    %v1482 = vpop.f32.mrb[0].mxu0
    %1483 = vmatprep.mubr.f32.mxu0 0.0
    %1484 = vmatmul.mubr.f32.gmra.mrb[0].mxu0 %v1412
    %v1485 = vpop.f32.mrb[0].mxu0
    %v1486 = vadd.f32 0.0, %v1485
    %v1487 = vpop.f32.mrb[0].mxu0
    %1488 = vdwg.mxu0
    %v1489 = vadd.f32 %v1238, %v1319
    %v1490 = vadd.f32 %v1243, %v1324
    %v1491 = vadd.f32 %v1489, %v1400
    %v1492 = vadd.f32 %v1490, %v1405
    %v1493 = vadd.f32 %v1491, %v1481
    %v1494 = vadd.f32 %v1492, %v1486
    %v1495 = vlaneseq
    %v1496 = vshrl.u32 %v1495, 7
    %v1497 = vsub.s32 3, %v1496
    %v1498 = vrot.slane %v137, %v1497
    %v1499 = vadd.f32 %v1493, %v1498
    %v1500 = vadd.f32 %v1494, %v1498
    %v1501 = vadd.f32 %v1499, %v141
    %v1502 = vadd.f32 %v1500, %v142
    %v1503 = vsel %vm147, %v1501, 0.0
    %1504 = vadd.xlane.f32.xlu0 %v1503
    %v1505 = vpop.xlane.xlu0 %1504
    %v1506 = vsel %vm147, %v1502, 0.0
    %1507 = vadd.xlane.f32.xlu0 %v1506
    %v1508 = vpop.xlane.xlu0 %1507
    %v1509 = vmul.f32 %v1505, %v154
    %v1510 = vmul.f32 %v1508, %v154
    %v1511 = vsub.f32 %v1501, %v1509
    %v1512 = vsub.f32 %v1502, %v1510
    %v1513 = vmul.f32 %v1511, %v1511
    %v1514 = vmul.f32 %v1512, %v1512
    %v1515 = vsel %vm147, %v1513, 0.0
    %1516 = vadd.xlane.f32.xlu0 %v1515
    %v1517 = vpop.xlane.xlu0 %1516
    %v1518 = vsel %vm147, %v1514, 0.0
    %1519 = vadd.xlane.f32.xlu0 %v1518
    %v1520 = vpop.xlane.xlu0 %1519
    %v1521 = vmul.f32 %v1517, %v154
    %v1522 = vmul.f32 %v1520, %v154
    %v1523 = vadd.f32 %v1521, 1e-12
    %v1524 = vadd.f32 %v1522, 1e-12
    %v1525 = vrsqrt.pop %v1523
    %v1526 = vrsqrt.pop %v1524
    %v1527 = vmul.f32 %v1511, %v1525
    %v1528 = vmul.f32 %v1512, %v1526
    %v1529 = vlaneseq
    %v1530 = vshrl.u32 %v1529, 7
    %v1531 = vsub.s32 1, %v1530
    %v1532 = vrot.slane %v140, %v1531
    %v1533 = vmul.f32 %v1527, %v1532
    %v1534 = vmul.f32 %v1528, %v1532
    %v1535 = vlaneseq
    %v1536 = vshrl.u32 %v1535, 7
    %v1537 = vsub.s32 2, %v1536
    %v1538 = vrot.slane %v140, %v1537
    %v1539 = vadd.f32 %v1533, %v1538
    %v1540 = vadd.f32 %v1534, %v1538
    %v1541 = vlaneseq
    %v1542 = vshrl.u32 %v1541, 7
    %v1543 = vsub.s32 1, %v1542
    %v1544 = vrot.slane %v137, %v1543
    %v1546 = vsel %vm147, %v1539, 0
    %v1549 = vsel %vm147, %v1540, 0
    %1551 = vmatprep.subr.mxu0 0.0
    %1552 = vmatpush1.msra.mxu0 %v104
    %1553 = vmatprep.subr.mxu0 0.0
    %1554 = vmatpush1.msra.mxu0 %v110
    %1555 = vmatprep.subr.mxu0 0.0
    %1556 = vmatpush1.msra.mxu0 %v116
    %1557 = vmatprep.subr.mxu0 0.0
    %1558 = vmatpush1.msra.mxu0 %v122
    %1559 = vmatprep.subr.mxu0 0.0
    %1560 = vmatpush1.msra.mxu0 0.0
    %1561 = vmatprep.subr.mxu0 0.0
    %1562 = vmatpush1.msra.mxu0 0.0
    %1563 = vmatprep.subr.mxu0 0.0
    %1564 = vmatpush1.msra.mxu0 0.0
    %1565 = vmatprep.subr.mxu0 0.0
    %1566 = vmatpush1.msra.mxu0 0.0
    %1567 = vmatprep.subr.mxu0 0.0
    %1568 = vmatpush1.msra.mxu0 0.0
    %1569 = vmatprep.subr.mxu0 0.0
    %1570 = vmatpush1.msra.mxu0 0.0
    %1571 = vmatprep.subr.mxu0 0.0
    %1572 = vmatpush1.msra.mxu0 0.0
    %1573 = vmatprep.subr.mxu0 0.0
    %1574 = vmatpush1.msra.mxu0 0.0
    %1575 = vmatprep.subr.mxu0 0.0
    %1576 = vmatpush1.msra.mxu0 0.0
    %1577 = vmatprep.subr.mxu0 0.0
    %1578 = vmatpush1.msra.mxu0 0.0
    %1579 = vmatprep.subr.mxu0 0.0
    %1580 = vmatpush1.msra.mxu0 0.0
    %1581 = vmatprep.subr.mxu0 0.0
    %1582 = vmatpush1.msra.mxu0 0.0
    %1583 = vmatprep.subr.mxu0 0.0
    %1584 = vmatpush1.msra.mxu0 0.0
    %1585 = vmatprep.subr.mxu0 0.0
    %1586 = vmatpush1.msra.mxu0 0.0
    %1587 = vmatprep.subr.mxu0 0.0
    %1588 = vmatpush1.msra.mxu0 0.0
    %1589 = vmatprep.subr.mxu0 0.0
    %1590 = vmatpush1.msra.mxu0 0.0
    %1591 = vmatprep.subr.mxu0 0.0
    %1592 = vmatpush1.msra.mxu0 0.0
    %1593 = vmatprep.subr.mxu0 0.0
    %1594 = vmatpush1.msra.mxu0 0.0
    %1595 = vmatprep.subr.mxu0 0.0
    %1596 = vmatpush1.msra.mxu0 0.0
    %1597 = vmatprep.subr.mxu0 0.0
    %1598 = vmatpush1.msra.mxu0 0.0
    %1599 = vmatprep.subr.mxu0 0.0
    %1600 = vmatpush1.msra.mxu0 0.0
    %1601 = vmatprep.subr.mxu0 0.0
    %1602 = vmatpush1.msra.mxu0 0.0
    %1603 = vmatprep.subr.mxu0 0.0
    %1604 = vmatpush1.msra.mxu0 0.0
    %1605 = vmatprep.subr.mxu0 0.0
    %1606 = vmatpush1.msra.mxu0 0.0
    %1607 = vmatprep.subr.mxu0 0.0
    %1608 = vmatpush1.msra.mxu0 0.0
    %1609 = vmatprep.subr.mxu0 0.0
    %1610 = vmatpush1.msra.mxu0 0.0
    %1611 = vmatprep.subr.mxu0 0.0
    %1612 = vmatpush1.msra.mxu0 0.0
    %1613 = vmatprep.subr.mxu0 0.0
    %1614 = vmatpush1.msra.mxu0 0.0
    %1615 = vmatprep.mubr.f32.mxu0 0.0
    %1616 = vmatmul.mubr.f32.gmra.mrb[0].mxu0 %v1546
    %v1617 = vpop.f32.mrb[0].mxu0
    %v1618 = vadd.f32 %v1544, %v1617
    %v1619 = vpop.f32.mrb[0].mxu0
    %1620 = vmatprep.mubr.f32.mxu0 0.0
    %1621 = vmatmul.mubr.f32.gmra.mrb[0].mxu0 %v1549
    %v1622 = vpop.f32.mrb[0].mxu0
    %v1623 = vadd.f32 %v1544, %v1622
    %v1624 = vpop.f32.mrb[0].mxu0
    %1625 = vdwg.mxu0
    %v1626 = vlaneseq
    %v1627 = vshrl.u32 %v1626, 7
    %v1628 = vsub.s32 2, %v1627
    %v1629 = vrot.slane %v137, %v1628
    %v1630 = vlaneseq
    %v1631 = vshrl.u32 %v1630, 7
    %v1632 = vsub.s32 2, %v1631
    %v1633 = vrot.slane %v138, %v1632
    %v1635 = vsel %vm147, %v143, 0
    %v1638 = vsel %vm147, %v144, 0
    %v1641 = vsel %vm147, %v145, 0
    %v1644 = vsel %vm147, %v146, 0
    %1646 = vmatprep.subr.mxu0 %v106
    %1647 = vmatpush1.msra.mxu0 %v105
    %1648 = vmatprep.subr.mxu0 %v112
    %1649 = vmatpush1.msra.mxu0 %v111
    %1650 = vmatprep.subr.mxu0 %v118
    %1651 = vmatpush1.msra.mxu0 %v117
    %1652 = vmatprep.subr.mxu0 %v124
    %1653 = vmatpush1.msra.mxu0 %v123
    %1654 = vmatprep.subr.mxu0 0.0
    %1655 = vmatpush1.msra.mxu0 0.0
    %1656 = vmatprep.subr.mxu0 0.0
    %1657 = vmatpush1.msra.mxu0 0.0
    %1658 = vmatprep.subr.mxu0 0.0
    %1659 = vmatpush1.msra.mxu0 0.0
    %1660 = vmatprep.subr.mxu0 0.0
    %1661 = vmatpush1.msra.mxu0 0.0
    %1662 = vmatprep.subr.mxu0 0.0
    %1663 = vmatpush1.msra.mxu0 0.0
    %1664 = vmatprep.subr.mxu0 0.0
    %1665 = vmatpush1.msra.mxu0 0.0
    %1666 = vmatprep.subr.mxu0 0.0
    %1667 = vmatpush1.msra.mxu0 0.0
    %1668 = vmatprep.subr.mxu0 0.0
    %1669 = vmatpush1.msra.mxu0 0.0
    %1670 = vmatprep.subr.mxu0 0.0
    %1671 = vmatpush1.msra.mxu0 0.0
    %1672 = vmatprep.subr.mxu0 0.0
    %1673 = vmatpush1.msra.mxu0 0.0
    %1674 = vmatprep.subr.mxu0 0.0
    %1675 = vmatpush1.msra.mxu0 0.0
    %1676 = vmatprep.subr.mxu0 0.0
    %1677 = vmatpush1.msra.mxu0 0.0
    %1678 = vmatprep.subr.mxu0 0.0
    %1679 = vmatpush1.msra.mxu0 0.0
    %1680 = vmatprep.subr.mxu0 0.0
    %1681 = vmatpush1.msra.mxu0 0.0
    %1682 = vmatprep.subr.mxu0 0.0
    %1683 = vmatpush1.msra.mxu0 0.0
    %1684 = vmatprep.subr.mxu0 0.0
    %1685 = vmatpush1.msra.mxu0 0.0
    %1686 = vmatprep.subr.mxu0 0.0
    %1687 = vmatpush1.msra.mxu0 0.0
    %1688 = vmatprep.subr.mxu0 0.0
    %1689 = vmatpush1.msra.mxu0 0.0
    %1690 = vmatprep.subr.mxu0 0.0
    %1691 = vmatpush1.msra.mxu0 0.0
    %1692 = vmatprep.subr.mxu0 0.0
    %1693 = vmatpush1.msra.mxu0 0.0
    %1694 = vmatprep.subr.mxu0 0.0
    %1695 = vmatpush1.msra.mxu0 0.0
    %1696 = vmatprep.subr.mxu0 0.0
    %1697 = vmatpush1.msra.mxu0 0.0
    %1698 = vmatprep.subr.mxu0 0.0
    %1699 = vmatpush1.msra.mxu0 0.0
    %1700 = vmatprep.subr.mxu0 0.0
    %1701 = vmatpush1.msra.mxu0 0.0
    %1702 = vmatprep.subr.mxu0 0.0
    %1703 = vmatpush1.msra.mxu0 0.0
    %1704 = vmatprep.subr.mxu0 0.0
    %1705 = vmatpush1.msra.mxu0 0.0
    %1706 = vmatprep.subr.mxu0 0.0
    %1707 = vmatpush1.msra.mxu0 0.0
    %1708 = vmatprep.subr.mxu0 0.0
    %1709 = vmatpush1.msra.mxu0 0.0
    %1710 = vmatprep.mubr.f32.mxu0 0.0
    %1711 = vmatmul.mubr.f32.gmra.mrb[0].mxu0 %v1635
    %v1712 = vpop.f32.mrb[0].mxu0
    %v1713 = vadd.f32 %v1629, %v1712
    %v1714 = vpop.f32.mrb[0].mxu0
    %v1715 = vadd.f32 %v1633, %v1714
    %1716 = vmatprep.mubr.f32.mxu0 0.0
    %1717 = vmatmul.mubr.f32.gmra.mrb[0].mxu0 %v1638
    %v1718 = vpop.f32.mrb[0].mxu0
    %v1719 = vadd.f32 %v1629, %v1718
    %v1720 = vpop.f32.mrb[0].mxu0
    %v1721 = vadd.f32 %v1633, %v1720
    %1722 = vmatprep.mubr.f32.mxu0 0.0
    %1723 = vmatmul.mubr.f32.gmra.mrb[0].mxu0 %v1641
    %v1724 = vpop.f32.mrb[0].mxu0
    %v1725 = vadd.f32 %v1629, %v1724
    %v1726 = vpop.f32.mrb[0].mxu0
    %v1727 = vadd.f32 %v1633, %v1726
    %1728 = vmatprep.mubr.f32.mxu0 0.0
    %1729 = vmatmul.mubr.f32.gmra.mrb[0].mxu0 %v1644
    %v1730 = vpop.f32.mrb[0].mxu0
    %v1731 = vadd.f32 %v1629, %v1730
    %v1732 = vpop.f32.mrb[0].mxu0
    %v1733 = vadd.f32 %v1633, %v1732
    %1734 = vdwg.mxu0
    %1737 = vrot.lane.b32.xlu0 %v1618, 120
    %v1738 = vpop.permute.xlu0 %1737
    %1739 = vrot.lane.b32.xlu0 %v1623, 120
    %v1740 = vpop.permute.xlu0 %1739
    %1741 = vrot.lane.b32.xlu0 %v1618, 112
    %v1742 = vpop.permute.xlu0 %1741
    %1743 = vrot.lane.b32.xlu0 %v1623, 112
    %v1744 = vpop.permute.xlu0 %1743
    %1745 = vrot.lane.b32.xlu0 %v1618, 104
    %v1746 = vpop.permute.xlu0 %1745
    %1747 = vrot.lane.b32.xlu0 %v1623, 104
    %v1748 = vpop.permute.xlu0 %1747
    %1753 = vrot.lane.b32.xlu0 %v1713, 120
    %v1754 = vpop.permute.xlu0 %1753
    %1755 = vrot.lane.b32.xlu0 %v1719, 120
    %v1756 = vpop.permute.xlu0 %1755
    %1757 = vrot.lane.b32.xlu0 %v1725, 120
    %v1758 = vpop.permute.xlu0 %1757
    %1759 = vrot.lane.b32.xlu0 %v1731, 120
    %v1760 = vpop.permute.xlu0 %1759
    %1761 = vrot.lane.b32.xlu0 %v1713, 112
    %v1762 = vpop.permute.xlu0 %1761
    %1763 = vrot.lane.b32.xlu0 %v1719, 112
    %v1764 = vpop.permute.xlu0 %1763
    %1765 = vrot.lane.b32.xlu0 %v1725, 112
    %v1766 = vpop.permute.xlu0 %1765
    %1767 = vrot.lane.b32.xlu0 %v1731, 112
    %v1768 = vpop.permute.xlu0 %1767
    %1769 = vrot.lane.b32.xlu0 %v1713, 104
    %v1770 = vpop.permute.xlu0 %1769
    %1771 = vrot.lane.b32.xlu0 %v1719, 104
    %v1772 = vpop.permute.xlu0 %1771
    %1773 = vrot.lane.b32.xlu0 %v1725, 104
    %v1774 = vpop.permute.xlu0 %1773
    %1775 = vrot.lane.b32.xlu0 %v1731, 104
    %v1776 = vpop.permute.xlu0 %1775
    %1781 = vrot.lane.b32.xlu0 %v1715, 120
    %v1782 = vpop.permute.xlu0 %1781
    %1783 = vrot.lane.b32.xlu0 %v1721, 120
    %v1784 = vpop.permute.xlu0 %1783
    %1785 = vrot.lane.b32.xlu0 %v1727, 120
    %v1786 = vpop.permute.xlu0 %1785
    %1787 = vrot.lane.b32.xlu0 %v1733, 120
    %v1788 = vpop.permute.xlu0 %1787
    %1793 = vrot.lane.b32.xlu0 %v1715, 112
    %v1794 = vpop.permute.xlu0 %1793
    %1795 = vrot.lane.b32.xlu0 %v1721, 112
    %v1796 = vpop.permute.xlu0 %1795
    %1797 = vrot.lane.b32.xlu0 %v1727, 112
    %v1798 = vpop.permute.xlu0 %1797
    %1799 = vrot.lane.b32.xlu0 %v1733, 112
    %v1800 = vpop.permute.xlu0 %1799
    %1805 = vrot.lane.b32.xlu0 %v1715, 104
    %v1806 = vpop.permute.xlu0 %1805
    %1807 = vrot.lane.b32.xlu0 %v1721, 104
    %v1808 = vpop.permute.xlu0 %1807
    %1809 = vrot.lane.b32.xlu0 %v1727, 104
    %v1810 = vpop.permute.xlu0 %1809
    %1811 = vrot.lane.b32.xlu0 %v1733, 104
    %v1812 = vpop.permute.xlu0 %1811
    %v1817 = vld [vmem:[%s3] sm:$0xff]
    %v1818 = vld [vmem:[%s3 + $0x8] sm:$0xff]
    %v1819 = vld [vmem:[#allocation8] sm:$0xff]
    %v1820 = vld [vmem:[#allocation8 + $0x8] sm:$0xff]
    %v1821 = vld [vmem:[#allocation8 + $0x10] sm:$0xff]
    %v1822 = vld [vmem:[#allocation8 + $0x18] sm:$0xff]
    %v1823 = vsel %vm411, %v1618, 0
    %v1825 = vsel %vm411, %v1623, 0
    %v1827 = vsel %vm411, %v1713, 0
    %v1829 = vsel %vm411, %v1719, 0
    %v1831 = vsel %vm411, %v1725, 0
    %v1833 = vsel %vm411, %v1731, 0
    %1835 = vmatprep.subr.mxu0 0.0
    %1836 = vmatpush1.xpose.msra.mxu0 %v1827
    %1837 = vmatprep.subr.mxu0 0.0
    %1838 = vmatpush1.xpose.msra.mxu0 %v1829
    %1839 = vmatprep.subr.mxu0 0.0
    %1840 = vmatpush1.xpose.msra.mxu0 %v1831
    %1841 = vmatprep.subr.mxu0 0.0
    %1842 = vmatpush1.xpose.msra.mxu0 %v1833
    %1843 = vmatprep.subr.mxu0 0.0
    %1844 = vmatpush1.xpose.msra.mxu0 0.0
    %1845 = vmatprep.subr.mxu0 0.0
    %1846 = vmatpush1.xpose.msra.mxu0 0.0
    %1847 = vmatprep.subr.mxu0 0.0
    %1848 = vmatpush1.xpose.msra.mxu0 0.0
    %1849 = vmatprep.subr.mxu0 0.0
    %1850 = vmatpush1.xpose.msra.mxu0 0.0
    %1851 = vmatprep.subr.mxu0 0.0
    %1852 = vmatpush1.xpose.msra.mxu0 0.0
    %1853 = vmatprep.subr.mxu0 0.0
    %1854 = vmatpush1.xpose.msra.mxu0 0.0
    %1855 = vmatprep.subr.mxu0 0.0
    %1856 = vmatpush1.xpose.msra.mxu0 0.0
    %1857 = vmatprep.subr.mxu0 0.0
    %1858 = vmatpush1.xpose.msra.mxu0 0.0
    %1859 = vmatprep.subr.mxu0 0.0
    %1860 = vmatpush1.xpose.msra.mxu0 0.0
    %1861 = vmatprep.subr.mxu0 0.0
    %1862 = vmatpush1.xpose.msra.mxu0 0.0
    %1863 = vmatprep.subr.mxu0 0.0
    %1864 = vmatpush1.xpose.msra.mxu0 0.0
    %1865 = vmatprep.subr.mxu0 0.0
    %1866 = vmatpush1.xpose.msra.mxu0 0.0
    %1867 = vmatprep.subr.mxu0 0.0
    %1868 = vmatpush1.xpose.msra.mxu0 0.0
    %1869 = vmatprep.subr.mxu0 0.0
    %1870 = vmatpush1.xpose.msra.mxu0 0.0
    %1871 = vmatprep.subr.mxu0 0.0
    %1872 = vmatpush1.xpose.msra.mxu0 0.0
    %1873 = vmatprep.subr.mxu0 0.0
    %1874 = vmatpush1.xpose.msra.mxu0 0.0
    %1875 = vmatprep.subr.mxu0 0.0
    %1876 = vmatpush1.xpose.msra.mxu0 0.0
    %1877 = vmatprep.subr.mxu0 0.0
    %1878 = vmatpush1.xpose.msra.mxu0 0.0
    %1879 = vmatprep.subr.mxu0 0.0
    %1880 = vmatpush1.xpose.msra.mxu0 0.0
    %1881 = vmatprep.subr.mxu0 0.0
    %1882 = vmatpush1.xpose.msra.mxu0 0.0
    %1883 = vmatprep.subr.mxu0 0.0
    %1884 = vmatpush1.xpose.msra.mxu0 0.0
    %1885 = vmatprep.subr.mxu0 0.0
    %1886 = vmatpush1.xpose.msra.mxu0 0.0
    %1887 = vmatprep.subr.mxu0 0.0
    %1888 = vmatpush1.xpose.msra.mxu0 0.0
    %1889 = vmatprep.subr.mxu0 0.0
    %1890 = vmatpush1.xpose.msra.mxu0 0.0
    %1891 = vmatprep.subr.mxu0 0.0
    %1892 = vmatpush1.xpose.msra.mxu0 0.0
    %1893 = vmatprep.subr.mxu0 0.0
    %1894 = vmatpush1.xpose.msra.mxu0 0.0
    %1895 = vmatprep.subr.mxu0 0.0
    %1896 = vmatpush1.xpose.msra.mxu0 0.0
    %1897 = vmatprep.subr.mxu0 0.0
    %1898 = vmatpush1.xpose.msra.mxu0 0.0
    %1899 = vmatprep.mubr.f32.mxu0 0.0
    %1900 = vmatmul.mubr.f32.gmra.mrb[0].mxu0 %v1823
    %v1901 = vpop.f32.mrb[0].mxu0
    %v1902 = vadd.f32 %v1817, %v1901
    %v1903 = vpop.f32.mrb[0].mxu0
    %1904 = vmatprep.mubr.f32.mxu0 0.0
    %1905 = vmatmul.mubr.f32.gmra.mrb[0].mxu0 %v1825
    %v1906 = vpop.f32.mrb[0].mxu0
    %v1907 = vadd.f32 %v1818, %v1906
    %v1908 = vpop.f32.mrb[0].mxu0
    %1909 = vdwg.mxu0
    %v1910 = vsel %vm411, %v1738, 0
    %v1912 = vsel %vm411, %v1740, 0
    %v1914 = vsel %vm411, %v1754, 0
    %v1916 = vsel %vm411, %v1756, 0
    %v1918 = vsel %vm411, %v1758, 0
    %v1920 = vsel %vm411, %v1760, 0
    %1922 = vmatprep.subr.mxu0 0.0
    %1923 = vmatpush1.xpose.msra.mxu0 %v1914
    %1924 = vmatprep.subr.mxu0 0.0
    %1925 = vmatpush1.xpose.msra.mxu0 %v1916
    %1926 = vmatprep.subr.mxu0 0.0
    %1927 = vmatpush1.xpose.msra.mxu0 %v1918
    %1928 = vmatprep.subr.mxu0 0.0
    %1929 = vmatpush1.xpose.msra.mxu0 %v1920
    %1930 = vmatprep.subr.mxu0 0.0
    %1931 = vmatpush1.xpose.msra.mxu0 0.0
    %1932 = vmatprep.subr.mxu0 0.0
    %1933 = vmatpush1.xpose.msra.mxu0 0.0
    %1934 = vmatprep.subr.mxu0 0.0
    %1935 = vmatpush1.xpose.msra.mxu0 0.0
    %1936 = vmatprep.subr.mxu0 0.0
    %1937 = vmatpush1.xpose.msra.mxu0 0.0
    %1938 = vmatprep.subr.mxu0 0.0
    %1939 = vmatpush1.xpose.msra.mxu0 0.0
    %1940 = vmatprep.subr.mxu0 0.0
    %1941 = vmatpush1.xpose.msra.mxu0 0.0
    %1942 = vmatprep.subr.mxu0 0.0
    %1943 = vmatpush1.xpose.msra.mxu0 0.0
    %1944 = vmatprep.subr.mxu0 0.0
    %1945 = vmatpush1.xpose.msra.mxu0 0.0
    %1946 = vmatprep.subr.mxu0 0.0
    %1947 = vmatpush1.xpose.msra.mxu0 0.0
    %1948 = vmatprep.subr.mxu0 0.0
    %1949 = vmatpush1.xpose.msra.mxu0 0.0
    %1950 = vmatprep.subr.mxu0 0.0
    %1951 = vmatpush1.xpose.msra.mxu0 0.0
    %1952 = vmatprep.subr.mxu0 0.0
    %1953 = vmatpush1.xpose.msra.mxu0 0.0
    %1954 = vmatprep.subr.mxu0 0.0
    %1955 = vmatpush1.xpose.msra.mxu0 0.0
    %1956 = vmatprep.subr.mxu0 0.0
    %1957 = vmatpush1.xpose.msra.mxu0 0.0
    %1958 = vmatprep.subr.mxu0 0.0
    %1959 = vmatpush1.xpose.msra.mxu0 0.0
    %1960 = vmatprep.subr.mxu0 0.0
    %1961 = vmatpush1.xpose.msra.mxu0 0.0
    %1962 = vmatprep.subr.mxu0 0.0
    %1963 = vmatpush1.xpose.msra.mxu0 0.0
    %1964 = vmatprep.subr.mxu0 0.0
    %1965 = vmatpush1.xpose.msra.mxu0 0.0
    %1966 = vmatprep.subr.mxu0 0.0
    %1967 = vmatpush1.xpose.msra.mxu0 0.0
    %1968 = vmatprep.subr.mxu0 0.0
    %1969 = vmatpush1.xpose.msra.mxu0 0.0
    %1970 = vmatprep.subr.mxu0 0.0
    %1971 = vmatpush1.xpose.msra.mxu0 0.0
    %1972 = vmatprep.subr.mxu0 0.0
    %1973 = vmatpush1.xpose.msra.mxu0 0.0
    %1974 = vmatprep.subr.mxu0 0.0
    %1975 = vmatpush1.xpose.msra.mxu0 0.0
    %1976 = vmatprep.subr.mxu0 0.0
    %1977 = vmatpush1.xpose.msra.mxu0 0.0
    %1978 = vmatprep.subr.mxu0 0.0
    %1979 = vmatpush1.xpose.msra.mxu0 0.0
    %1980 = vmatprep.subr.mxu0 0.0
    %1981 = vmatpush1.xpose.msra.mxu0 0.0
    %1982 = vmatprep.subr.mxu0 0.0
    %1983 = vmatpush1.xpose.msra.mxu0 0.0
    %1984 = vmatprep.subr.mxu0 0.0
    %1985 = vmatpush1.xpose.msra.mxu0 0.0
    %1986 = vmatprep.mubr.f32.mxu0 0.0
    %1987 = vmatmul.mubr.f32.gmra.mrb[0].mxu0 %v1910
    %v1988 = vpop.f32.mrb[0].mxu0
    %v1989 = vadd.f32 %v1817, %v1988
    %v1990 = vpop.f32.mrb[0].mxu0
    %1991 = vmatprep.mubr.f32.mxu0 0.0
    %1992 = vmatmul.mubr.f32.gmra.mrb[0].mxu0 %v1912
    %v1993 = vpop.f32.mrb[0].mxu0
    %v1994 = vadd.f32 %v1818, %v1993
    %v1995 = vpop.f32.mrb[0].mxu0
    %1996 = vdwg.mxu0
    %v1997 = vsel %vm411, %v1742, 0
    %v1999 = vsel %vm411, %v1744, 0
    %v2001 = vsel %vm411, %v1762, 0
    %v2003 = vsel %vm411, %v1764, 0
    %v2005 = vsel %vm411, %v1766, 0
    %v2007 = vsel %vm411, %v1768, 0
    %2009 = vmatprep.subr.mxu0 0.0
    %2010 = vmatpush1.xpose.msra.mxu0 %v2001
    %2011 = vmatprep.subr.mxu0 0.0
    %2012 = vmatpush1.xpose.msra.mxu0 %v2003
    %2013 = vmatprep.subr.mxu0 0.0
    %2014 = vmatpush1.xpose.msra.mxu0 %v2005
    %2015 = vmatprep.subr.mxu0 0.0
    %2016 = vmatpush1.xpose.msra.mxu0 %v2007
    %2017 = vmatprep.subr.mxu0 0.0
    %2018 = vmatpush1.xpose.msra.mxu0 0.0
    %2019 = vmatprep.subr.mxu0 0.0
    %2020 = vmatpush1.xpose.msra.mxu0 0.0
    %2021 = vmatprep.subr.mxu0 0.0
    %2022 = vmatpush1.xpose.msra.mxu0 0.0
    %2023 = vmatprep.subr.mxu0 0.0
    %2024 = vmatpush1.xpose.msra.mxu0 0.0
    %2025 = vmatprep.subr.mxu0 0.0
    %2026 = vmatpush1.xpose.msra.mxu0 0.0
    %2027 = vmatprep.subr.mxu0 0.0
    %2028 = vmatpush1.xpose.msra.mxu0 0.0
    %2029 = vmatprep.subr.mxu0 0.0
    %2030 = vmatpush1.xpose.msra.mxu0 0.0
    %2031 = vmatprep.subr.mxu0 0.0
    %2032 = vmatpush1.xpose.msra.mxu0 0.0
    %2033 = vmatprep.subr.mxu0 0.0
    %2034 = vmatpush1.xpose.msra.mxu0 0.0
    %2035 = vmatprep.subr.mxu0 0.0
    %2036 = vmatpush1.xpose.msra.mxu0 0.0
    %2037 = vmatprep.subr.mxu0 0.0
    %2038 = vmatpush1.xpose.msra.mxu0 0.0
    %2039 = vmatprep.subr.mxu0 0.0
    %2040 = vmatpush1.xpose.msra.mxu0 0.0
    %2041 = vmatprep.subr.mxu0 0.0
    %2042 = vmatpush1.xpose.msra.mxu0 0.0
    %2043 = vmatprep.subr.mxu0 0.0
    %2044 = vmatpush1.xpose.msra.mxu0 0.0
    %2045 = vmatprep.subr.mxu0 0.0
    %2046 = vmatpush1.xpose.msra.mxu0 0.0
    %2047 = vmatprep.subr.mxu0 0.0
    %2048 = vmatpush1.xpose.msra.mxu0 0.0
    %2049 = vmatprep.subr.mxu0 0.0
    %2050 = vmatpush1.xpose.msra.mxu0 0.0
    %2051 = vmatprep.subr.mxu0 0.0
    %2052 = vmatpush1.xpose.msra.mxu0 0.0
    %2053 = vmatprep.subr.mxu0 0.0
    %2054 = vmatpush1.xpose.msra.mxu0 0.0
    %2055 = vmatprep.subr.mxu0 0.0
    %2056 = vmatpush1.xpose.msra.mxu0 0.0
    %2057 = vmatprep.subr.mxu0 0.0
    %2058 = vmatpush1.xpose.msra.mxu0 0.0
    %2059 = vmatprep.subr.mxu0 0.0
    %2060 = vmatpush1.xpose.msra.mxu0 0.0
    %2061 = vmatprep.subr.mxu0 0.0
    %2062 = vmatpush1.xpose.msra.mxu0 0.0
    %2063 = vmatprep.subr.mxu0 0.0
    %2064 = vmatpush1.xpose.msra.mxu0 0.0
    %2065 = vmatprep.subr.mxu0 0.0
    %2066 = vmatpush1.xpose.msra.mxu0 0.0
    %2067 = vmatprep.subr.mxu0 0.0
    %2068 = vmatpush1.xpose.msra.mxu0 0.0
    %2069 = vmatprep.subr.mxu0 0.0
    %2070 = vmatpush1.xpose.msra.mxu0 0.0
    %2071 = vmatprep.subr.mxu0 0.0
    %2072 = vmatpush1.xpose.msra.mxu0 0.0
    %2073 = vmatprep.mubr.f32.mxu0 0.0
    %2074 = vmatmul.mubr.f32.gmra.mrb[0].mxu0 %v1997
    %v2075 = vpop.f32.mrb[0].mxu0
    %v2076 = vadd.f32 %v1817, %v2075
    %v2077 = vpop.f32.mrb[0].mxu0
    %2078 = vmatprep.mubr.f32.mxu0 0.0
    %2079 = vmatmul.mubr.f32.gmra.mrb[0].mxu0 %v1999
    %v2080 = vpop.f32.mrb[0].mxu0
    %v2081 = vadd.f32 %v1818, %v2080
    %v2082 = vpop.f32.mrb[0].mxu0
    %2083 = vdwg.mxu0
    %v2084 = vsel %vm411, %v1746, 0
    %v2086 = vsel %vm411, %v1748, 0
    %v2088 = vsel %vm411, %v1770, 0
    %v2090 = vsel %vm411, %v1772, 0
    %v2092 = vsel %vm411, %v1774, 0
    %v2094 = vsel %vm411, %v1776, 0
    %2096 = vmatprep.subr.mxu0 0.0
    %2097 = vmatpush1.xpose.msra.mxu0 %v2088
    %2098 = vmatprep.subr.mxu0 0.0
    %2099 = vmatpush1.xpose.msra.mxu0 %v2090
    %2100 = vmatprep.subr.mxu0 0.0
    %2101 = vmatpush1.xpose.msra.mxu0 %v2092
    %2102 = vmatprep.subr.mxu0 0.0
    %2103 = vmatpush1.xpose.msra.mxu0 %v2094
    %2104 = vmatprep.subr.mxu0 0.0
    %2105 = vmatpush1.xpose.msra.mxu0 0.0
    %2106 = vmatprep.subr.mxu0 0.0
    %2107 = vmatpush1.xpose.msra.mxu0 0.0
    %2108 = vmatprep.subr.mxu0 0.0
    %2109 = vmatpush1.xpose.msra.mxu0 0.0
    %2110 = vmatprep.subr.mxu0 0.0
    %2111 = vmatpush1.xpose.msra.mxu0 0.0
    %2112 = vmatprep.subr.mxu0 0.0
    %2113 = vmatpush1.xpose.msra.mxu0 0.0
    %2114 = vmatprep.subr.mxu0 0.0
    %2115 = vmatpush1.xpose.msra.mxu0 0.0
    %2116 = vmatprep.subr.mxu0 0.0
    %2117 = vmatpush1.xpose.msra.mxu0 0.0
    %2118 = vmatprep.subr.mxu0 0.0
    %2119 = vmatpush1.xpose.msra.mxu0 0.0
    %2120 = vmatprep.subr.mxu0 0.0
    %2121 = vmatpush1.xpose.msra.mxu0 0.0
    %2122 = vmatprep.subr.mxu0 0.0
    %2123 = vmatpush1.xpose.msra.mxu0 0.0
    %2124 = vmatprep.subr.mxu0 0.0
    %2125 = vmatpush1.xpose.msra.mxu0 0.0
    %2126 = vmatprep.subr.mxu0 0.0
    %2127 = vmatpush1.xpose.msra.mxu0 0.0
    %2128 = vmatprep.subr.mxu0 0.0
    %2129 = vmatpush1.xpose.msra.mxu0 0.0
    %2130 = vmatprep.subr.mxu0 0.0
    %2131 = vmatpush1.xpose.msra.mxu0 0.0
    %2132 = vmatprep.subr.mxu0 0.0
    %2133 = vmatpush1.xpose.msra.mxu0 0.0
    %2134 = vmatprep.subr.mxu0 0.0
    %2135 = vmatpush1.xpose.msra.mxu0 0.0
    %2136 = vmatprep.subr.mxu0 0.0
    %2137 = vmatpush1.xpose.msra.mxu0 0.0
    %2138 = vmatprep.subr.mxu0 0.0
    %2139 = vmatpush1.xpose.msra.mxu0 0.0
    %2140 = vmatprep.subr.mxu0 0.0
    %2141 = vmatpush1.xpose.msra.mxu0 0.0
    %2142 = vmatprep.subr.mxu0 0.0
    %2143 = vmatpush1.xpose.msra.mxu0 0.0
    %2144 = vmatprep.subr.mxu0 0.0
    %2145 = vmatpush1.xpose.msra.mxu0 0.0
    %2146 = vmatprep.subr.mxu0 0.0
    %2147 = vmatpush1.xpose.msra.mxu0 0.0
    %2148 = vmatprep.subr.mxu0 0.0
    %2149 = vmatpush1.xpose.msra.mxu0 0.0
    %2150 = vmatprep.subr.mxu0 0.0
    %2151 = vmatpush1.xpose.msra.mxu0 0.0
    %2152 = vmatprep.subr.mxu0 0.0
    %2153 = vmatpush1.xpose.msra.mxu0 0.0
    %2154 = vmatprep.subr.mxu0 0.0
    %2155 = vmatpush1.xpose.msra.mxu0 0.0
    %2156 = vmatprep.subr.mxu0 0.0
    %2157 = vmatpush1.xpose.msra.mxu0 0.0
    %2158 = vmatprep.subr.mxu0 0.0
    %2159 = vmatpush1.xpose.msra.mxu0 0.0
    %2160 = vmatprep.mubr.f32.mxu0 0.0
    %2161 = vmatmul.mubr.f32.gmra.mrb[0].mxu0 %v2084
    %v2162 = vpop.f32.mrb[0].mxu0
    %v2163 = vadd.f32 %v1817, %v2162
    %v2164 = vpop.f32.mrb[0].mxu0
    %2165 = vmatprep.mubr.f32.mxu0 0.0
    %2166 = vmatmul.mubr.f32.gmra.mrb[0].mxu0 %v2086
    %v2167 = vpop.f32.mrb[0].mxu0
    %v2168 = vadd.f32 %v1818, %v2167
    %v2169 = vpop.f32.mrb[0].mxu0
    %2170 = vdwg.mxu0
    %v2171 = vsel %vm147, %v1902, -inf
    %2172 = vmax.xlane.f32.xlu0 %v2171
    %v2173 = vpop.xlane.xlu0 %2172
    %v2174 = vsel %vm147, %v1907, -inf
    %2175 = vmax.xlane.f32.xlu0 %v2174
    %v2176 = vpop.xlane.xlu0 %2175
    %v2177 = vsel %vm147, %v1989, -inf
    %2178 = vmax.xlane.f32.xlu0 %v2177
    %v2179 = vpop.xlane.xlu0 %2178
    %v2180 = vsel %vm147, %v1994, -inf
    %2181 = vmax.xlane.f32.xlu0 %v2180
    %v2182 = vpop.xlane.xlu0 %2181
    %v2183 = vsel %vm147, %v2076, -inf
    %2184 = vmax.xlane.f32.xlu0 %v2183
    %v2185 = vpop.xlane.xlu0 %2184
    %v2186 = vsel %vm147, %v2081, -inf
    %2187 = vmax.xlane.f32.xlu0 %v2186
    %v2188 = vpop.xlane.xlu0 %2187
    %v2189 = vsel %vm147, %v2163, -inf
    %2190 = vmax.xlane.f32.xlu0 %v2189
    %v2191 = vpop.xlane.xlu0 %2190
    %v2192 = vsel %vm147, %v2168, -inf
    %2193 = vmax.xlane.f32.xlu0 %v2192
    %v2194 = vpop.xlane.xlu0 %2193
    %v2195 = vsub.f32 %v1902, %v2173
    %v2196 = vsub.f32 %v1907, %v2176
    %v2197 = vsub.f32 %v1989, %v2179
    %v2198 = vsub.f32 %v1994, %v2182
    %v2199 = vsub.f32 %v2076, %v2185
    %v2200 = vsub.f32 %v2081, %v2188
    %v2201 = vsub.f32 %v2163, %v2191
    %v2202 = vsub.f32 %v2168, %v2194
    %v2203 = vmul.f32 %v2195, 1.442695
    %v2204 = vpow.pop %v2203
    %v2205 = vmul.f32 %v2196, 1.442695
    %v2206 = vpow.pop %v2205
    %v2207 = vmul.f32 %v2197, 1.442695
    %v2208 = vpow.pop %v2207
    %v2209 = vmul.f32 %v2198, 1.442695
    %v2210 = vpow.pop %v2209
    %v2211 = vmul.f32 %v2199, 1.442695
    %v2212 = vpow.pop %v2211
    %v2213 = vmul.f32 %v2200, 1.442695
    %v2214 = vpow.pop %v2213
    %v2215 = vmul.f32 %v2201, 1.442695
    %v2216 = vpow.pop %v2215
    %v2217 = vmul.f32 %v2202, 1.442695
    %v2218 = vpow.pop %v2217
    %v2220 = vsel %vm147, %v2204, 0
    %v2223 = vsel %vm147, %v2206, 0
    %2225 = vmatprep.subr.mxu0 0.0
    %2226 = vmatpush1.msra.mxu0 %v1715
    %2227 = vmatprep.subr.mxu0 0.0
    %2228 = vmatpush1.msra.mxu0 %v1721
    %2229 = vmatprep.subr.mxu0 0.0
    %2230 = vmatpush1.msra.mxu0 %v1727
    %2231 = vmatprep.subr.mxu0 0.0
    %2232 = vmatpush1.msra.mxu0 %v1733
    %2233 = vmatprep.subr.mxu0 0.0
    %2234 = vmatpush1.msra.mxu0 0.0
    %2235 = vmatprep.subr.mxu0 0.0
    %2236 = vmatpush1.msra.mxu0 0.0
    %2237 = vmatprep.subr.mxu0 0.0
    %2238 = vmatpush1.msra.mxu0 0.0
    %2239 = vmatprep.subr.mxu0 0.0
    %2240 = vmatpush1.msra.mxu0 0.0
    %2241 = vmatprep.subr.mxu0 0.0
    %2242 = vmatpush1.msra.mxu0 0.0
    %2243 = vmatprep.subr.mxu0 0.0
    %2244 = vmatpush1.msra.mxu0 0.0
    %2245 = vmatprep.subr.mxu0 0.0
    %2246 = vmatpush1.msra.mxu0 0.0
    %2247 = vmatprep.subr.mxu0 0.0
    %2248 = vmatpush1.msra.mxu0 0.0
    %2249 = vmatprep.subr.mxu0 0.0
    %2250 = vmatpush1.msra.mxu0 0.0
    %2251 = vmatprep.subr.mxu0 0.0
    %2252 = vmatpush1.msra.mxu0 0.0
    %2253 = vmatprep.subr.mxu0 0.0
    %2254 = vmatpush1.msra.mxu0 0.0
    %2255 = vmatprep.subr.mxu0 0.0
    %2256 = vmatpush1.msra.mxu0 0.0
    %2257 = vmatprep.subr.mxu0 0.0
    %2258 = vmatpush1.msra.mxu0 0.0
    %2259 = vmatprep.subr.mxu0 0.0
    %2260 = vmatpush1.msra.mxu0 0.0
    %2261 = vmatprep.subr.mxu0 0.0
    %2262 = vmatpush1.msra.mxu0 0.0
    %2263 = vmatprep.subr.mxu0 0.0
    %2264 = vmatpush1.msra.mxu0 0.0
    %2265 = vmatprep.subr.mxu0 0.0
    %2266 = vmatpush1.msra.mxu0 0.0
    %2267 = vmatprep.subr.mxu0 0.0
    %2268 = vmatpush1.msra.mxu0 0.0
    %2269 = vmatprep.subr.mxu0 0.0
    %2270 = vmatpush1.msra.mxu0 0.0
    %2271 = vmatprep.subr.mxu0 0.0
    %2272 = vmatpush1.msra.mxu0 0.0
    %2273 = vmatprep.subr.mxu0 0.0
    %2274 = vmatpush1.msra.mxu0 0.0
    %2275 = vmatprep.subr.mxu0 0.0
    %2276 = vmatpush1.msra.mxu0 0.0
    %2277 = vmatprep.subr.mxu0 0.0
    %2278 = vmatpush1.msra.mxu0 0.0
    %2279 = vmatprep.subr.mxu0 0.0
    %2280 = vmatpush1.msra.mxu0 0.0
    %2281 = vmatprep.subr.mxu0 0.0
    %2282 = vmatpush1.msra.mxu0 0.0
    %2283 = vmatprep.subr.mxu0 0.0
    %2284 = vmatpush1.msra.mxu0 0.0
    %2285 = vmatprep.subr.mxu0 0.0
    %2286 = vmatpush1.msra.mxu0 0.0
    %2287 = vmatprep.subr.mxu0 0.0
    %2288 = vmatpush1.msra.mxu0 0.0
    %2289 = vmatprep.mubr.f32.mxu0 0.0
    %2290 = vmatmul.mubr.f32.gmra.mrb[0].mxu0 %v2220
    %v2291 = vpop.f32.mrb[0].mxu0
    %v2292 = vadd.f32 0.0, %v2291
    %v2293 = vpop.f32.mrb[0].mxu0
    %2294 = vmatprep.mubr.f32.mxu0 0.0
    %2295 = vmatmul.mubr.f32.gmra.mrb[0].mxu0 %v2223
    %v2296 = vpop.f32.mrb[0].mxu0
    %v2297 = vadd.f32 0.0, %v2296
    %v2298 = vpop.f32.mrb[0].mxu0
    %2299 = vdwg.mxu0
    %v2301 = vsel %vm147, %v2208, 0
    %v2304 = vsel %vm147, %v2210, 0
    %2306 = vmatprep.subr.mxu0 0.0
    %2307 = vmatpush1.msra.mxu0 %v1782
    %2308 = vmatprep.subr.mxu0 0.0
    %2309 = vmatpush1.msra.mxu0 %v1784
    %2310 = vmatprep.subr.mxu0 0.0
    %2311 = vmatpush1.msra.mxu0 %v1786
    %2312 = vmatprep.subr.mxu0 0.0
    %2313 = vmatpush1.msra.mxu0 %v1788
    %2314 = vmatprep.subr.mxu0 0.0
    %2315 = vmatpush1.msra.mxu0 0.0
    %2316 = vmatprep.subr.mxu0 0.0
    %2317 = vmatpush1.msra.mxu0 0.0
    %2318 = vmatprep.subr.mxu0 0.0
    %2319 = vmatpush1.msra.mxu0 0.0
    %2320 = vmatprep.subr.mxu0 0.0
    %2321 = vmatpush1.msra.mxu0 0.0
    %2322 = vmatprep.subr.mxu0 0.0
    %2323 = vmatpush1.msra.mxu0 0.0
    %2324 = vmatprep.subr.mxu0 0.0
    %2325 = vmatpush1.msra.mxu0 0.0
    %2326 = vmatprep.subr.mxu0 0.0
    %2327 = vmatpush1.msra.mxu0 0.0
    %2328 = vmatprep.subr.mxu0 0.0
    %2329 = vmatpush1.msra.mxu0 0.0
    %2330 = vmatprep.subr.mxu0 0.0
    %2331 = vmatpush1.msra.mxu0 0.0
    %2332 = vmatprep.subr.mxu0 0.0
    %2333 = vmatpush1.msra.mxu0 0.0
    %2334 = vmatprep.subr.mxu0 0.0
    %2335 = vmatpush1.msra.mxu0 0.0
    %2336 = vmatprep.subr.mxu0 0.0
    %2337 = vmatpush1.msra.mxu0 0.0
    %2338 = vmatprep.subr.mxu0 0.0
    %2339 = vmatpush1.msra.mxu0 0.0
    %2340 = vmatprep.subr.mxu0 0.0
    %2341 = vmatpush1.msra.mxu0 0.0
    %2342 = vmatprep.subr.mxu0 0.0
    %2343 = vmatpush1.msra.mxu0 0.0
    %2344 = vmatprep.subr.mxu0 0.0
    %2345 = vmatpush1.msra.mxu0 0.0
    %2346 = vmatprep.subr.mxu0 0.0
    %2347 = vmatpush1.msra.mxu0 0.0
    %2348 = vmatprep.subr.mxu0 0.0
    %2349 = vmatpush1.msra.mxu0 0.0
    %2350 = vmatprep.subr.mxu0 0.0
    %2351 = vmatpush1.msra.mxu0 0.0
    %2352 = vmatprep.subr.mxu0 0.0
    %2353 = vmatpush1.msra.mxu0 0.0
    %2354 = vmatprep.subr.mxu0 0.0
    %2355 = vmatpush1.msra.mxu0 0.0
    %2356 = vmatprep.subr.mxu0 0.0
    %2357 = vmatpush1.msra.mxu0 0.0
    %2358 = vmatprep.subr.mxu0 0.0
    %2359 = vmatpush1.msra.mxu0 0.0
    %2360 = vmatprep.subr.mxu0 0.0
    %2361 = vmatpush1.msra.mxu0 0.0
    %2362 = vmatprep.subr.mxu0 0.0
    %2363 = vmatpush1.msra.mxu0 0.0
    %2364 = vmatprep.subr.mxu0 0.0
    %2365 = vmatpush1.msra.mxu0 0.0
    %2366 = vmatprep.subr.mxu0 0.0
    %2367 = vmatpush1.msra.mxu0 0.0
    %2368 = vmatprep.subr.mxu0 0.0
    %2369 = vmatpush1.msra.mxu0 0.0
    %2370 = vmatprep.mubr.f32.mxu0 0.0
    %2371 = vmatmul.mubr.f32.gmra.mrb[0].mxu0 %v2301
    %v2372 = vpop.f32.mrb[0].mxu0
    %v2373 = vadd.f32 0.0, %v2372
    %v2374 = vpop.f32.mrb[0].mxu0
    %2375 = vmatprep.mubr.f32.mxu0 0.0
    %2376 = vmatmul.mubr.f32.gmra.mrb[0].mxu0 %v2304
    %v2377 = vpop.f32.mrb[0].mxu0
    %v2378 = vadd.f32 0.0, %v2377
    %v2379 = vpop.f32.mrb[0].mxu0
    %2380 = vdwg.mxu0
    %v2382 = vsel %vm147, %v2212, 0
    %v2385 = vsel %vm147, %v2214, 0
    %2387 = vmatprep.subr.mxu0 0.0
    %2388 = vmatpush1.msra.mxu0 %v1794
    %2389 = vmatprep.subr.mxu0 0.0
    %2390 = vmatpush1.msra.mxu0 %v1796
    %2391 = vmatprep.subr.mxu0 0.0
    %2392 = vmatpush1.msra.mxu0 %v1798
    %2393 = vmatprep.subr.mxu0 0.0
    %2394 = vmatpush1.msra.mxu0 %v1800
    %2395 = vmatprep.subr.mxu0 0.0
    %2396 = vmatpush1.msra.mxu0 0.0
    %2397 = vmatprep.subr.mxu0 0.0
    %2398 = vmatpush1.msra.mxu0 0.0
    %2399 = vmatprep.subr.mxu0 0.0
    %2400 = vmatpush1.msra.mxu0 0.0
    %2401 = vmatprep.subr.mxu0 0.0
    %2402 = vmatpush1.msra.mxu0 0.0
    %2403 = vmatprep.subr.mxu0 0.0
    %2404 = vmatpush1.msra.mxu0 0.0
    %2405 = vmatprep.subr.mxu0 0.0
    %2406 = vmatpush1.msra.mxu0 0.0
    %2407 = vmatprep.subr.mxu0 0.0
    %2408 = vmatpush1.msra.mxu0 0.0
    %2409 = vmatprep.subr.mxu0 0.0
    %2410 = vmatpush1.msra.mxu0 0.0
    %2411 = vmatprep.subr.mxu0 0.0
    %2412 = vmatpush1.msra.mxu0 0.0
    %2413 = vmatprep.subr.mxu0 0.0
    %2414 = vmatpush1.msra.mxu0 0.0
    %2415 = vmatprep.subr.mxu0 0.0
    %2416 = vmatpush1.msra.mxu0 0.0
    %2417 = vmatprep.subr.mxu0 0.0
    %2418 = vmatpush1.msra.mxu0 0.0
    %2419 = vmatprep.subr.mxu0 0.0
    %2420 = vmatpush1.msra.mxu0 0.0
    %2421 = vmatprep.subr.mxu0 0.0
    %2422 = vmatpush1.msra.mxu0 0.0
    %2423 = vmatprep.subr.mxu0 0.0
    %2424 = vmatpush1.msra.mxu0 0.0
    %2425 = vmatprep.subr.mxu0 0.0
    %2426 = vmatpush1.msra.mxu0 0.0
    %2427 = vmatprep.subr.mxu0 0.0
    %2428 = vmatpush1.msra.mxu0 0.0
    %2429 = vmatprep.subr.mxu0 0.0
    %2430 = vmatpush1.msra.mxu0 0.0
    %2431 = vmatprep.subr.mxu0 0.0
    %2432 = vmatpush1.msra.mxu0 0.0
    %2433 = vmatprep.subr.mxu0 0.0
    %2434 = vmatpush1.msra.mxu0 0.0
    %2435 = vmatprep.subr.mxu0 0.0
    %2436 = vmatpush1.msra.mxu0 0.0
    %2437 = vmatprep.subr.mxu0 0.0
    %2438 = vmatpush1.msra.mxu0 0.0
    %2439 = vmatprep.subr.mxu0 0.0
    %2440 = vmatpush1.msra.mxu0 0.0
    %2441 = vmatprep.subr.mxu0 0.0
    %2442 = vmatpush1.msra.mxu0 0.0
    %2443 = vmatprep.subr.mxu0 0.0
    %2444 = vmatpush1.msra.mxu0 0.0
    %2445 = vmatprep.subr.mxu0 0.0
    %2446 = vmatpush1.msra.mxu0 0.0
    %2447 = vmatprep.subr.mxu0 0.0
    %2448 = vmatpush1.msra.mxu0 0.0
    %2449 = vmatprep.subr.mxu0 0.0
    %2450 = vmatpush1.msra.mxu0 0.0
    %2451 = vmatprep.mubr.f32.mxu0 0.0
    %2452 = vmatmul.mubr.f32.gmra.mrb[0].mxu0 %v2382
    %v2453 = vpop.f32.mrb[0].mxu0
    %v2454 = vadd.f32 0.0, %v2453
    %v2455 = vpop.f32.mrb[0].mxu0
    %2456 = vmatprep.mubr.f32.mxu0 0.0
    %2457 = vmatmul.mubr.f32.gmra.mrb[0].mxu0 %v2385
    %v2458 = vpop.f32.mrb[0].mxu0
    %v2459 = vadd.f32 0.0, %v2458
    %v2460 = vpop.f32.mrb[0].mxu0
    %2461 = vdwg.mxu0
    %v2463 = vsel %vm147, %v2216, 0
    %v2466 = vsel %vm147, %v2218, 0
    %2468 = vmatprep.subr.mxu0 0.0
    %2469 = vmatpush1.msra.mxu0 %v1806
    %2470 = vmatprep.subr.mxu0 0.0
    %2471 = vmatpush1.msra.mxu0 %v1808
    %2472 = vmatprep.subr.mxu0 0.0
    %2473 = vmatpush1.msra.mxu0 %v1810
    %2474 = vmatprep.subr.mxu0 0.0
    %2475 = vmatpush1.msra.mxu0 %v1812
    %2476 = vmatprep.subr.mxu0 0.0
    %2477 = vmatpush1.msra.mxu0 0.0
    %2478 = vmatprep.subr.mxu0 0.0
    %2479 = vmatpush1.msra.mxu0 0.0
    %2480 = vmatprep.subr.mxu0 0.0
    %2481 = vmatpush1.msra.mxu0 0.0
    %2482 = vmatprep.subr.mxu0 0.0
    %2483 = vmatpush1.msra.mxu0 0.0
    %2484 = vmatprep.subr.mxu0 0.0
    %2485 = vmatpush1.msra.mxu0 0.0
    %2486 = vmatprep.subr.mxu0 0.0
    %2487 = vmatpush1.msra.mxu0 0.0
    %2488 = vmatprep.subr.mxu0 0.0
    %2489 = vmatpush1.msra.mxu0 0.0
    %2490 = vmatprep.subr.mxu0 0.0
    %2491 = vmatpush1.msra.mxu0 0.0
    %2492 = vmatprep.subr.mxu0 0.0
    %2493 = vmatpush1.msra.mxu0 0.0
    %2494 = vmatprep.subr.mxu0 0.0
    %2495 = vmatpush1.msra.mxu0 0.0
    %2496 = vmatprep.subr.mxu0 0.0
    %2497 = vmatpush1.msra.mxu0 0.0
    %2498 = vmatprep.subr.mxu0 0.0
    %2499 = vmatpush1.msra.mxu0 0.0
    %2500 = vmatprep.subr.mxu0 0.0
    %2501 = vmatpush1.msra.mxu0 0.0
    %2502 = vmatprep.subr.mxu0 0.0
    %2503 = vmatpush1.msra.mxu0 0.0
    %2504 = vmatprep.subr.mxu0 0.0
    %2505 = vmatpush1.msra.mxu0 0.0
    %2506 = vmatprep.subr.mxu0 0.0
    %2507 = vmatpush1.msra.mxu0 0.0
    %2508 = vmatprep.subr.mxu0 0.0
    %2509 = vmatpush1.msra.mxu0 0.0
    %2510 = vmatprep.subr.mxu0 0.0
    %2511 = vmatpush1.msra.mxu0 0.0
    %2512 = vmatprep.subr.mxu0 0.0
    %2513 = vmatpush1.msra.mxu0 0.0
    %2514 = vmatprep.subr.mxu0 0.0
    %2515 = vmatpush1.msra.mxu0 0.0
    %2516 = vmatprep.subr.mxu0 0.0
    %2517 = vmatpush1.msra.mxu0 0.0
    %2518 = vmatprep.subr.mxu0 0.0
    %2519 = vmatpush1.msra.mxu0 0.0
    %2520 = vmatprep.subr.mxu0 0.0
    %2521 = vmatpush1.msra.mxu0 0.0
    %2522 = vmatprep.subr.mxu0 0.0
    %2523 = vmatpush1.msra.mxu0 0.0
    %2524 = vmatprep.subr.mxu0 0.0
    %2525 = vmatpush1.msra.mxu0 0.0
    %2526 = vmatprep.subr.mxu0 0.0
    %2527 = vmatpush1.msra.mxu0 0.0
    %2528 = vmatprep.subr.mxu0 0.0
    %2529 = vmatpush1.msra.mxu0 0.0
    %2530 = vmatprep.subr.mxu0 0.0
    %2531 = vmatpush1.msra.mxu0 0.0
    %2532 = vmatprep.mubr.f32.mxu0 0.0
    %2533 = vmatmul.mubr.f32.gmra.mrb[0].mxu0 %v2463
    %v2534 = vpop.f32.mrb[0].mxu0
    %v2535 = vadd.f32 0.0, %v2534
    %v2536 = vpop.f32.mrb[0].mxu0
    %2537 = vmatprep.mubr.f32.mxu0 0.0
    %2538 = vmatmul.mubr.f32.gmra.mrb[0].mxu0 %v2466
    %v2539 = vpop.f32.mrb[0].mxu0
    %v2540 = vadd.f32 0.0, %v2539
    %v2541 = vpop.f32.mrb[0].mxu0
    %2542 = vdwg.mxu0
    %v2543 = vsel %vm147, %v2204, 0.0
    %2544 = vadd.xlane.f32.xlu0 %v2543
    %v2545 = vpop.xlane.xlu0 %2544
    %v2546 = vsel %vm147, %v2206, 0.0
    %2547 = vadd.xlane.f32.xlu0 %v2546
    %v2548 = vpop.xlane.xlu0 %2547
    %v2549 = vsel %vm147, %v2208, 0.0
    %2550 = vadd.xlane.f32.xlu0 %v2549
    %v2551 = vpop.xlane.xlu0 %2550
    %v2552 = vsel %vm147, %v2210, 0.0
    %2553 = vadd.xlane.f32.xlu0 %v2552
    %v2554 = vpop.xlane.xlu0 %2553
    %v2555 = vsel %vm147, %v2212, 0.0
    %2556 = vadd.xlane.f32.xlu0 %v2555
    %v2557 = vpop.xlane.xlu0 %2556
    %v2558 = vsel %vm147, %v2214, 0.0
    %2559 = vadd.xlane.f32.xlu0 %v2558
    %v2560 = vpop.xlane.xlu0 %2559
    %v2561 = vsel %vm147, %v2216, 0.0
    %2562 = vadd.xlane.f32.xlu0 %v2561
    %v2563 = vpop.xlane.xlu0 %2562
    %v2564 = vsel %vm147, %v2218, 0.0
    %2565 = vadd.xlane.f32.xlu0 %v2564
    %v2566 = vpop.xlane.xlu0 %2565
    %v2567 = vrcp.pop %v2545
    %v2568 = vmul.f32 1.0, %v2567
    %v2569 = vrcp.pop %v2548
    %v2570 = vmul.f32 1.0, %v2569
    %v2571 = vrcp.pop %v2551
    %v2572 = vmul.f32 1.0, %v2571
    %v2573 = vrcp.pop %v2554
    %v2574 = vmul.f32 1.0, %v2573
    %v2575 = vrcp.pop %v2557
    %v2576 = vmul.f32 1.0, %v2575
    %v2577 = vrcp.pop %v2560
    %v2578 = vmul.f32 1.0, %v2577
    %v2579 = vrcp.pop %v2563
    %v2580 = vmul.f32 1.0, %v2579
    %v2581 = vrcp.pop %v2566
    %v2582 = vmul.f32 1.0, %v2581
    %v2583 = vmul.f32 %v2292, %v2568
    %v2584 = vmul.f32 %v2297, %v2570
    %v2585 = vmul.f32 %v2373, %v2572
    %v2586 = vmul.f32 %v2378, %v2574
    %v2587 = vmul.f32 %v2454, %v2576
    %v2588 = vmul.f32 %v2459, %v2578
    %v2589 = vmul.f32 %v2535, %v2580
    %v2590 = vmul.f32 %v2540, %v2582
    %v2592 = vsel %vm411, %v2583, 0
    %v2595 = vsel %vm411, %v2584, 0
    %2597 = vmatprep.subr.mxu0 0.0
    %2598 = vmatpush1.msra.mxu0 %v1819
    %2599 = vmatprep.subr.mxu0 0.0
    %2600 = vmatpush1.msra.mxu0 0.0
    %2601 = vmatprep.subr.mxu0 0.0
    %2602 = vmatpush1.msra.mxu0 0.0
    %2603 = vmatprep.subr.mxu0 0.0
    %2604 = vmatpush1.msra.mxu0 0.0
    %2605 = vmatprep.subr.mxu0 0.0
    %2606 = vmatpush1.msra.mxu0 0.0
    %2607 = vmatprep.subr.mxu0 0.0
    %2608 = vmatpush1.msra.mxu0 0.0
    %2609 = vmatprep.subr.mxu0 0.0
    %2610 = vmatpush1.msra.mxu0 0.0
    %2611 = vmatprep.subr.mxu0 0.0
    %2612 = vmatpush1.msra.mxu0 0.0
    %2613 = vmatprep.subr.mxu0 0.0
    %2614 = vmatpush1.msra.mxu0 0.0
    %2615 = vmatprep.subr.mxu0 0.0
    %2616 = vmatpush1.msra.mxu0 0.0
    %2617 = vmatprep.subr.mxu0 0.0
    %2618 = vmatpush1.msra.mxu0 0.0
    %2619 = vmatprep.subr.mxu0 0.0
    %2620 = vmatpush1.msra.mxu0 0.0
    %2621 = vmatprep.subr.mxu0 0.0
    %2622 = vmatpush1.msra.mxu0 0.0
    %2623 = vmatprep.subr.mxu0 0.0
    %2624 = vmatpush1.msra.mxu0 0.0
    %2625 = vmatprep.subr.mxu0 0.0
    %2626 = vmatpush1.msra.mxu0 0.0
    %2627 = vmatprep.subr.mxu0 0.0
    %2628 = vmatpush1.msra.mxu0 0.0
    %2629 = vmatprep.subr.mxu0 0.0
    %2630 = vmatpush1.msra.mxu0 0.0
    %2631 = vmatprep.subr.mxu0 0.0
    %2632 = vmatpush1.msra.mxu0 0.0
    %2633 = vmatprep.subr.mxu0 0.0
    %2634 = vmatpush1.msra.mxu0 0.0
    %2635 = vmatprep.subr.mxu0 0.0
    %2636 = vmatpush1.msra.mxu0 0.0
    %2637 = vmatprep.subr.mxu0 0.0
    %2638 = vmatpush1.msra.mxu0 0.0
    %2639 = vmatprep.subr.mxu0 0.0
    %2640 = vmatpush1.msra.mxu0 0.0
    %2641 = vmatprep.subr.mxu0 0.0
    %2642 = vmatpush1.msra.mxu0 0.0
    %2643 = vmatprep.subr.mxu0 0.0
    %2644 = vmatpush1.msra.mxu0 0.0
    %2645 = vmatprep.subr.mxu0 0.0
    %2646 = vmatpush1.msra.mxu0 0.0
    %2647 = vmatprep.subr.mxu0 0.0
    %2648 = vmatpush1.msra.mxu0 0.0
    %2649 = vmatprep.subr.mxu0 0.0
    %2650 = vmatpush1.msra.mxu0 0.0
    %2651 = vmatprep.subr.mxu0 0.0
    %2652 = vmatpush1.msra.mxu0 0.0
    %2653 = vmatprep.subr.mxu0 0.0
    %2654 = vmatpush1.msra.mxu0 0.0
    %2655 = vmatprep.subr.mxu0 0.0
    %2656 = vmatpush1.msra.mxu0 0.0
    %2657 = vmatprep.subr.mxu0 0.0
    %2658 = vmatpush1.msra.mxu0 0.0
    %2659 = vmatprep.subr.mxu0 0.0
    %2660 = vmatpush1.msra.mxu0 0.0
    %2661 = vmatprep.mubr.f32.mxu0 0.0
    %2662 = vmatmul.mubr.f32.gmra.mrb[0].mxu0 %v2592
    %v2663 = vpop.f32.mrb[0].mxu0
    %v2664 = vadd.f32 0.0, %v2663
    %v2665 = vpop.f32.mrb[0].mxu0
    %2666 = vmatprep.mubr.f32.mxu0 0.0
    %2667 = vmatmul.mubr.f32.gmra.mrb[0].mxu0 %v2595
    %v2668 = vpop.f32.mrb[0].mxu0
    %v2669 = vadd.f32 0.0, %v2668
    %v2670 = vpop.f32.mrb[0].mxu0
    %2671 = vdwg.mxu0
    %v2673 = vsel %vm411, %v2585, 0
    %v2676 = vsel %vm411, %v2586, 0
    %2678 = vmatprep.subr.mxu0 0.0
    %2679 = vmatpush1.msra.mxu0 %v1820
    %2680 = vmatprep.subr.mxu0 0.0
    %2681 = vmatpush1.msra.mxu0 0.0
    %2682 = vmatprep.subr.mxu0 0.0
    %2683 = vmatpush1.msra.mxu0 0.0
    %2684 = vmatprep.subr.mxu0 0.0
    %2685 = vmatpush1.msra.mxu0 0.0
    %2686 = vmatprep.subr.mxu0 0.0
    %2687 = vmatpush1.msra.mxu0 0.0
    %2688 = vmatprep.subr.mxu0 0.0
    %2689 = vmatpush1.msra.mxu0 0.0
    %2690 = vmatprep.subr.mxu0 0.0
    %2691 = vmatpush1.msra.mxu0 0.0
    %2692 = vmatprep.subr.mxu0 0.0
    %2693 = vmatpush1.msra.mxu0 0.0
    %2694 = vmatprep.subr.mxu0 0.0
    %2695 = vmatpush1.msra.mxu0 0.0
    %2696 = vmatprep.subr.mxu0 0.0
    %2697 = vmatpush1.msra.mxu0 0.0
    %2698 = vmatprep.subr.mxu0 0.0
    %2699 = vmatpush1.msra.mxu0 0.0
    %2700 = vmatprep.subr.mxu0 0.0
    %2701 = vmatpush1.msra.mxu0 0.0
    %2702 = vmatprep.subr.mxu0 0.0
    %2703 = vmatpush1.msra.mxu0 0.0
    %2704 = vmatprep.subr.mxu0 0.0
    %2705 = vmatpush1.msra.mxu0 0.0
    %2706 = vmatprep.subr.mxu0 0.0
    %2707 = vmatpush1.msra.mxu0 0.0
    %2708 = vmatprep.subr.mxu0 0.0
    %2709 = vmatpush1.msra.mxu0 0.0
    %2710 = vmatprep.subr.mxu0 0.0
    %2711 = vmatpush1.msra.mxu0 0.0
    %2712 = vmatprep.subr.mxu0 0.0
    %2713 = vmatpush1.msra.mxu0 0.0
    %2714 = vmatprep.subr.mxu0 0.0
    %2715 = vmatpush1.msra.mxu0 0.0
    %2716 = vmatprep.subr.mxu0 0.0
    %2717 = vmatpush1.msra.mxu0 0.0
    %2718 = vmatprep.subr.mxu0 0.0
    %2719 = vmatpush1.msra.mxu0 0.0
    %2720 = vmatprep.subr.mxu0 0.0
    %2721 = vmatpush1.msra.mxu0 0.0
    %2722 = vmatprep.subr.mxu0 0.0
    %2723 = vmatpush1.msra.mxu0 0.0
    %2724 = vmatprep.subr.mxu0 0.0
    %2725 = vmatpush1.msra.mxu0 0.0
    %2726 = vmatprep.subr.mxu0 0.0
    %2727 = vmatpush1.msra.mxu0 0.0
    %2728 = vmatprep.subr.mxu0 0.0
    %2729 = vmatpush1.msra.mxu0 0.0
    %2730 = vmatprep.subr.mxu0 0.0
    %2731 = vmatpush1.msra.mxu0 0.0
    %2732 = vmatprep.subr.mxu0 0.0
    %2733 = vmatpush1.msra.mxu0 0.0
    %2734 = vmatprep.subr.mxu0 0.0
    %2735 = vmatpush1.msra.mxu0 0.0
    %2736 = vmatprep.subr.mxu0 0.0
    %2737 = vmatpush1.msra.mxu0 0.0
    %2738 = vmatprep.subr.mxu0 0.0
    %2739 = vmatpush1.msra.mxu0 0.0
    %2740 = vmatprep.subr.mxu0 0.0
    %2741 = vmatpush1.msra.mxu0 0.0
    %2742 = vmatprep.mubr.f32.mxu0 0.0
    %2743 = vmatmul.mubr.f32.gmra.mrb[0].mxu0 %v2673
    %v2744 = vpop.f32.mrb[0].mxu0
    %v2745 = vadd.f32 0.0, %v2744
    %v2746 = vpop.f32.mrb[0].mxu0
    %2747 = vmatprep.mubr.f32.mxu0 0.0
    %2748 = vmatmul.mubr.f32.gmra.mrb[0].mxu0 %v2676
    %v2749 = vpop.f32.mrb[0].mxu0
    %v2750 = vadd.f32 0.0, %v2749
    %v2751 = vpop.f32.mrb[0].mxu0
    %2752 = vdwg.mxu0
    %v2754 = vsel %vm411, %v2587, 0
    %v2757 = vsel %vm411, %v2588, 0
    %2759 = vmatprep.subr.mxu0 0.0
    %2760 = vmatpush1.msra.mxu0 %v1821
    %2761 = vmatprep.subr.mxu0 0.0
    %2762 = vmatpush1.msra.mxu0 0.0
    %2763 = vmatprep.subr.mxu0 0.0
    %2764 = vmatpush1.msra.mxu0 0.0
    %2765 = vmatprep.subr.mxu0 0.0
    %2766 = vmatpush1.msra.mxu0 0.0
    %2767 = vmatprep.subr.mxu0 0.0
    %2768 = vmatpush1.msra.mxu0 0.0
    %2769 = vmatprep.subr.mxu0 0.0
    %2770 = vmatpush1.msra.mxu0 0.0
    %2771 = vmatprep.subr.mxu0 0.0
    %2772 = vmatpush1.msra.mxu0 0.0
    %2773 = vmatprep.subr.mxu0 0.0
    %2774 = vmatpush1.msra.mxu0 0.0
    %2775 = vmatprep.subr.mxu0 0.0
    %2776 = vmatpush1.msra.mxu0 0.0
    %2777 = vmatprep.subr.mxu0 0.0
    %2778 = vmatpush1.msra.mxu0 0.0
    %2779 = vmatprep.subr.mxu0 0.0
    %2780 = vmatpush1.msra.mxu0 0.0
    %2781 = vmatprep.subr.mxu0 0.0
    %2782 = vmatpush1.msra.mxu0 0.0
    %2783 = vmatprep.subr.mxu0 0.0
    %2784 = vmatpush1.msra.mxu0 0.0
    %2785 = vmatprep.subr.mxu0 0.0
    %2786 = vmatpush1.msra.mxu0 0.0
    %2787 = vmatprep.subr.mxu0 0.0
    %2788 = vmatpush1.msra.mxu0 0.0
    %2789 = vmatprep.subr.mxu0 0.0
    %2790 = vmatpush1.msra.mxu0 0.0
    %2791 = vmatprep.subr.mxu0 0.0
    %2792 = vmatpush1.msra.mxu0 0.0
    %2793 = vmatprep.subr.mxu0 0.0
    %2794 = vmatpush1.msra.mxu0 0.0
    %2795 = vmatprep.subr.mxu0 0.0
    %2796 = vmatpush1.msra.mxu0 0.0
    %2797 = vmatprep.subr.mxu0 0.0
    %2798 = vmatpush1.msra.mxu0 0.0
    %2799 = vmatprep.subr.mxu0 0.0
    %2800 = vmatpush1.msra.mxu0 0.0
    %2801 = vmatprep.subr.mxu0 0.0
    %2802 = vmatpush1.msra.mxu0 0.0
    %2803 = vmatprep.subr.mxu0 0.0
    %2804 = vmatpush1.msra.mxu0 0.0
    %2805 = vmatprep.subr.mxu0 0.0
    %2806 = vmatpush1.msra.mxu0 0.0
    %2807 = vmatprep.subr.mxu0 0.0
    %2808 = vmatpush1.msra.mxu0 0.0
    %2809 = vmatprep.subr.mxu0 0.0
    %2810 = vmatpush1.msra.mxu0 0.0
    %2811 = vmatprep.subr.mxu0 0.0
    %2812 = vmatpush1.msra.mxu0 0.0
    %2813 = vmatprep.subr.mxu0 0.0
    %2814 = vmatpush1.msra.mxu0 0.0
    %2815 = vmatprep.subr.mxu0 0.0
    %2816 = vmatpush1.msra.mxu0 0.0
    %2817 = vmatprep.subr.mxu0 0.0
    %2818 = vmatpush1.msra.mxu0 0.0
    %2819 = vmatprep.subr.mxu0 0.0
    %2820 = vmatpush1.msra.mxu0 0.0
    %2821 = vmatprep.subr.mxu0 0.0
    %2822 = vmatpush1.msra.mxu0 0.0
    %2823 = vmatprep.mubr.f32.mxu0 0.0
    %2824 = vmatmul.mubr.f32.gmra.mrb[0].mxu0 %v2754
    %v2825 = vpop.f32.mrb[0].mxu0
    %v2826 = vadd.f32 0.0, %v2825
    %v2827 = vpop.f32.mrb[0].mxu0
    %2828 = vmatprep.mubr.f32.mxu0 0.0
    %2829 = vmatmul.mubr.f32.gmra.mrb[0].mxu0 %v2757
    %v2830 = vpop.f32.mrb[0].mxu0
    %v2831 = vadd.f32 0.0, %v2830
    %v2832 = vpop.f32.mrb[0].mxu0
    %2833 = vdwg.mxu0
    %v2835 = vsel %vm411, %v2589, 0
    %v2838 = vsel %vm411, %v2590, 0
    %2840 = vmatprep.subr.mxu0 0.0
    %2841 = vmatpush1.msra.mxu0 %v1822
    %2842 = vmatprep.subr.mxu0 0.0
    %2843 = vmatpush1.msra.mxu0 0.0
    %2844 = vmatprep.subr.mxu0 0.0
    %2845 = vmatpush1.msra.mxu0 0.0
    %2846 = vmatprep.subr.mxu0 0.0
    %2847 = vmatpush1.msra.mxu0 0.0
    %2848 = vmatprep.subr.mxu0 0.0
    %2849 = vmatpush1.msra.mxu0 0.0
    %2850 = vmatprep.subr.mxu0 0.0
    %2851 = vmatpush1.msra.mxu0 0.0
    %2852 = vmatprep.subr.mxu0 0.0
    %2853 = vmatpush1.msra.mxu0 0.0
    %2854 = vmatprep.subr.mxu0 0.0
    %2855 = vmatpush1.msra.mxu0 0.0
    %2856 = vmatprep.subr.mxu0 0.0
    %2857 = vmatpush1.msra.mxu0 0.0
    %2858 = vmatprep.subr.mxu0 0.0
    %2859 = vmatpush1.msra.mxu0 0.0
    %2860 = vmatprep.subr.mxu0 0.0
    %2861 = vmatpush1.msra.mxu0 0.0
    %2862 = vmatprep.subr.mxu0 0.0
    %2863 = vmatpush1.msra.mxu0 0.0
    %2864 = vmatprep.subr.mxu0 0.0
    %2865 = vmatpush1.msra.mxu0 0.0
    %2866 = vmatprep.subr.mxu0 0.0
    %2867 = vmatpush1.msra.mxu0 0.0
    %2868 = vmatprep.subr.mxu0 0.0
    %2869 = vmatpush1.msra.mxu0 0.0
    %2870 = vmatprep.subr.mxu0 0.0
    %2871 = vmatpush1.msra.mxu0 0.0
    %2872 = vmatprep.subr.mxu0 0.0
    %2873 = vmatpush1.msra.mxu0 0.0
    %2874 = vmatprep.subr.mxu0 0.0
    %2875 = vmatpush1.msra.mxu0 0.0
    %2876 = vmatprep.subr.mxu0 0.0
    %2877 = vmatpush1.msra.mxu0 0.0
    %2878 = vmatprep.subr.mxu0 0.0
    %2879 = vmatpush1.msra.mxu0 0.0
    %2880 = vmatprep.subr.mxu0 0.0
    %2881 = vmatpush1.msra.mxu0 0.0
    %2882 = vmatprep.subr.mxu0 0.0
    %2883 = vmatpush1.msra.mxu0 0.0
    %2884 = vmatprep.subr.mxu0 0.0
    %2885 = vmatpush1.msra.mxu0 0.0
    %2886 = vmatprep.subr.mxu0 0.0
    %2887 = vmatpush1.msra.mxu0 0.0
    %2888 = vmatprep.subr.mxu0 0.0
    %2889 = vmatpush1.msra.mxu0 0.0
    %2890 = vmatprep.subr.mxu0 0.0
    %2891 = vmatpush1.msra.mxu0 0.0
    %2892 = vmatprep.subr.mxu0 0.0
    %2893 = vmatpush1.msra.mxu0 0.0
    %2894 = vmatprep.subr.mxu0 0.0
    %2895 = vmatpush1.msra.mxu0 0.0
    %2896 = vmatprep.subr.mxu0 0.0
    %2897 = vmatpush1.msra.mxu0 0.0
    %2898 = vmatprep.subr.mxu0 0.0
    %2899 = vmatpush1.msra.mxu0 0.0
    %2900 = vmatprep.subr.mxu0 0.0
    %2901 = vmatpush1.msra.mxu0 0.0
    %2902 = vmatprep.subr.mxu0 0.0
    %2903 = vmatpush1.msra.mxu0 0.0
    %2904 = vmatprep.mubr.f32.mxu0 0.0
    %2905 = vmatmul.mubr.f32.gmra.mrb[0].mxu0 %v2835
    %v2906 = vpop.f32.mrb[0].mxu0
    %v2907 = vadd.f32 0.0, %v2906
    %v2908 = vpop.f32.mrb[0].mxu0
    %2909 = vmatprep.mubr.f32.mxu0 0.0
    %2910 = vmatmul.mubr.f32.gmra.mrb[0].mxu0 %v2838
    %v2911 = vpop.f32.mrb[0].mxu0
    %v2912 = vadd.f32 0.0, %v2911
    %v2913 = vpop.f32.mrb[0].mxu0
    %2914 = vdwg.mxu0
    %v2915 = vadd.f32 %v2664, %v2745
    %v2916 = vadd.f32 %v2669, %v2750
    %v2917 = vadd.f32 %v2915, %v2826
    %v2918 = vadd.f32 %v2916, %v2831
    %v2919 = vadd.f32 %v2917, %v2907
    %v2920 = vadd.f32 %v2918, %v2912
    %v2921 = vlaneseq
    %v2922 = vshrl.u32 %v2921, 7
    %v2923 = vsub.s32 4, %v2922
    %v2924 = vrot.slane %v137, %v2923
    %v2925 = vadd.f32 %v2919, %v2924
    %v2926 = vadd.f32 %v2920, %v2924
    %v2927 = vadd.f32 %v2925, %v1501
    %v2928 = vadd.f32 %v2926, %v1502
    %v2929 = vsel %vm147, %v2927, 0.0
    %2930 = vadd.xlane.f32.xlu0 %v2929
    %v2931 = vpop.xlane.xlu0 %2930
    %v2932 = vsel %vm147, %v2928, 0.0
    %2933 = vadd.xlane.f32.xlu0 %v2932
    %v2934 = vpop.xlane.xlu0 %2933
    %v2935 = vmul.f32 %v2931, %v154
    %v2936 = vmul.f32 %v2934, %v154
    %v2937 = vsub.f32 %v2927, %v2935
    %v2938 = vsub.f32 %v2928, %v2936
    %v2939 = vmul.f32 %v2937, %v2937
    %v2940 = vmul.f32 %v2938, %v2938
    %v2941 = vsel %vm147, %v2939, 0.0
    %2942 = vadd.xlane.f32.xlu0 %v2941
    %v2943 = vpop.xlane.xlu0 %2942
    %v2944 = vsel %vm147, %v2940, 0.0
    %2945 = vadd.xlane.f32.xlu0 %v2944
    %v2946 = vpop.xlane.xlu0 %2945
    %v2947 = vmul.f32 %v2943, %v154
    %v2948 = vmul.f32 %v2946, %v154
    %v2949 = vadd.f32 %v2947, 1e-12
    %v2950 = vadd.f32 %v2948, 1e-12
    %v2951 = vrsqrt.pop %v2949
    %v2952 = vrsqrt.pop %v2950
    %v2953 = vmul.f32 %v2937, %v2951
    %v2954 = vmul.f32 %v2938, %v2952
    %v2955 = vlaneseq
    %v2956 = vshrl.u32 %v2955, 7
    %v2957 = vsub.s32 3, %v2956
    %v2958 = vrot.slane %v140, %v2957
    %v2959 = vmul.f32 %v2953, %v2958
    %v2960 = vmul.f32 %v2954, %v2958
    %v2961 = vlaneseq
    %v2962 = vshrl.u32 %v2961, 7
    %v2963 = vsub.s32 4, %v2962
    %v2964 = vrot.slane %v140, %v2963
    %v2965 = vadd.f32 %v2959, %v2964
    %v2966 = vadd.f32 %v2960, %v2964
    %v2967 = vlaneseq
    %v2968 = vshrl.u32 %v2967, 7
    %v2969 = vsub.s32 5, %v2968
    %v2970 = vrot.slane %v137, %v2969
    %v2972 = vsel %vm147, %v2965, 0
    %v2975 = vsel %vm147, %v2966, 0
    %2977 = vmatprep.subr.mxu0 0.0
    %2978 = vmatpush1.msra.mxu0 %v125
    %2979 = vmatprep.subr.mxu0 0.0
    %2980 = vmatpush1.msra.mxu0 %v126
    %2981 = vmatprep.subr.mxu0 0.0
    %2982 = vmatpush1.msra.mxu0 %v127
    %2983 = vmatprep.subr.mxu0 0.0
    %2984 = vmatpush1.msra.mxu0 %v128
    %2985 = vmatprep.subr.mxu0 0.0
    %2986 = vmatpush1.msra.mxu0 0.0
    %2987 = vmatprep.subr.mxu0 0.0
    %2988 = vmatpush1.msra.mxu0 0.0
    %2989 = vmatprep.subr.mxu0 0.0
    %2990 = vmatpush1.msra.mxu0 0.0
    %2991 = vmatprep.subr.mxu0 0.0
    %2992 = vmatpush1.msra.mxu0 0.0
    %2993 = vmatprep.subr.mxu0 0.0
    %2994 = vmatpush1.msra.mxu0 0.0
    %2995 = vmatprep.subr.mxu0 0.0
    %2996 = vmatpush1.msra.mxu0 0.0
    %2997 = vmatprep.subr.mxu0 0.0
    %2998 = vmatpush1.msra.mxu0 0.0
    %2999 = vmatprep.subr.mxu0 0.0
    %3000 = vmatpush1.msra.mxu0 0.0
    %3001 = vmatprep.subr.mxu0 0.0
    %3002 = vmatpush1.msra.mxu0 0.0
    %3003 = vmatprep.subr.mxu0 0.0
    %3004 = vmatpush1.msra.mxu0 0.0
    %3005 = vmatprep.subr.mxu0 0.0
    %3006 = vmatpush1.msra.mxu0 0.0
    %3007 = vmatprep.subr.mxu0 0.0
    %3008 = vmatpush1.msra.mxu0 0.0
    %3009 = vmatprep.subr.mxu0 0.0
    %3010 = vmatpush1.msra.mxu0 0.0
    %3011 = vmatprep.subr.mxu0 0.0
    %3012 = vmatpush1.msra.mxu0 0.0
    %3013 = vmatprep.subr.mxu0 0.0
    %3014 = vmatpush1.msra.mxu0 0.0
    %3015 = vmatprep.subr.mxu0 0.0
    %3016 = vmatpush1.msra.mxu0 0.0
    %3017 = vmatprep.subr.mxu0 0.0
    %3018 = vmatpush1.msra.mxu0 0.0
    %3019 = vmatprep.subr.mxu0 0.0
    %3020 = vmatpush1.msra.mxu0 0.0
    %3021 = vmatprep.subr.mxu0 0.0
    %3022 = vmatpush1.msra.mxu0 0.0
    %3023 = vmatprep.subr.mxu0 0.0
    %3024 = vmatpush1.msra.mxu0 0.0
    %3025 = vmatprep.subr.mxu0 0.0
    %3026 = vmatpush1.msra.mxu0 0.0
    %3027 = vmatprep.subr.mxu0 0.0
    %3028 = vmatpush1.msra.mxu0 0.0
    %3029 = vmatprep.subr.mxu0 0.0
    %3030 = vmatpush1.msra.mxu0 0.0
    %3031 = vmatprep.subr.mxu0 0.0
    %3032 = vmatpush1.msra.mxu0 0.0
    %3033 = vmatprep.subr.mxu0 0.0
    %3034 = vmatpush1.msra.mxu0 0.0
    %3035 = vmatprep.subr.mxu0 0.0
    %3036 = vmatpush1.msra.mxu0 0.0
    %3037 = vmatprep.subr.mxu0 0.0
    %3038 = vmatpush1.msra.mxu0 0.0
    %3039 = vmatprep.subr.mxu0 0.0
    %3040 = vmatpush1.msra.mxu0 0.0
    %3041 = vmatprep.mubr.f32.mxu0 0.0
    %3042 = vmatmul.mubr.f32.gmra.mrb[0].mxu0 %v2972
    %v3043 = vpop.f32.mrb[0].mxu0
    %v3044 = vadd.f32 %v2970, %v3043
    %v3045 = vpop.f32.mrb[0].mxu0
    %3046 = vmatprep.mubr.f32.mxu0 0.0
    %3047 = vmatmul.mubr.f32.gmra.mrb[0].mxu0 %v2975
    %v3048 = vpop.f32.mrb[0].mxu0
    %v3049 = vadd.f32 %v2970, %v3048
    %v3050 = vpop.f32.mrb[0].mxu0
    %3051 = vdwg.mxu0
    %v3052 = vmax.f32 %v3044, 0.0
    %v3053 = vmax.f32 %v3049, 0.0
    %v3054 = vlaneseq
    %v3055 = vshrl.u32 %v3054, 7
    %v3056 = vsub.s32 6, %v3055
    %v3057 = vrot.slane %v137, %v3056
    %vm3058 = vcmask 523264
    %v3060 = vsel %vm3058, %v3052, 0
    %v3063 = vsel %vm3058, %v3053, 0
    %3065 = vmatprep.subr.mxu0 0.0
    %3066 = vmatpush1.msra.mxu0 %v129
    %3067 = vmatprep.subr.mxu0 0.0
    %3068 = vmatpush1.msra.mxu0 %v130
    %3069 = vmatprep.subr.mxu0 0.0
    %3070 = vmatpush1.msra.mxu0 %v131
    %3071 = vmatprep.subr.mxu0 0.0
    %3072 = vmatpush1.msra.mxu0 %v132
    %3073 = vmatprep.subr.mxu0 0.0
    %3074 = vmatpush1.msra.mxu0 %v133
    %3075 = vmatprep.subr.mxu0 0.0
    %3076 = vmatpush1.msra.mxu0 %v134
    %3077 = vmatprep.subr.mxu0 0.0
    %3078 = vmatpush1.msra.mxu0 %v135
    %3079 = vmatprep.subr.mxu0 0.0
    %3080 = vmatpush1.msra.mxu0 %v136
    %3081 = vmatprep.subr.mxu0 0.0
    %3082 = vmatpush1.msra.mxu0 0.0
    %3083 = vmatprep.subr.mxu0 0.0
    %3084 = vmatpush1.msra.mxu0 0.0
    %3085 = vmatprep.subr.mxu0 0.0
    %3086 = vmatpush1.msra.mxu0 0.0
    %3087 = vmatprep.subr.mxu0 0.0
    %3088 = vmatpush1.msra.mxu0 0.0
    %3089 = vmatprep.subr.mxu0 0.0
    %3090 = vmatpush1.msra.mxu0 0.0
    %3091 = vmatprep.subr.mxu0 0.0
    %3092 = vmatpush1.msra.mxu0 0.0
    %3093 = vmatprep.subr.mxu0 0.0
    %3094 = vmatpush1.msra.mxu0 0.0
    %3095 = vmatprep.subr.mxu0 0.0
    %3096 = vmatpush1.msra.mxu0 0.0
    %3097 = vmatprep.subr.mxu0 0.0
    %3098 = vmatpush1.msra.mxu0 0.0
    %3099 = vmatprep.subr.mxu0 0.0
    %3100 = vmatpush1.msra.mxu0 0.0
    %3101 = vmatprep.subr.mxu0 0.0
    %3102 = vmatpush1.msra.mxu0 0.0
    %3103 = vmatprep.subr.mxu0 0.0
    %3104 = vmatpush1.msra.mxu0 0.0
    %3105 = vmatprep.subr.mxu0 0.0
    %3106 = vmatpush1.msra.mxu0 0.0
    %3107 = vmatprep.subr.mxu0 0.0
    %3108 = vmatpush1.msra.mxu0 0.0
    %3109 = vmatprep.subr.mxu0 0.0
    %3110 = vmatpush1.msra.mxu0 0.0
    %3111 = vmatprep.subr.mxu0 0.0
    %3112 = vmatpush1.msra.mxu0 0.0
    %3113 = vmatprep.subr.mxu0 0.0
    %3114 = vmatpush1.msra.mxu0 0.0
    %3115 = vmatprep.subr.mxu0 0.0
    %3116 = vmatpush1.msra.mxu0 0.0
    %3117 = vmatprep.subr.mxu0 0.0
    %3118 = vmatpush1.msra.mxu0 0.0
    %3119 = vmatprep.subr.mxu0 0.0
    %3120 = vmatpush1.msra.mxu0 0.0
    %3121 = vmatprep.subr.mxu0 0.0
    %3122 = vmatpush1.msra.mxu0 0.0
    %3123 = vmatprep.subr.mxu0 0.0
    %3124 = vmatpush1.msra.mxu0 0.0
    %3125 = vmatprep.subr.mxu0 0.0
    %3126 = vmatpush1.msra.mxu0 0.0
    %3127 = vmatprep.subr.mxu0 0.0
    %3128 = vmatpush1.msra.mxu0 0.0
    %3129 = vmatprep.mubr.f32.mxu0 0.0
    %3130 = vmatmul.mubr.f32.gmra.mrb[0].mxu0 %v3060
    %v3131 = vpop.f32.mrb[0].mxu0
    %v3132 = vadd.f32 %v3057, %v3131
    %v3133 = vpop.f32.mrb[0].mxu0
    %3134 = vmatprep.mubr.f32.mxu0 0.0
    %3135 = vmatmul.mubr.f32.gmra.mrb[0].mxu0 %v3063
    %v3136 = vpop.f32.mrb[0].mxu0
    %v3137 = vadd.f32 %v3057, %v3136
    %v3138 = vpop.f32.mrb[0].mxu0
    %3139 = vdwg.mxu0
    %v3140 = vadd.f32 %v3132, %v2927
    %v3141 = vadd.f32 %v3137, %v2928
    %3142 = vst.msk [vmem:[#allocation11] sm:$0xff] %vm147, %v3140
    %3143 = vst.msk [vmem:[#allocation11 + $0x8] sm:$0xff] %vm147, %v3141
    // Predicated region
    $region58: #{onnx_decoder_layer.1} parent=1 // pred_check
      _
    $region59: #{onnx_decoder_layer.1} parent=1 // pred_check_branch
      %3145 = sbr.rel (0) target = $region61
    $region60: #{onnx_decoder_layer.1} parent=1 // pred_region
      %s3147 = ssub.s32 256, 256
      %3148 = vsyncadd [#allocation4], %s3147
      %s3149 = sshll.u32 [#allocation11], 4
      %s3150 = int_to_ptr.vmem [resolvable:$true] %s3149
      %3155 = dma.vmem_to_hbm [thread:$0]  %s3150, 256, %s9, [#allocation4], 128, 128, 8
    $region61: #{onnx_decoder_layer.1} parent=1 // pred_fallthru
      _
    // Predicated region
    $region62: #{onnx_decoder_layer.1} parent=1 // pred_check
      _
    $region63: #{onnx_decoder_layer.1} parent=1 // pred_check_branch
      %3157 = sbr.rel (0) target = $region65
    $region64: #{onnx_decoder_layer.1} parent=1 // pred_region
      %3158 = dma.done [#allocation4], 256
    $region65: #{onnx_decoder_layer.1} parent=1 // pred_fallthru
      _
    %3159 = vsyncpa [#allocation3], 1
    %3160 = vsyncpa [#allocation6], 1
    %3161 = vsyncpa [#allocation9], 1
    %3162 = vsyncpa [#allocation4], 1

</llo_original>
